<compile_context>
chip_gen: v7x
topology: tpu7x:2x2x1
jax: 0.10.0
libtpu: 0.0.40
codegen_flags: <defaults>
</compile_context>

<pallas_src>
import functools

import jax
import jax.numpy as jnp
from jax.experimental import pallas as pl
from jax.experimental.pallas import tpu as pltpu


# Synthetic structure_info (ConvKXBNRELU blocks: Conv k3 -> BN(eval) -> ReLU).
_STRUCTURE = [
    dict(cin=4, cout=8, k=3, s=2),
    dict(cin=8, cout=16, k=3, s=2),
    dict(cin=16, cout=32, k=3, s=1),
]
_NUM_CLASSES = 10
_BN_EPS = 1e-5
_B, _CIN, _H, _W = 2, 4, 16, 16

# Packed-weight column offsets: [conv0 | conv1 | conv2 | fc] along the lane axis.
_COUT_LIST = [blk["cout"] for blk in _STRUCTURE] + [_NUM_CLASSES]
_COL_OFF = (0,)
for _c in _COUT_LIST:
    _COL_OFF = _COL_OFF + (_COL_OFF[-1] + _c,)
_KMAX = max([blk["k"] * blk["k"] * blk["cin"] for blk in _STRUCTURE]
            + [_STRUCTURE[-1]["cout"]])


# ----------------------------- kernel helpers -------------------------------


def _build_patches(src_ref, *, B, Hin, Win, Ho, Wo, C, k, s):
    """Assemble, fully in registers, one (Ho*Wo, k*k*C) im2col patch value per
    batch from the un-padded source ref (B*Hin*Win, C).  Boundary taps are zero
    constants; every offset is a static Python int, so this unrolls into plain
    static (optionally sublane-strided) VMEM reads + lane/sublane concats."""
    pad = k // 2
    zero_tap = jnp.zeros((Wo, C), jnp.float32)
    per_b = []
    for b in range(B):
        rows = []
        for ho in range(Ho):
            taps = []
            for kh in range(k):
                h_src = ho * s + kh - pad
                row_valid = 0 <= h_src < Hin
                for kw in range(k):
                    if not row_valid:
                        taps.append(zero_tap)
                        continue
                    wo_lo = max(0, -(-(pad - kw) // s))            # ceil((pad-kw)/s)
                    wo_hi = min(Wo - 1, (Win - 1 + pad - kw) // s)
                    n = wo_hi - wo_lo + 1
                    w0 = wo_lo * s + kw - pad
                    # Static guards: the (possibly strided) read must stay
                    # inside one image row of one batch element.
                    assert n >= 1
                    assert 0 <= w0 and wo_hi * s + kw - pad <= Win - 1
                    start = (b * Hin + h_src) * Win + w0
                    if s == 1:
                        valid = src_ref[start:start + n, :]
                    else:
                        valid = src_ref[pl.ds(start, n, stride=s), :]
                    pieces = []
                    if wo_lo > 0:
                        pieces.append(zero_tap[:wo_lo, :])
                    pieces.append(valid)
                    if wo_hi < Wo - 1:
                        pieces.append(zero_tap[:Wo - 1 - wo_hi, :])
                    taps.append(pieces[0] if len(pieces) == 1
                                else jnp.concatenate(pieces, axis=0))
            rows.append(jnp.concatenate(taps, axis=-1))            # (Wo, k*k*C)
        per_b.append(jnp.concatenate(rows, axis=0))                # (Ho*Wo, k*k*C)
    return per_b


def _cnnnet_kernel(x_ref, w_ref, b_ref, out_ref, *act_scratch, geom, col_off):
    """Fused CnnNet forward: conv blocks (in-register im2col -> MXU matmul with
    folded BN -> ReLU), global average pool, and the FC head — all in VMEM."""
    src = x_ref
    act = None
    for i, g in enumerate(geom):
        kkc = g["k"] * g["k"] * g["Cin"]
        c0, c1 = col_off[i], col_off[i + 1]
        per_b = _build_patches(src, B=g["B"], Hin=g["Hin"], Win=g["Win"],
                               Ho=g["Ho"], Wo=g["Wo"], C=g["Cin"],
                               k=g["k"], s=g["s"])
        patch = per_b[0] if g["B"] == 1 else jnp.concatenate(per_b, axis=0)
        w = w_ref[0:kkc, c0:c1]                       # BN scale already folded in
        bias = b_ref[0:1, c0:c1]
        acc = jnp.dot(patch, w, preferred_element_type=jnp.float32)
        act = jnp.maximum(acc + bias, 0.0)            # folded BN bias + ReLU
        if i + 1 < len(geom):
            # Single full store: next block's strided-read source.
            act_scratch[i][...] = act
            src = act_scratch[i]

    # adaptive_avg_pool2d((1,1)) + flatten: per-batch cross-sublane mean,
    # then the Linear head (both on register values, no HBM round trips).
    g = geom[-1]
    hw = g["Ho"] * g["Wo"]
    pooled = jnp.concatenate(
        [jnp.mean(act[b * hw:(b + 1) * hw, :], axis=0, keepdims=True)
         for b in range(g["B"])], axis=0)             # (B, Cout_last)
    cf0, cf1 = col_off[-2], col_off[-1]
    wfc = w_ref[0:g["Cout"], cf0:cf1]
    bfc = b_ref[0:1, cf0:cf1]
    out_ref[...] = jnp.dot(pooled, wfc, preferred_element_type=jnp.float32) + bfc


# ------------------------------ JAX wrapper ----------------------------------


def _make_geom(B, H, W):
    geom = []
    h, w = H, W
    for blk in _STRUCTURE:
        k, s = blk["k"], blk["s"]
        pad = k // 2
        ho = (h + 2 * pad - k) // s + 1
        wo = (w + 2 * pad - k) // s + 1
        geom.append(dict(B=B, Hin=h, Win=w, Cin=blk["cin"], Cout=blk["cout"],
                         k=k, s=s, Ho=ho, Wo=wo))
        h, w = ho, wo
    return geom


@jax.jit
def cnnnet_forward(x, w_packed, b_packed):
    """x: (B, Cin, H, W) NCHW float32 (PyTorch layout). Returns (B, num_classes)."""
    B, Cin, H, W = x.shape
    geom = _make_geom(B, H, W)

    # Module boundary only: NCHW -> NHWC rows (channels on lanes), one fusion.
    x2d = jnp.transpose(x, (0, 2, 3, 1)).reshape(B * H * W, Cin)

    # Activation scratch for every block except the last (whose output is
    # consumed directly by the pooled head as a register value).
    scratch_shapes = [
        pltpu.VMEM((g["B"] * g["Ho"] * g["Wo"], g["Cout"]), jnp.float32)
        for g in geom[:-1]
    ]

    vmem_spec = pl.BlockSpec(memory_space=pltpu.MemorySpace.VMEM)
    kernel = functools.partial(_cnnnet_kernel, geom=tuple(geom), col_off=_COL_OFF)
    return pl.pallas_call(
        kernel,
        out_shape=jax.ShapeDtypeStruct((B, _NUM_CLASSES), jnp.float32),
        in_specs=[vmem_spec] * 3,
        out_specs=vmem_spec,
        scratch_shapes=scratch_shapes,
    )(x2d, w_packed, b_packed)


# ------------------------- parameters & reference ----------------------------


def make_params(key):
    """Torch-layout parameters: conv (Cout, Cin, K, K), BN stats, fc (NC, C)."""
    params = {"blocks": []}
    for blk in _STRUCTURE:
        key, kw, kg, kb, km, kv = jax.random.split(key, 6)
        cin, cout, k = blk["cin"], blk["cout"], blk["k"]
        params["blocks"].append(dict(
            weight=0.1 * jax.random.normal(kw, (cout, cin, k, k), jnp.float32),
            gamma=1.0 + 0.05 * jax.random.normal(kg, (cout,), jnp.float32),
            beta=0.05 * jax.random.normal(kb, (cout,), jnp.float32),
            mean=0.05 * jax.random.normal(km, (cout,), jnp.float32),
            var=1.0 + 0.1 * jax.random.uniform(kv, (cout,), jnp.float32),
        ))
    key, kfw, kfb = jax.random.split(key, 3)
    # network_weight_stupid_init -> small deterministic weights is fine here.
    params["fc_w"] = 0.1 * jax.random.normal(
        kfw, (_NUM_CLASSES, _STRUCTURE[-1]["cout"]), jnp.float32)
    params["fc_b"] = 0.01 * jax.random.normal(kfb, (_NUM_CLASSES,), jnp.float32)
    return params


def fold_inference_params(params):
    """Deploy-time prep: fold eval-mode BN into each conv weight matrix, reshape
    to (k*k*cin, cout) matching the kernel's (kh, kw, cin) patch ordering, and
    pack every weight matrix / bias row into ONE slab each (3 entry DMAs total
    at call time: x, w_packed, b_packed).  All f32."""
    w_packed = jnp.zeros((_KMAX, _COL_OFF[-1]), jnp.float32)
    b_packed = jnp.zeros((1, _COL_OFF[-1]), jnp.float32)
    for i, (blk, spec) in enumerate(zip(params["blocks"], _STRUCTURE)):
        k, cin, cout = spec["k"], spec["cin"], spec["cout"]
        scale = blk["gamma"] / jnp.sqrt(blk["var"] + _BN_EPS)
        bias = blk["beta"] - blk["mean"] * scale
        w_mat = jnp.transpose(blk["weight"], (2, 3, 1, 0)).reshape(k * k * cin, cout)
        c0, c1 = _COL_OFF[i], _COL_OFF[i + 1]
        w_packed = w_packed.at[0:k * k * cin, c0:c1].set(w_mat * scale[None, :])
        b_packed = b_packed.at[0:1, c0:c1].set(bias[None, :])
    c0, c1 = _COL_OFF[-2], _COL_OFF[-1]
    w_packed = w_packed.at[0:_STRUCTURE[-1]["cout"], c0:c1].set(params["fc_w"].T)
    b_packed = b_packed.at[0:1, c0:c1].set(params["fc_b"][None, :])
    return w_packed, b_packed


def reference_forward(x, params):
    """Pure-JAX eval-mode reference of CnnNet.forward (for validation)."""
    out = x
    for blk, spec in zip(params["blocks"], _STRUCTURE):
        out = jax.lax.conv_general_dilated(
            out, blk["weight"], window_strides=(spec["s"], spec["s"]),
            padding=[(spec["k"] // 2,) * 2] * 2,
            dimension_numbers=("NCHW", "OIHW", "NCHW"))
        scale = blk["gamma"] / jnp.sqrt(blk["var"] + _BN_EPS)
        bias = blk["beta"] - blk["mean"] * scale
        out = jnp.maximum(out * scale[None, :, None, None]
                          + bias[None, :, None, None], 0.0)
    pooled = jnp.mean(out, axis=(2, 3))        # adaptive_avg_pool2d + flatten
    return pooled @ params["fc_w"].T + params["fc_b"]


# --------------------------------- main ---------------------------------------

if __name__ == "__main__":
    key = jax.random.PRNGKey(0)
    key, kx = jax.random.split(key)
    x = jax.random.normal(kx, (_B, _CIN, _H, _W), jnp.float32)  # NCHW like torch
    params = make_params(key)
    w_packed, b_packed = fold_inference_params(params)

    logits = cnnnet_forward(x, w_packed, b_packed)
    jax.block_until_ready(logits)
    assert logits.shape == (_B, _NUM_CLASSES), logits.shape

    ref = reference_forward(x, params)
    err = float(jnp.max(jnp.abs(logits - ref)))
    assert err < 2e-2, f"max |kernel - reference| = {err}"

    print("KERNEL_OK")
</pallas_src>

<mosaic_0001>
module attributes {stable_mosaic.version = 11 : i64} {
  func.func @_cnnnet_kernel(%arg0: memref<512x4xf32, #tpu.memory_space<vmem>>, %arg1: memref<144x66xf32, #tpu.memory_space<vmem>>, %arg2: memref<1x66xf32, #tpu.memory_space<vmem>>, %arg3: memref<2x10xf32, #tpu.memory_space<vmem>>, %arg4: memref<128x8xf32, #tpu.memory_space<vmem>>, %arg5: memref<32x16xf32, #tpu.memory_space<vmem>>) attributes {dimension_semantics = [], scalar_prefetch = 0 : i64, scratch_operands = 2 : i64, tpu.core_type = #tpu.core_type<tc>} {
    %cst = arith.constant 0.000000e+00 : f32
    %0 = vector.broadcast %cst : f32 to vector<8x4xf32>
    %c1 = arith.constant 1 : index
    %c0 = arith.constant 0 : index
    %1 = tpu.strided_load %arg0[%c1, %c0] {strides = array<i32: 2, 1>} : memref<512x4xf32, #tpu.memory_space<vmem>>, vector<7x4xf32>
    %2 = vector.extract_strided_slice %0 {offsets = [0, 0], sizes = [1, 4], strides = [1, 1]} : vector<8x4xf32> to vector<1x4xf32>
    %3 = tpu.concatenate %2, %1 in 0 : vector<1x4xf32>, vector<7x4xf32> -> vector<8x4xf32>
    %c0_0 = arith.constant 0 : index
    %c0_1 = arith.constant 0 : index
    %4 = tpu.strided_load %arg0[%c0_0, %c0_1] {strides = array<i32: 2, 1>} : memref<512x4xf32, #tpu.memory_space<vmem>>, vector<8x4xf32>
    %c1_2 = arith.constant 1 : index
    %c0_3 = arith.constant 0 : index
    %5 = tpu.strided_load %arg0[%c1_2, %c0_3] {strides = array<i32: 2, 1>} : memref<512x4xf32, #tpu.memory_space<vmem>>, vector<8x4xf32>
    %c17 = arith.constant 17 : index
    %c0_4 = arith.constant 0 : index
    %6 = tpu.strided_load %arg0[%c17, %c0_4] {strides = array<i32: 2, 1>} : memref<512x4xf32, #tpu.memory_space<vmem>>, vector<7x4xf32>
    %7 = vector.extract_strided_slice %0 {offsets = [0, 0], sizes = [1, 4], strides = [1, 1]} : vector<8x4xf32> to vector<1x4xf32>
    %8 = tpu.concatenate %7, %6 in 0 : vector<1x4xf32>, vector<7x4xf32> -> vector<8x4xf32>
    %c16 = arith.constant 16 : index
    %c0_5 = arith.constant 0 : index
    %9 = tpu.strided_load %arg0[%c16, %c0_5] {strides = array<i32: 2, 1>} : memref<512x4xf32, #tpu.memory_space<vmem>>, vector<8x4xf32>
    %c17_6 = arith.constant 17 : index
    %c0_7 = arith.constant 0 : index
    %10 = tpu.strided_load %arg0[%c17_6, %c0_7] {strides = array<i32: 2, 1>} : memref<512x4xf32, #tpu.memory_space<vmem>>, vector<8x4xf32>
    %11 = tpu.concatenate %0, %0, %0, %3, %4, %5, %8, %9, %10 in 1 : vector<8x4xf32>, vector<8x4xf32>, vector<8x4xf32>, vector<8x4xf32>, vector<8x4xf32>, vector<8x4xf32>, vector<8x4xf32>, vector<8x4xf32>, vector<8x4xf32> -> vector<8x36xf32>
    %c17_8 = arith.constant 17 : index
    %c0_9 = arith.constant 0 : index
    %12 = tpu.strided_load %arg0[%c17_8, %c0_9] {strides = array<i32: 2, 1>} : memref<512x4xf32, #tpu.memory_space<vmem>>, vector<7x4xf32>
    %13 = vector.extract_strided_slice %0 {offsets = [0, 0], sizes = [1, 4], strides = [1, 1]} : vector<8x4xf32> to vector<1x4xf32>
    %14 = tpu.concatenate %13, %12 in 0 : vector<1x4xf32>, vector<7x4xf32> -> vector<8x4xf32>
    %c16_10 = arith.constant 16 : index
    %c0_11 = arith.constant 0 : index
    %15 = tpu.strided_load %arg0[%c16_10, %c0_11] {strides = array<i32: 2, 1>} : memref<512x4xf32, #tpu.memory_space<vmem>>, vector<8x4xf32>
    %c17_12 = arith.constant 17 : index
    %c0_13 = arith.constant 0 : index
    %16 = tpu.strided_load %arg0[%c17_12, %c0_13] {strides = array<i32: 2, 1>} : memref<512x4xf32, #tpu.memory_space<vmem>>, vector<8x4xf32>
    %c33 = arith.constant 33 : index
    %c0_14 = arith.constant 0 : index
    %17 = tpu.strided_load %arg0[%c33, %c0_14] {strides = array<i32: 2, 1>} : memref<512x4xf32, #tpu.memory_space<vmem>>, vector<7x4xf32>
    %18 = vector.extract_strided_slice %0 {offsets = [0, 0], sizes = [1, 4], strides = [1, 1]} : vector<8x4xf32> to vector<1x4xf32>
    %19 = tpu.concatenate %18, %17 in 0 : vector<1x4xf32>, vector<7x4xf32> -> vector<8x4xf32>
    %c32 = arith.constant 32 : index
    %c0_15 = arith.constant 0 : index
    %20 = tpu.strided_load %arg0[%c32, %c0_15] {strides = array<i32: 2, 1>} : memref<512x4xf32, #tpu.memory_space<vmem>>, vector<8x4xf32>
    %c33_16 = arith.constant 33 : index
    %c0_17 = arith.constant 0 : index
    %21 = tpu.strided_load %arg0[%c33_16, %c0_17] {strides = array<i32: 2, 1>} : memref<512x4xf32, #tpu.memory_space<vmem>>, vector<8x4xf32>
    %c49 = arith.constant 49 : index
    %c0_18 = arith.constant 0 : index
    %22 = tpu.strided_load %arg0[%c49, %c0_18] {strides = array<i32: 2, 1>} : memref<512x4xf32, #tpu.memory_space<vmem>>, vector<7x4xf32>
    %23 = vector.extract_strided_slice %0 {offsets = [0, 0], sizes = [1, 4], strides = [1, 1]} : vector<8x4xf32> to vector<1x4xf32>
    %24 = tpu.concatenate %23, %22 in 0 : vector<1x4xf32>, vector<7x4xf32> -> vector<8x4xf32>
    %c48 = arith.constant 48 : index
    %c0_19 = arith.constant 0 : index
    %25 = tpu.strided_load %arg0[%c48, %c0_19] {strides = array<i32: 2, 1>} : memref<512x4xf32, #tpu.memory_space<vmem>>, vector<8x4xf32>
    %c49_20 = arith.constant 49 : index
    %c0_21 = arith.constant 0 : index
    %26 = tpu.strided_load %arg0[%c49_20, %c0_21] {strides = array<i32: 2, 1>} : memref<512x4xf32, #tpu.memory_space<vmem>>, vector<8x4xf32>
    %27 = tpu.concatenate %14, %15, %16, %19, %20, %21, %24, %25, %26 in 1 : vector<8x4xf32>, vector<8x4xf32>, vector<8x4xf32>, vector<8x4xf32>, vector<8x4xf32>, vector<8x4xf32>, vector<8x4xf32>, vector<8x4xf32>, vector<8x4xf32> -> vector<8x36xf32>
    %c49_22 = arith.constant 49 : index
    %c0_23 = arith.constant 0 : index
    %28 = tpu.strided_load %arg0[%c49_22, %c0_23] {strides = array<i32: 2, 1>} : memref<512x4xf32, #tpu.memory_space<vmem>>, vector<7x4xf32>
    %29 = vector.extract_strided_slice %0 {offsets = [0, 0], sizes = [1, 4], strides = [1, 1]} : vector<8x4xf32> to vector<1x4xf32>
    %30 = tpu.concatenate %29, %28 in 0 : vector<1x4xf32>, vector<7x4xf32> -> vector<8x4xf32>
    %c48_24 = arith.constant 48 : index
    %c0_25 = arith.constant 0 : index
    %31 = tpu.strided_load %arg0[%c48_24, %c0_25] {strides = array<i32: 2, 1>} : memref<512x4xf32, #tpu.memory_space<vmem>>, vector<8x4xf32>
    %c49_26 = arith.constant 49 : index
    %c0_27 = arith.constant 0 : index
    %32 = tpu.strided_load %arg0[%c49_26, %c0_27] {strides = array<i32: 2, 1>} : memref<512x4xf32, #tpu.memory_space<vmem>>, vector<8x4xf32>
    %c65 = arith.constant 65 : index
    %c0_28 = arith.constant 0 : index
    %33 = tpu.strided_load %arg0[%c65, %c0_28] {strides = array<i32: 2, 1>} : memref<512x4xf32, #tpu.memory_space<vmem>>, vector<7x4xf32>
    %34 = vector.extract_strided_slice %0 {offsets = [0, 0], sizes = [1, 4], strides = [1, 1]} : vector<8x4xf32> to vector<1x4xf32>
    %35 = tpu.concatenate %34, %33 in 0 : vector<1x4xf32>, vector<7x4xf32> -> vector<8x4xf32>
    %c64 = arith.constant 64 : index
    %c0_29 = arith.constant 0 : index
    %36 = tpu.strided_load %arg0[%c64, %c0_29] {strides = array<i32: 2, 1>} : memref<512x4xf32, #tpu.memory_space<vmem>>, vector<8x4xf32>
    %c65_30 = arith.constant 65 : index
    %c0_31 = arith.constant 0 : index
    %37 = tpu.strided_load %arg0[%c65_30, %c0_31] {strides = array<i32: 2, 1>} : memref<512x4xf32, #tpu.memory_space<vmem>>, vector<8x4xf32>
    %c81 = arith.constant 81 : index
    %c0_32 = arith.constant 0 : index
    %38 = tpu.strided_load %arg0[%c81, %c0_32] {strides = array<i32: 2, 1>} : memref<512x4xf32, #tpu.memory_space<vmem>>, vector<7x4xf32>
    %39 = vector.extract_strided_slice %0 {offsets = [0, 0], sizes = [1, 4], strides = [1, 1]} : vector<8x4xf32> to vector<1x4xf32>
    %40 = tpu.concatenate %39, %38 in 0 : vector<1x4xf32>, vector<7x4xf32> -> vector<8x4xf32>
    %c80 = arith.constant 80 : index
    %c0_33 = arith.constant 0 : index
    %41 = tpu.strided_load %arg0[%c80, %c0_33] {strides = array<i32: 2, 1>} : memref<512x4xf32, #tpu.memory_space<vmem>>, vector<8x4xf32>
    %c81_34 = arith.constant 81 : index
    %c0_35 = arith.constant 0 : index
    %42 = tpu.strided_load %arg0[%c81_34, %c0_35] {strides = array<i32: 2, 1>} : memref<512x4xf32, #tpu.memory_space<vmem>>, vector<8x4xf32>
    %43 = tpu.concatenate %30, %31, %32, %35, %36, %37, %40, %41, %42 in 1 : vector<8x4xf32>, vector<8x4xf32>, vector<8x4xf32>, vector<8x4xf32>, vector<8x4xf32>, vector<8x4xf32>, vector<8x4xf32>, vector<8x4xf32>, vector<8x4xf32> -> vector<8x36xf32>
    %c81_36 = arith.constant 81 : index
    %c0_37 = arith.constant 0 : index
    %44 = tpu.strided_load %arg0[%c81_36, %c0_37] {strides = array<i32: 2, 1>} : memref<512x4xf32, #tpu.memory_space<vmem>>, vector<7x4xf32>
    %45 = vector.extract_strided_slice %0 {offsets = [0, 0], sizes = [1, 4], strides = [1, 1]} : vector<8x4xf32> to vector<1x4xf32>
    %46 = tpu.concatenate %45, %44 in 0 : vector<1x4xf32>, vector<7x4xf32> -> vector<8x4xf32>
    %c80_38 = arith.constant 80 : index
    %c0_39 = arith.constant 0 : index
    %47 = tpu.strided_load %arg0[%c80_38, %c0_39] {strides = array<i32: 2, 1>} : memref<512x4xf32, #tpu.memory_space<vmem>>, vector<8x4xf32>
    %c81_40 = arith.constant 81 : index
    %c0_41 = arith.constant 0 : index
    %48 = tpu.strided_load %arg0[%c81_40, %c0_41] {strides = array<i32: 2, 1>} : memref<512x4xf32, #tpu.memory_space<vmem>>, vector<8x4xf32>
    %c97 = arith.constant 97 : index
    %c0_42 = arith.constant 0 : index
    %49 = tpu.strided_load %arg0[%c97, %c0_42] {strides = array<i32: 2, 1>} : memref<512x4xf32, #tpu.memory_space<vmem>>, vector<7x4xf32>
    %50 = vector.extract_strided_slice %0 {offsets = [0, 0], sizes = [1, 4], strides = [1, 1]} : vector<8x4xf32> to vector<1x4xf32>
    %51 = tpu.concatenate %50, %49 in 0 : vector<1x4xf32>, vector<7x4xf32> -> vector<8x4xf32>
    %c96 = arith.constant 96 : index
    %c0_43 = arith.constant 0 : index
    %52 = tpu.strided_load %arg0[%c96, %c0_43] {strides = array<i32: 2, 1>} : memref<512x4xf32, #tpu.memory_space<vmem>>, vector<8x4xf32>
    %c97_44 = arith.constant 97 : index
    %c0_45 = arith.constant 0 : index
    %53 = tpu.strided_load %arg0[%c97_44, %c0_45] {strides = array<i32: 2, 1>} : memref<512x4xf32, #tpu.memory_space<vmem>>, vector<8x4xf32>
    %c113 = arith.constant 113 : index
    %c0_46 = arith.constant 0 : index
    %54 = tpu.strided_load %arg0[%c113, %c0_46] {strides = array<i32: 2, 1>} : memref<512x4xf32, #tpu.memory_space<vmem>>, vector<7x4xf32>
    %55 = vector.extract_strided_slice %0 {offsets = [0, 0], sizes = [1, 4], strides = [1, 1]} : vector<8x4xf32> to vector<1x4xf32>
    %56 = tpu.concatenate %55, %54 in 0 : vector<1x4xf32>, vector<7x4xf32> -> vector<8x4xf32>
    %c112 = arith.constant 112 : index
    %c0_47 = arith.constant 0 : index
    %57 = tpu.strided_load %arg0[%c112, %c0_47] {strides = array<i32: 2, 1>} : memref<512x4xf32, #tpu.memory_space<vmem>>, vector<8x4xf32>
    %c113_48 = arith.constant 113 : index
    %c0_49 = arith.constant 0 : index
    %58 = tpu.strided_load %arg0[%c113_48, %c0_49] {strides = array<i32: 2, 1>} : memref<512x4xf32, #tpu.memory_space<vmem>>, vector<8x4xf32>
    %59 = tpu.concatenate %46, %47, %48, %51, %52, %53, %56, %57, %58 in 1 : vector<8x4xf32>, vector<8x4xf32>, vector<8x4xf32>, vector<8x4xf32>, vector<8x4xf32>, vector<8x4xf32>, vector<8x4xf32>, vector<8x4xf32>, vector<8x4xf32> -> vector<8x36xf32>
    %c113_50 = arith.constant 113 : index
    %c0_51 = arith.constant 0 : index
    %60 = tpu.strided_load %arg0[%c113_50, %c0_51] {strides = array<i32: 2, 1>} : memref<512x4xf32, #tpu.memory_space<vmem>>, vector<7x4xf32>
    %61 = vector.extract_strided_slice %0 {offsets = [0, 0], sizes = [1, 4], strides = [1, 1]} : vector<8x4xf32> to vector<1x4xf32>
    %62 = tpu.concatenate %61, %60 in 0 : vector<1x4xf32>, vector<7x4xf32> -> vector<8x4xf32>
    %c112_52 = arith.constant 112 : index
    %c0_53 = arith.constant 0 : index
    %63 = tpu.strided_load %arg0[%c112_52, %c0_53] {strides = array<i32: 2, 1>} : memref<512x4xf32, #tpu.memory_space<vmem>>, vector<8x4xf32>
    %c113_54 = arith.constant 113 : index
    %c0_55 = arith.constant 0 : index
    %64 = tpu.strided_load %arg0[%c113_54, %c0_55] {strides = array<i32: 2, 1>} : memref<512x4xf32, #tpu.memory_space<vmem>>, vector<8x4xf32>
    %c129 = arith.constant 129 : index
    %c0_56 = arith.constant 0 : index
    %65 = tpu.strided_load %arg0[%c129, %c0_56] {strides = array<i32: 2, 1>} : memref<512x4xf32, #tpu.memory_space<vmem>>, vector<7x4xf32>
    %66 = vector.extract_strided_slice %0 {offsets = [0, 0], sizes = [1, 4], strides = [1, 1]} : vector<8x4xf32> to vector<1x4xf32>
    %67 = tpu.concatenate %66, %65 in 0 : vector<1x4xf32>, vector<7x4xf32> -> vector<8x4xf32>
    %c128 = arith.constant 128 : index
    %c0_57 = arith.constant 0 : index
    %68 = tpu.strided_load %arg0[%c128, %c0_57] {strides = array<i32: 2, 1>} : memref<512x4xf32, #tpu.memory_space<vmem>>, vector<8x4xf32>
    %c129_58 = arith.constant 129 : index
    %c0_59 = arith.constant 0 : index
    %69 = tpu.strided_load %arg0[%c129_58, %c0_59] {strides = array<i32: 2, 1>} : memref<512x4xf32, #tpu.memory_space<vmem>>, vector<8x4xf32>
    %c145 = arith.constant 145 : index
    %c0_60 = arith.constant 0 : index
    %70 = tpu.strided_load %arg0[%c145, %c0_60] {strides = array<i32: 2, 1>} : memref<512x4xf32, #tpu.memory_space<vmem>>, vector<7x4xf32>
    %71 = vector.extract_strided_slice %0 {offsets = [0, 0], sizes = [1, 4], strides = [1, 1]} : vector<8x4xf32> to vector<1x4xf32>
    %72 = tpu.concatenate %71, %70 in 0 : vector<1x4xf32>, vector<7x4xf32> -> vector<8x4xf32>
    %c144 = arith.constant 144 : index
    %c0_61 = arith.constant 0 : index
    %73 = tpu.strided_load %arg0[%c144, %c0_61] {strides = array<i32: 2, 1>} : memref<512x4xf32, #tpu.memory_space<vmem>>, vector<8x4xf32>
    %c145_62 = arith.constant 145 : index
    %c0_63 = arith.constant 0 : index
    %74 = tpu.strided_load %arg0[%c145_62, %c0_63] {strides = array<i32: 2, 1>} : memref<512x4xf32, #tpu.memory_space<vmem>>, vector<8x4xf32>
    %75 = tpu.concatenate %62, %63, %64, %67, %68, %69, %72, %73, %74 in 1 : vector<8x4xf32>, vector<8x4xf32>, vector<8x4xf32>, vector<8x4xf32>, vector<8x4xf32>, vector<8x4xf32>, vector<8x4xf32>, vector<8x4xf32>, vector<8x4xf32> -> vector<8x36xf32>
    %c145_64 = arith.constant 145 : index
    %c0_65 = arith.constant 0 : index
    %76 = tpu.strided_load %arg0[%c145_64, %c0_65] {strides = array<i32: 2, 1>} : memref<512x4xf32, #tpu.memory_space<vmem>>, vector<7x4xf32>
    %77 = vector.extract_strided_slice %0 {offsets = [0, 0], sizes = [1, 4], strides = [1, 1]} : vector<8x4xf32> to vector<1x4xf32>
    %78 = tpu.concatenate %77, %76 in 0 : vector<1x4xf32>, vector<7x4xf32> -> vector<8x4xf32>
    %c144_66 = arith.constant 144 : index
    %c0_67 = arith.constant 0 : index
    %79 = tpu.strided_load %arg0[%c144_66, %c0_67] {strides = array<i32: 2, 1>} : memref<512x4xf32, #tpu.memory_space<vmem>>, vector<8x4xf32>
    %c145_68 = arith.constant 145 : index
    %c0_69 = arith.constant 0 : index
    %80 = tpu.strided_load %arg0[%c145_68, %c0_69] {strides = array<i32: 2, 1>} : memref<512x4xf32, #tpu.memory_space<vmem>>, vector<8x4xf32>
    %c161 = arith.constant 161 : index
    %c0_70 = arith.constant 0 : index
    %81 = tpu.strided_load %arg0[%c161, %c0_70] {strides = array<i32: 2, 1>} : memref<512x4xf32, #tpu.memory_space<vmem>>, vector<7x4xf32>
    %82 = vector.extract_strided_slice %0 {offsets = [0, 0], sizes = [1, 4], strides = [1, 1]} : vector<8x4xf32> to vector<1x4xf32>
    %83 = tpu.concatenate %82, %81 in 0 : vector<1x4xf32>, vector<7x4xf32> -> vector<8x4xf32>
    %c160 = arith.constant 160 : index
    %c0_71 = arith.constant 0 : index
    %84 = tpu.strided_load %arg0[%c160, %c0_71] {strides = array<i32: 2, 1>} : memref<512x4xf32, #tpu.memory_space<vmem>>, vector<8x4xf32>
    %c161_72 = arith.constant 161 : index
    %c0_73 = arith.constant 0 : index
    %85 = tpu.strided_load %arg0[%c161_72, %c0_73] {strides = array<i32: 2, 1>} : memref<512x4xf32, #tpu.memory_space<vmem>>, vector<8x4xf32>
    %c177 = arith.constant 177 : index
    %c0_74 = arith.constant 0 : index
    %86 = tpu.strided_load %arg0[%c177, %c0_74] {strides = array<i32: 2, 1>} : memref<512x4xf32, #tpu.memory_space<vmem>>, vector<7x4xf32>
    %87 = vector.extract_strided_slice %0 {offsets = [0, 0], sizes = [1, 4], strides = [1, 1]} : vector<8x4xf32> to vector<1x4xf32>
    %88 = tpu.concatenate %87, %86 in 0 : vector<1x4xf32>, vector<7x4xf32> -> vector<8x4xf32>
    %c176 = arith.constant 176 : index
    %c0_75 = arith.constant 0 : index
    %89 = tpu.strided_load %arg0[%c176, %c0_75] {strides = array<i32: 2, 1>} : memref<512x4xf32, #tpu.memory_space<vmem>>, vector<8x4xf32>
    %c177_76 = arith.constant 177 : index
    %c0_77 = arith.constant 0 : index
    %90 = tpu.strided_load %arg0[%c177_76, %c0_77] {strides = array<i32: 2, 1>} : memref<512x4xf32, #tpu.memory_space<vmem>>, vector<8x4xf32>
    %91 = tpu.concatenate %78, %79, %80, %83, %84, %85, %88, %89, %90 in 1 : vector<8x4xf32>, vector<8x4xf32>, vector<8x4xf32>, vector<8x4xf32>, vector<8x4xf32>, vector<8x4xf32>, vector<8x4xf32>, vector<8x4xf32>, vector<8x4xf32> -> vector<8x36xf32>
    %c177_78 = arith.constant 177 : index
    %c0_79 = arith.constant 0 : index
    %92 = tpu.strided_load %arg0[%c177_78, %c0_79] {strides = array<i32: 2, 1>} : memref<512x4xf32, #tpu.memory_space<vmem>>, vector<7x4xf32>
    %93 = vector.extract_strided_slice %0 {offsets = [0, 0], sizes = [1, 4], strides = [1, 1]} : vector<8x4xf32> to vector<1x4xf32>
    %94 = tpu.concatenate %93, %92 in 0 : vector<1x4xf32>, vector<7x4xf32> -> vector<8x4xf32>
    %c176_80 = arith.constant 176 : index
    %c0_81 = arith.constant 0 : index
    %95 = tpu.strided_load %arg0[%c176_80, %c0_81] {strides = array<i32: 2, 1>} : memref<512x4xf32, #tpu.memory_space<vmem>>, vector<8x4xf32>
    %c177_82 = arith.constant 177 : index
    %c0_83 = arith.constant 0 : index
    %96 = tpu.strided_load %arg0[%c177_82, %c0_83] {strides = array<i32: 2, 1>} : memref<512x4xf32, #tpu.memory_space<vmem>>, vector<8x4xf32>
    %c193 = arith.constant 193 : index
    %c0_84 = arith.constant 0 : index
    %97 = tpu.strided_load %arg0[%c193, %c0_84] {strides = array<i32: 2, 1>} : memref<512x4xf32, #tpu.memory_space<vmem>>, vector<7x4xf32>
    %98 = vector.extract_strided_slice %0 {offsets = [0, 0], sizes = [1, 4], strides = [1, 1]} : vector<8x4xf32> to vector<1x4xf32>
    %99 = tpu.concatenate %98, %97 in 0 : vector<1x4xf32>, vector<7x4xf32> -> vector<8x4xf32>
    %c192 = arith.constant 192 : index
    %c0_85 = arith.constant 0 : index
    %100 = tpu.strided_load %arg0[%c192, %c0_85] {strides = array<i32: 2, 1>} : memref<512x4xf32, #tpu.memory_space<vmem>>, vector<8x4xf32>
    %c193_86 = arith.constant 193 : index
    %c0_87 = arith.constant 0 : index
    %101 = tpu.strided_load %arg0[%c193_86, %c0_87] {strides = array<i32: 2, 1>} : memref<512x4xf32, #tpu.memory_space<vmem>>, vector<8x4xf32>
    %c209 = arith.constant 209 : index
    %c0_88 = arith.constant 0 : index
    %102 = tpu.strided_load %arg0[%c209, %c0_88] {strides = array<i32: 2, 1>} : memref<512x4xf32, #tpu.memory_space<vmem>>, vector<7x4xf32>
    %103 = vector.extract_strided_slice %0 {offsets = [0, 0], sizes = [1, 4], strides = [1, 1]} : vector<8x4xf32> to vector<1x4xf32>
    %104 = tpu.concatenate %103, %102 in 0 : vector<1x4xf32>, vector<7x4xf32> -> vector<8x4xf32>
    %c208 = arith.constant 208 : index
    %c0_89 = arith.constant 0 : index
    %105 = tpu.strided_load %arg0[%c208, %c0_89] {strides = array<i32: 2, 1>} : memref<512x4xf32, #tpu.memory_space<vmem>>, vector<8x4xf32>
    %c209_90 = arith.constant 209 : index
    %c0_91 = arith.constant 0 : index
    %106 = tpu.strided_load %arg0[%c209_90, %c0_91] {strides = array<i32: 2, 1>} : memref<512x4xf32, #tpu.memory_space<vmem>>, vector<8x4xf32>
    %107 = tpu.concatenate %94, %95, %96, %99, %100, %101, %104, %105, %106 in 1 : vector<8x4xf32>, vector<8x4xf32>, vector<8x4xf32>, vector<8x4xf32>, vector<8x4xf32>, vector<8x4xf32>, vector<8x4xf32>, vector<8x4xf32>, vector<8x4xf32> -> vector<8x36xf32>
    %c209_92 = arith.constant 209 : index
    %c0_93 = arith.constant 0 : index
    %108 = tpu.strided_load %arg0[%c209_92, %c0_93] {strides = array<i32: 2, 1>} : memref<512x4xf32, #tpu.memory_space<vmem>>, vector<7x4xf32>
    %109 = vector.extract_strided_slice %0 {offsets = [0, 0], sizes = [1, 4], strides = [1, 1]} : vector<8x4xf32> to vector<1x4xf32>
    %110 = tpu.concatenate %109, %108 in 0 : vector<1x4xf32>, vector<7x4xf32> -> vector<8x4xf32>
    %c208_94 = arith.constant 208 : index
    %c0_95 = arith.constant 0 : index
    %111 = tpu.strided_load %arg0[%c208_94, %c0_95] {strides = array<i32: 2, 1>} : memref<512x4xf32, #tpu.memory_space<vmem>>, vector<8x4xf32>
    %c209_96 = arith.constant 209 : index
    %c0_97 = arith.constant 0 : index
    %112 = tpu.strided_load %arg0[%c209_96, %c0_97] {strides = array<i32: 2, 1>} : memref<512x4xf32, #tpu.memory_space<vmem>>, vector<8x4xf32>
    %c225 = arith.constant 225 : index
    %c0_98 = arith.constant 0 : index
    %113 = tpu.strided_load %arg0[%c225, %c0_98] {strides = array<i32: 2, 1>} : memref<512x4xf32, #tpu.memory_space<vmem>>, vector<7x4xf32>
    %114 = vector.extract_strided_slice %0 {offsets = [0, 0], sizes = [1, 4], strides = [1, 1]} : vector<8x4xf32> to vector<1x4xf32>
    %115 = tpu.concatenate %114, %113 in 0 : vector<1x4xf32>, vector<7x4xf32> -> vector<8x4xf32>
    %c224 = arith.constant 224 : index
    %c0_99 = arith.constant 0 : index
    %116 = tpu.strided_load %arg0[%c224, %c0_99] {strides = array<i32: 2, 1>} : memref<512x4xf32, #tpu.memory_space<vmem>>, vector<8x4xf32>
    %c225_100 = arith.constant 225 : index
    %c0_101 = arith.constant 0 : index
    %117 = tpu.strided_load %arg0[%c225_100, %c0_101] {strides = array<i32: 2, 1>} : memref<512x4xf32, #tpu.memory_space<vmem>>, vector<8x4xf32>
    %c241 = arith.constant 241 : index
    %c0_102 = arith.constant 0 : index
    %118 = tpu.strided_load %arg0[%c241, %c0_102] {strides = array<i32: 2, 1>} : memref<512x4xf32, #tpu.memory_space<vmem>>, vector<7x4xf32>
    %119 = vector.extract_strided_slice %0 {offsets = [0, 0], sizes = [1, 4], strides = [1, 1]} : vector<8x4xf32> to vector<1x4xf32>
    %120 = tpu.concatenate %119, %118 in 0 : vector<1x4xf32>, vector<7x4xf32> -> vector<8x4xf32>
    %c240 = arith.constant 240 : index
    %c0_103 = arith.constant 0 : index
    %121 = tpu.strided_load %arg0[%c240, %c0_103] {strides = array<i32: 2, 1>} : memref<512x4xf32, #tpu.memory_space<vmem>>, vector<8x4xf32>
    %c241_104 = arith.constant 241 : index
    %c0_105 = arith.constant 0 : index
    %122 = tpu.strided_load %arg0[%c241_104, %c0_105] {strides = array<i32: 2, 1>} : memref<512x4xf32, #tpu.memory_space<vmem>>, vector<8x4xf32>
    %123 = tpu.concatenate %110, %111, %112, %115, %116, %117, %120, %121, %122 in 1 : vector<8x4xf32>, vector<8x4xf32>, vector<8x4xf32>, vector<8x4xf32>, vector<8x4xf32>, vector<8x4xf32>, vector<8x4xf32>, vector<8x4xf32>, vector<8x4xf32> -> vector<8x36xf32>
    %124 = tpu.concatenate %11, %27, %43, %59, %75, %91, %107, %123 in 0 : vector<8x36xf32>, vector<8x36xf32>, vector<8x36xf32>, vector<8x36xf32>, vector<8x36xf32>, vector<8x36xf32>, vector<8x36xf32>, vector<8x36xf32> -> vector<64x36xf32>
    %c257 = arith.constant 257 : index
    %c0_106 = arith.constant 0 : index
    %125 = tpu.strided_load %arg0[%c257, %c0_106] {strides = array<i32: 2, 1>} : memref<512x4xf32, #tpu.memory_space<vmem>>, vector<7x4xf32>
    %126 = vector.extract_strided_slice %0 {offsets = [0, 0], sizes = [1, 4], strides = [1, 1]} : vector<8x4xf32> to vector<1x4xf32>
    %127 = tpu.concatenate %126, %125 in 0 : vector<1x4xf32>, vector<7x4xf32> -> vector<8x4xf32>
    %c256 = arith.constant 256 : index
    %c0_107 = arith.constant 0 : index
    %128 = tpu.strided_load %arg0[%c256, %c0_107] {strides = array<i32: 2, 1>} : memref<512x4xf32, #tpu.memory_space<vmem>>, vector<8x4xf32>
    %c257_108 = arith.constant 257 : index
    %c0_109 = arith.constant 0 : index
    %129 = tpu.strided_load %arg0[%c257_108, %c0_109] {strides = array<i32: 2, 1>} : memref<512x4xf32, #tpu.memory_space<vmem>>, vector<8x4xf32>
    %c273 = arith.constant 273 : index
    %c0_110 = arith.constant 0 : index
    %130 = tpu.strided_load %arg0[%c273, %c0_110] {strides = array<i32: 2, 1>} : memref<512x4xf32, #tpu.memory_space<vmem>>, vector<7x4xf32>
    %131 = vector.extract_strided_slice %0 {offsets = [0, 0], sizes = [1, 4], strides = [1, 1]} : vector<8x4xf32> to vector<1x4xf32>
    %132 = tpu.concatenate %131, %130 in 0 : vector<1x4xf32>, vector<7x4xf32> -> vector<8x4xf32>
    %c272 = arith.constant 272 : index
    %c0_111 = arith.constant 0 : index
    %133 = tpu.strided_load %arg0[%c272, %c0_111] {strides = array<i32: 2, 1>} : memref<512x4xf32, #tpu.memory_space<vmem>>, vector<8x4xf32>
    %c273_112 = arith.constant 273 : index
    %c0_113 = arith.constant 0 : index
    %134 = tpu.strided_load %arg0[%c273_112, %c0_113] {strides = array<i32: 2, 1>} : memref<512x4xf32, #tpu.memory_space<vmem>>, vector<8x4xf32>
    %135 = tpu.concatenate %0, %0, %0, %127, %128, %129, %132, %133, %134 in 1 : vector<8x4xf32>, vector<8x4xf32>, vector<8x4xf32>, vector<8x4xf32>, vector<8x4xf32>, vector<8x4xf32>, vector<8x4xf32>, vector<8x4xf32>, vector<8x4xf32> -> vector<8x36xf32>
    %c273_114 = arith.constant 273 : index
    %c0_115 = arith.constant 0 : index
    %136 = tpu.strided_load %arg0[%c273_114, %c0_115] {strides = array<i32: 2, 1>} : memref<512x4xf32, #tpu.memory_space<vmem>>, vector<7x4xf32>
    %137 = vector.extract_strided_slice %0 {offsets = [0, 0], sizes = [1, 4], strides = [1, 1]} : vector<8x4xf32> to vector<1x4xf32>
    %138 = tpu.concatenate %137, %136 in 0 : vector<1x4xf32>, vector<7x4xf32> -> vector<8x4xf32>
    %c272_116 = arith.constant 272 : index
    %c0_117 = arith.constant 0 : index
    %139 = tpu.strided_load %arg0[%c272_116, %c0_117] {strides = array<i32: 2, 1>} : memref<512x4xf32, #tpu.memory_space<vmem>>, vector<8x4xf32>
    %c273_118 = arith.constant 273 : index
    %c0_119 = arith.constant 0 : index
    %140 = tpu.strided_load %arg0[%c273_118, %c0_119] {strides = array<i32: 2, 1>} : memref<512x4xf32, #tpu.memory_space<vmem>>, vector<8x4xf32>
    %c289 = arith.constant 289 : index
    %c0_120 = arith.constant 0 : index
    %141 = tpu.strided_load %arg0[%c289, %c0_120] {strides = array<i32: 2, 1>} : memref<512x4xf32, #tpu.memory_space<vmem>>, vector<7x4xf32>
    %142 = vector.extract_strided_slice %0 {offsets = [0, 0], sizes = [1, 4], strides = [1, 1]} : vector<8x4xf32> to vector<1x4xf32>
    %143 = tpu.concatenate %142, %141 in 0 : vector<1x4xf32>, vector<7x4xf32> -> vector<8x4xf32>
    %c288 = arith.constant 288 : index
    %c0_121 = arith.constant 0 : index
    %144 = tpu.strided_load %arg0[%c288, %c0_121] {strides = array<i32: 2, 1>} : memref<512x4xf32, #tpu.memory_space<vmem>>, vector<8x4xf32>
    %c289_122 = arith.constant 289 : index
    %c0_123 = arith.constant 0 : index
    %145 = tpu.strided_load %arg0[%c289_122, %c0_123] {strides = array<i32: 2, 1>} : memref<512x4xf32, #tpu.memory_space<vmem>>, vector<8x4xf32>
    %c305 = arith.constant 305 : index
    %c0_124 = arith.constant 0 : index
    %146 = tpu.strided_load %arg0[%c305, %c0_124] {strides = array<i32: 2, 1>} : memref<512x4xf32, #tpu.memory_space<vmem>>, vector<7x4xf32>
    %147 = vector.extract_strided_slice %0 {offsets = [0, 0], sizes = [1, 4], strides = [1, 1]} : vector<8x4xf32> to vector<1x4xf32>
    %148 = tpu.concatenate %147, %146 in 0 : vector<1x4xf32>, vector<7x4xf32> -> vector<8x4xf32>
    %c304 = arith.constant 304 : index
    %c0_125 = arith.constant 0 : index
    %149 = tpu.strided_load %arg0[%c304, %c0_125] {strides = array<i32: 2, 1>} : memref<512x4xf32, #tpu.memory_space<vmem>>, vector<8x4xf32>
    %c305_126 = arith.constant 305 : index
    %c0_127 = arith.constant 0 : index
    %150 = tpu.strided_load %arg0[%c305_126, %c0_127] {strides = array<i32: 2, 1>} : memref<512x4xf32, #tpu.memory_space<vmem>>, vector<8x4xf32>
    %151 = tpu.concatenate %138, %139, %140, %143, %144, %145, %148, %149, %150 in 1 : vector<8x4xf32>, vector<8x4xf32>, vector<8x4xf32>, vector<8x4xf32>, vector<8x4xf32>, vector<8x4xf32>, vector<8x4xf32>, vector<8x4xf32>, vector<8x4xf32> -> vector<8x36xf32>
    %c305_128 = arith.constant 305 : index
    %c0_129 = arith.constant 0 : index
    %152 = tpu.strided_load %arg0[%c305_128, %c0_129] {strides = array<i32: 2, 1>} : memref<512x4xf32, #tpu.memory_space<vmem>>, vector<7x4xf32>
    %153 = vector.extract_strided_slice %0 {offsets = [0, 0], sizes = [1, 4], strides = [1, 1]} : vector<8x4xf32> to vector<1x4xf32>
    %154 = tpu.concatenate %153, %152 in 0 : vector<1x4xf32>, vector<7x4xf32> -> vector<8x4xf32>
    %c304_130 = arith.constant 304 : index
    %c0_131 = arith.constant 0 : index
    %155 = tpu.strided_load %arg0[%c304_130, %c0_131] {strides = array<i32: 2, 1>} : memref<512x4xf32, #tpu.memory_space<vmem>>, vector<8x4xf32>
    %c305_132 = arith.constant 305 : index
    %c0_133 = arith.constant 0 : index
    %156 = tpu.strided_load %arg0[%c305_132, %c0_133] {strides = array<i32: 2, 1>} : memref<512x4xf32, #tpu.memory_space<vmem>>, vector<8x4xf32>
    %c321 = arith.constant 321 : index
    %c0_134 = arith.constant 0 : index
    %157 = tpu.strided_load %arg0[%c321, %c0_134] {strides = array<i32: 2, 1>} : memref<512x4xf32, #tpu.memory_space<vmem>>, vector<7x4xf32>
    %158 = vector.extract_strided_slice %0 {offsets = [0, 0], sizes = [1, 4], strides = [1, 1]} : vector<8x4xf32> to vector<1x4xf32>
    %159 = tpu.concatenate %158, %157 in 0 : vector<1x4xf32>, vector<7x4xf32> -> vector<8x4xf32>
    %c320 = arith.constant 320 : index
    %c0_135 = arith.constant 0 : index
    %160 = tpu.strided_load %arg0[%c320, %c0_135] {strides = array<i32: 2, 1>} : memref<512x4xf32, #tpu.memory_space<vmem>>, vector<8x4xf32>
    %c321_136 = arith.constant 321 : index
    %c0_137 = arith.constant 0 : index
    %161 = tpu.strided_load %arg0[%c321_136, %c0_137] {strides = array<i32: 2, 1>} : memref<512x4xf32, #tpu.memory_space<vmem>>, vector<8x4xf32>
    %c337 = arith.constant 337 : index
    %c0_138 = arith.constant 0 : index
    %162 = tpu.strided_load %arg0[%c337, %c0_138] {strides = array<i32: 2, 1>} : memref<512x4xf32, #tpu.memory_space<vmem>>, vector<7x4xf32>
    %163 = vector.extract_strided_slice %0 {offsets = [0, 0], sizes = [1, 4], strides = [1, 1]} : vector<8x4xf32> to vector<1x4xf32>
    %164 = tpu.concatenate %163, %162 in 0 : vector<1x4xf32>, vector<7x4xf32> -> vector<8x4xf32>
    %c336 = arith.constant 336 : index
    %c0_139 = arith.constant 0 : index
    %165 = tpu.strided_load %arg0[%c336, %c0_139] {strides = array<i32: 2, 1>} : memref<512x4xf32, #tpu.memory_space<vmem>>, vector<8x4xf32>
    %c337_140 = arith.constant 337 : index
    %c0_141 = arith.constant 0 : index
    %166 = tpu.strided_load %arg0[%c337_140, %c0_141] {strides = array<i32: 2, 1>} : memref<512x4xf32, #tpu.memory_space<vmem>>, vector<8x4xf32>
    %167 = tpu.concatenate %154, %155, %156, %159, %160, %161, %164, %165, %166 in 1 : vector<8x4xf32>, vector<8x4xf32>, vector<8x4xf32>, vector<8x4xf32>, vector<8x4xf32>, vector<8x4xf32>, vector<8x4xf32>, vector<8x4xf32>, vector<8x4xf32> -> vector<8x36xf32>
    %c337_142 = arith.constant 337 : index
    %c0_143 = arith.constant 0 : index
    %168 = tpu.strided_load %arg0[%c337_142, %c0_143] {strides = array<i32: 2, 1>} : memref<512x4xf32, #tpu.memory_space<vmem>>, vector<7x4xf32>
    %169 = vector.extract_strided_slice %0 {offsets = [0, 0], sizes = [1, 4], strides = [1, 1]} : vector<8x4xf32> to vector<1x4xf32>
    %170 = tpu.concatenate %169, %168 in 0 : vector<1x4xf32>, vector<7x4xf32> -> vector<8x4xf32>
    %c336_144 = arith.constant 336 : index
    %c0_145 = arith.constant 0 : index
    %171 = tpu.strided_load %arg0[%c336_144, %c0_145] {strides = array<i32: 2, 1>} : memref<512x4xf32, #tpu.memory_space<vmem>>, vector<8x4xf32>
    %c337_146 = arith.constant 337 : index
    %c0_147 = arith.constant 0 : index
    %172 = tpu.strided_load %arg0[%c337_146, %c0_147] {strides = array<i32: 2, 1>} : memref<512x4xf32, #tpu.memory_space<vmem>>, vector<8x4xf32>
    %c353 = arith.constant 353 : index
    %c0_148 = arith.constant 0 : index
    %173 = tpu.strided_load %arg0[%c353, %c0_148] {strides = array<i32: 2, 1>} : memref<512x4xf32, #tpu.memory_space<vmem>>, vector<7x4xf32>
    %174 = vector.extract_strided_slice %0 {offsets = [0, 0], sizes = [1, 4], strides = [1, 1]} : vector<8x4xf32> to vector<1x4xf32>
    %175 = tpu.concatenate %174, %173 in 0 : vector<1x4xf32>, vector<7x4xf32> -> vector<8x4xf32>
    %c352 = arith.constant 352 : index
    %c0_149 = arith.constant 0 : index
    %176 = tpu.strided_load %arg0[%c352, %c0_149] {strides = array<i32: 2, 1>} : memref<512x4xf32, #tpu.memory_space<vmem>>, vector<8x4xf32>
    %c353_150 = arith.constant 353 : index
    %c0_151 = arith.constant 0 : index
    %177 = tpu.strided_load %arg0[%c353_150, %c0_151] {strides = array<i32: 2, 1>} : memref<512x4xf32, #tpu.memory_space<vmem>>, vector<8x4xf32>
    %c369 = arith.constant 369 : index
    %c0_152 = arith.constant 0 : index
    %178 = tpu.strided_load %arg0[%c369, %c0_152] {strides = array<i32: 2, 1>} : memref<512x4xf32, #tpu.memory_space<vmem>>, vector<7x4xf32>
    %179 = vector.extract_strided_slice %0 {offsets = [0, 0], sizes = [1, 4], strides = [1, 1]} : vector<8x4xf32> to vector<1x4xf32>
    %180 = tpu.concatenate %179, %178 in 0 : vector<1x4xf32>, vector<7x4xf32> -> vector<8x4xf32>
    %c368 = arith.constant 368 : index
    %c0_153 = arith.constant 0 : index
    %181 = tpu.strided_load %arg0[%c368, %c0_153] {strides = array<i32: 2, 1>} : memref<512x4xf32, #tpu.memory_space<vmem>>, vector<8x4xf32>
    %c369_154 = arith.constant 369 : index
    %c0_155 = arith.constant 0 : index
    %182 = tpu.strided_load %arg0[%c369_154, %c0_155] {strides = array<i32: 2, 1>} : memref<512x4xf32, #tpu.memory_space<vmem>>, vector<8x4xf32>
    %183 = tpu.concatenate %170, %171, %172, %175, %176, %177, %180, %181, %182 in 1 : vector<8x4xf32>, vector<8x4xf32>, vector<8x4xf32>, vector<8x4xf32>, vector<8x4xf32>, vector<8x4xf32>, vector<8x4xf32>, vector<8x4xf32>, vector<8x4xf32> -> vector<8x36xf32>
    %c369_156 = arith.constant 369 : index
    %c0_157 = arith.constant 0 : index
    %184 = tpu.strided_load %arg0[%c369_156, %c0_157] {strides = array<i32: 2, 1>} : memref<512x4xf32, #tpu.memory_space<vmem>>, vector<7x4xf32>
    %185 = vector.extract_strided_slice %0 {offsets = [0, 0], sizes = [1, 4], strides = [1, 1]} : vector<8x4xf32> to vector<1x4xf32>
    %186 = tpu.concatenate %185, %184 in 0 : vector<1x4xf32>, vector<7x4xf32> -> vector<8x4xf32>
    %c368_158 = arith.constant 368 : index
    %c0_159 = arith.constant 0 : index
    %187 = tpu.strided_load %arg0[%c368_158, %c0_159] {strides = array<i32: 2, 1>} : memref<512x4xf32, #tpu.memory_space<vmem>>, vector<8x4xf32>
    %c369_160 = arith.constant 369 : index
    %c0_161 = arith.constant 0 : index
    %188 = tpu.strided_load %arg0[%c369_160, %c0_161] {strides = array<i32: 2, 1>} : memref<512x4xf32, #tpu.memory_space<vmem>>, vector<8x4xf32>
    %c385 = arith.constant 385 : index
    %c0_162 = arith.constant 0 : index
    %189 = tpu.strided_load %arg0[%c385, %c0_162] {strides = array<i32: 2, 1>} : memref<512x4xf32, #tpu.memory_space<vmem>>, vector<7x4xf32>
    %190 = vector.extract_strided_slice %0 {offsets = [0, 0], sizes = [1, 4], strides = [1, 1]} : vector<8x4xf32> to vector<1x4xf32>
    %191 = tpu.concatenate %190, %189 in 0 : vector<1x4xf32>, vector<7x4xf32> -> vector<8x4xf32>
    %c384 = arith.constant 384 : index
    %c0_163 = arith.constant 0 : index
    %192 = tpu.strided_load %arg0[%c384, %c0_163] {strides = array<i32: 2, 1>} : memref<512x4xf32, #tpu.memory_space<vmem>>, vector<8x4xf32>
    %c385_164 = arith.constant 385 : index
    %c0_165 = arith.constant 0 : index
    %193 = tpu.strided_load %arg0[%c385_164, %c0_165] {strides = array<i32: 2, 1>} : memref<512x4xf32, #tpu.memory_space<vmem>>, vector<8x4xf32>
    %c401 = arith.constant 401 : index
    %c0_166 = arith.constant 0 : index
    %194 = tpu.strided_load %arg0[%c401, %c0_166] {strides = array<i32: 2, 1>} : memref<512x4xf32, #tpu.memory_space<vmem>>, vector<7x4xf32>
    %195 = vector.extract_strided_slice %0 {offsets = [0, 0], sizes = [1, 4], strides = [1, 1]} : vector<8x4xf32> to vector<1x4xf32>
    %196 = tpu.concatenate %195, %194 in 0 : vector<1x4xf32>, vector<7x4xf32> -> vector<8x4xf32>
    %c400 = arith.constant 400 : index
    %c0_167 = arith.constant 0 : index
    %197 = tpu.strided_load %arg0[%c400, %c0_167] {strides = array<i32: 2, 1>} : memref<512x4xf32, #tpu.memory_space<vmem>>, vector<8x4xf32>
    %c401_168 = arith.constant 401 : index
    %c0_169 = arith.constant 0 : index
    %198 = tpu.strided_load %arg0[%c401_168, %c0_169] {strides = array<i32: 2, 1>} : memref<512x4xf32, #tpu.memory_space<vmem>>, vector<8x4xf32>
    %199 = tpu.concatenate %186, %187, %188, %191, %192, %193, %196, %197, %198 in 1 : vector<8x4xf32>, vector<8x4xf32>, vector<8x4xf32>, vector<8x4xf32>, vector<8x4xf32>, vector<8x4xf32>, vector<8x4xf32>, vector<8x4xf32>, vector<8x4xf32> -> vector<8x36xf32>
    %c401_170 = arith.constant 401 : index
    %c0_171 = arith.constant 0 : index
    %200 = tpu.strided_load %arg0[%c401_170, %c0_171] {strides = array<i32: 2, 1>} : memref<512x4xf32, #tpu.memory_space<vmem>>, vector<7x4xf32>
    %201 = vector.extract_strided_slice %0 {offsets = [0, 0], sizes = [1, 4], strides = [1, 1]} : vector<8x4xf32> to vector<1x4xf32>
    %202 = tpu.concatenate %201, %200 in 0 : vector<1x4xf32>, vector<7x4xf32> -> vector<8x4xf32>
    %c400_172 = arith.constant 400 : index
    %c0_173 = arith.constant 0 : index
    %203 = tpu.strided_load %arg0[%c400_172, %c0_173] {strides = array<i32: 2, 1>} : memref<512x4xf32, #tpu.memory_space<vmem>>, vector<8x4xf32>
    %c401_174 = arith.constant 401 : index
    %c0_175 = arith.constant 0 : index
    %204 = tpu.strided_load %arg0[%c401_174, %c0_175] {strides = array<i32: 2, 1>} : memref<512x4xf32, #tpu.memory_space<vmem>>, vector<8x4xf32>
    %c417 = arith.constant 417 : index
    %c0_176 = arith.constant 0 : index
    %205 = tpu.strided_load %arg0[%c417, %c0_176] {strides = array<i32: 2, 1>} : memref<512x4xf32, #tpu.memory_space<vmem>>, vector<7x4xf32>
    %206 = vector.extract_strided_slice %0 {offsets = [0, 0], sizes = [1, 4], strides = [1, 1]} : vector<8x4xf32> to vector<1x4xf32>
    %207 = tpu.concatenate %206, %205 in 0 : vector<1x4xf32>, vector<7x4xf32> -> vector<8x4xf32>
    %c416 = arith.constant 416 : index
    %c0_177 = arith.constant 0 : index
    %208 = tpu.strided_load %arg0[%c416, %c0_177] {strides = array<i32: 2, 1>} : memref<512x4xf32, #tpu.memory_space<vmem>>, vector<8x4xf32>
    %c417_178 = arith.constant 417 : index
    %c0_179 = arith.constant 0 : index
    %209 = tpu.strided_load %arg0[%c417_178, %c0_179] {strides = array<i32: 2, 1>} : memref<512x4xf32, #tpu.memory_space<vmem>>, vector<8x4xf32>
    %c433 = arith.constant 433 : index
    %c0_180 = arith.constant 0 : index
    %210 = tpu.strided_load %arg0[%c433, %c0_180] {strides = array<i32: 2, 1>} : memref<512x4xf32, #tpu.memory_space<vmem>>, vector<7x4xf32>
    %211 = vector.extract_strided_slice %0 {offsets = [0, 0], sizes = [1, 4], strides = [1, 1]} : vector<8x4xf32> to vector<1x4xf32>
    %212 = tpu.concatenate %211, %210 in 0 : vector<1x4xf32>, vector<7x4xf32> -> vector<8x4xf32>
    %c432 = arith.constant 432 : index
    %c0_181 = arith.constant 0 : index
    %213 = tpu.strided_load %arg0[%c432, %c0_181] {strides = array<i32: 2, 1>} : memref<512x4xf32, #tpu.memory_space<vmem>>, vector<8x4xf32>
    %c433_182 = arith.constant 433 : index
    %c0_183 = arith.constant 0 : index
    %214 = tpu.strided_load %arg0[%c433_182, %c0_183] {strides = array<i32: 2, 1>} : memref<512x4xf32, #tpu.memory_space<vmem>>, vector<8x4xf32>
    %215 = tpu.concatenate %202, %203, %204, %207, %208, %209, %212, %213, %214 in 1 : vector<8x4xf32>, vector<8x4xf32>, vector<8x4xf32>, vector<8x4xf32>, vector<8x4xf32>, vector<8x4xf32>, vector<8x4xf32>, vector<8x4xf32>, vector<8x4xf32> -> vector<8x36xf32>
    %c433_184 = arith.constant 433 : index
    %c0_185 = arith.constant 0 : index
    %216 = tpu.strided_load %arg0[%c433_184, %c0_185] {strides = array<i32: 2, 1>} : memref<512x4xf32, #tpu.memory_space<vmem>>, vector<7x4xf32>
    %217 = vector.extract_strided_slice %0 {offsets = [0, 0], sizes = [1, 4], strides = [1, 1]} : vector<8x4xf32> to vector<1x4xf32>
    %218 = tpu.concatenate %217, %216 in 0 : vector<1x4xf32>, vector<7x4xf32> -> vector<8x4xf32>
    %c432_186 = arith.constant 432 : index
    %c0_187 = arith.constant 0 : index
    %219 = tpu.strided_load %arg0[%c432_186, %c0_187] {strides = array<i32: 2, 1>} : memref<512x4xf32, #tpu.memory_space<vmem>>, vector<8x4xf32>
    %c433_188 = arith.constant 433 : index
    %c0_189 = arith.constant 0 : index
    %220 = tpu.strided_load %arg0[%c433_188, %c0_189] {strides = array<i32: 2, 1>} : memref<512x4xf32, #tpu.memory_space<vmem>>, vector<8x4xf32>
    %c449 = arith.constant 449 : index
    %c0_190 = arith.constant 0 : index
    %221 = tpu.strided_load %arg0[%c449, %c0_190] {strides = array<i32: 2, 1>} : memref<512x4xf32, #tpu.memory_space<vmem>>, vector<7x4xf32>
    %222 = vector.extract_strided_slice %0 {offsets = [0, 0], sizes = [1, 4], strides = [1, 1]} : vector<8x4xf32> to vector<1x4xf32>
    %223 = tpu.concatenate %222, %221 in 0 : vector<1x4xf32>, vector<7x4xf32> -> vector<8x4xf32>
    %c448 = arith.constant 448 : index
    %c0_191 = arith.constant 0 : index
    %224 = tpu.strided_load %arg0[%c448, %c0_191] {strides = array<i32: 2, 1>} : memref<512x4xf32, #tpu.memory_space<vmem>>, vector<8x4xf32>
    %c449_192 = arith.constant 449 : index
    %c0_193 = arith.constant 0 : index
    %225 = tpu.strided_load %arg0[%c449_192, %c0_193] {strides = array<i32: 2, 1>} : memref<512x4xf32, #tpu.memory_space<vmem>>, vector<8x4xf32>
    %c465 = arith.constant 465 : index
    %c0_194 = arith.constant 0 : index
    %226 = tpu.strided_load %arg0[%c465, %c0_194] {strides = array<i32: 2, 1>} : memref<512x4xf32, #tpu.memory_space<vmem>>, vector<7x4xf32>
    %227 = vector.extract_strided_slice %0 {offsets = [0, 0], sizes = [1, 4], strides = [1, 1]} : vector<8x4xf32> to vector<1x4xf32>
    %228 = tpu.concatenate %227, %226 in 0 : vector<1x4xf32>, vector<7x4xf32> -> vector<8x4xf32>
    %c464 = arith.constant 464 : index
    %c0_195 = arith.constant 0 : index
    %229 = tpu.strided_load %arg0[%c464, %c0_195] {strides = array<i32: 2, 1>} : memref<512x4xf32, #tpu.memory_space<vmem>>, vector<8x4xf32>
    %c465_196 = arith.constant 465 : index
    %c0_197 = arith.constant 0 : index
    %230 = tpu.strided_load %arg0[%c465_196, %c0_197] {strides = array<i32: 2, 1>} : memref<512x4xf32, #tpu.memory_space<vmem>>, vector<8x4xf32>
    %231 = tpu.concatenate %218, %219, %220, %223, %224, %225, %228, %229, %230 in 1 : vector<8x4xf32>, vector<8x4xf32>, vector<8x4xf32>, vector<8x4xf32>, vector<8x4xf32>, vector<8x4xf32>, vector<8x4xf32>, vector<8x4xf32>, vector<8x4xf32> -> vector<8x36xf32>
    %c465_198 = arith.constant 465 : index
    %c0_199 = arith.constant 0 : index
    %232 = tpu.strided_load %arg0[%c465_198, %c0_199] {strides = array<i32: 2, 1>} : memref<512x4xf32, #tpu.memory_space<vmem>>, vector<7x4xf32>
    %233 = vector.extract_strided_slice %0 {offsets = [0, 0], sizes = [1, 4], strides = [1, 1]} : vector<8x4xf32> to vector<1x4xf32>
    %234 = tpu.concatenate %233, %232 in 0 : vector<1x4xf32>, vector<7x4xf32> -> vector<8x4xf32>
    %c464_200 = arith.constant 464 : index
    %c0_201 = arith.constant 0 : index
    %235 = tpu.strided_load %arg0[%c464_200, %c0_201] {strides = array<i32: 2, 1>} : memref<512x4xf32, #tpu.memory_space<vmem>>, vector<8x4xf32>
    %c465_202 = arith.constant 465 : index
    %c0_203 = arith.constant 0 : index
    %236 = tpu.strided_load %arg0[%c465_202, %c0_203] {strides = array<i32: 2, 1>} : memref<512x4xf32, #tpu.memory_space<vmem>>, vector<8x4xf32>
    %c481 = arith.constant 481 : index
    %c0_204 = arith.constant 0 : index
    %237 = tpu.strided_load %arg0[%c481, %c0_204] {strides = array<i32: 2, 1>} : memref<512x4xf32, #tpu.memory_space<vmem>>, vector<7x4xf32>
    %238 = vector.extract_strided_slice %0 {offsets = [0, 0], sizes = [1, 4], strides = [1, 1]} : vector<8x4xf32> to vector<1x4xf32>
    %239 = tpu.concatenate %238, %237 in 0 : vector<1x4xf32>, vector<7x4xf32> -> vector<8x4xf32>
    %c480 = arith.constant 480 : index
    %c0_205 = arith.constant 0 : index
    %240 = tpu.strided_load %arg0[%c480, %c0_205] {strides = array<i32: 2, 1>} : memref<512x4xf32, #tpu.memory_space<vmem>>, vector<8x4xf32>
    %c481_206 = arith.constant 481 : index
    %c0_207 = arith.constant 0 : index
    %241 = tpu.strided_load %arg0[%c481_206, %c0_207] {strides = array<i32: 2, 1>} : memref<512x4xf32, #tpu.memory_space<vmem>>, vector<8x4xf32>
    %c497 = arith.constant 497 : index
    %c0_208 = arith.constant 0 : index
    %242 = tpu.strided_load %arg0[%c497, %c0_208] {strides = array<i32: 2, 1>} : memref<512x4xf32, #tpu.memory_space<vmem>>, vector<7x4xf32>
    %243 = vector.extract_strided_slice %0 {offsets = [0, 0], sizes = [1, 4], strides = [1, 1]} : vector<8x4xf32> to vector<1x4xf32>
    %244 = tpu.concatenate %243, %242 in 0 : vector<1x4xf32>, vector<7x4xf32> -> vector<8x4xf32>
    %c496 = arith.constant 496 : index
    %c0_209 = arith.constant 0 : index
    %245 = tpu.strided_load %arg0[%c496, %c0_209] {strides = array<i32: 2, 1>} : memref<512x4xf32, #tpu.memory_space<vmem>>, vector<8x4xf32>
    %c497_210 = arith.constant 497 : index
    %c0_211 = arith.constant 0 : index
    %246 = tpu.strided_load %arg0[%c497_210, %c0_211] {strides = array<i32: 2, 1>} : memref<512x4xf32, #tpu.memory_space<vmem>>, vector<8x4xf32>
    %247 = tpu.concatenate %234, %235, %236, %239, %240, %241, %244, %245, %246 in 1 : vector<8x4xf32>, vector<8x4xf32>, vector<8x4xf32>, vector<8x4xf32>, vector<8x4xf32>, vector<8x4xf32>, vector<8x4xf32>, vector<8x4xf32>, vector<8x4xf32> -> vector<8x36xf32>
    %248 = tpu.concatenate %135, %151, %167, %183, %199, %215, %231, %247 in 0 : vector<8x36xf32>, vector<8x36xf32>, vector<8x36xf32>, vector<8x36xf32>, vector<8x36xf32>, vector<8x36xf32>, vector<8x36xf32>, vector<8x36xf32> -> vector<64x36xf32>
    %249 = tpu.concatenate %124, %248 in 0 : vector<64x36xf32>, vector<64x36xf32> -> vector<128x36xf32>
    %c0_212 = arith.constant 0 : index
    %c0_213 = arith.constant 0 : index
    %250 = vector.load %arg1[%c0_212, %c0_213] : memref<144x66xf32, #tpu.memory_space<vmem>>, vector<36x8xf32>
    %c0_214 = arith.constant 0 : index
    %c0_215 = arith.constant 0 : index
    %251 = vector.load %arg2[%c0_214, %c0_215] : memref<1x66xf32, #tpu.memory_space<vmem>>, vector<1x8xf32>
    %cst_216 = arith.constant dense<0.000000e+00> : vector<128x8xf32>
    %252 = tpu.matmul %249, %250, %cst_216 {dimension_numbers = #tpu.dot_dimension_numbers<[1], [0], [0], [1], [0, 0, 1, 1], [], []>} : vector<128x36xf32>, vector<36x8xf32>, vector<128x8xf32> -> vector<128x8xf32>
    %253 = vector.broadcast %251 : vector<1x8xf32> to vector<128x8xf32>
    %254 = arith.addf %252, %253 : vector<128x8xf32>
    %cst_217 = arith.constant 0.000000e+00 : f32
    %255 = vector.broadcast %cst_217 : f32 to vector<128x8xf32>
    %256 = arith.maximumf %254, %255 : vector<128x8xf32>
    %c0_218 = arith.constant 0 : index
    %c0_219 = arith.constant 0 : index
    %257 = vector.load %arg4[%c0_218, %c0_219] : memref<128x8xf32, #tpu.memory_space<vmem>>, vector<128x8xf32>
    tpu.vector_store %arg4[%c0_218, %c0_219], %256 {strides = array<i32>} : memref<128x8xf32, #tpu.memory_space<vmem>>, vector<128x8xf32>,
    %cst_220 = arith.constant 0.000000e+00 : f32
    %258 = vector.broadcast %cst_220 : f32 to vector<4x8xf32>
    %c1_221 = arith.constant 1 : index
    %c0_222 = arith.constant 0 : index
    %259 = tpu.strided_load %arg4[%c1_221, %c0_222] {strides = array<i32: 2, 1>} : memref<128x8xf32, #tpu.memory_space<vmem>>, vector<3x8xf32>
    %260 = vector.extract_strided_slice %258 {offsets = [0, 0], sizes = [1, 8], strides = [1, 1]} : vector<4x8xf32> to vector<1x8xf32>
    %261 = tpu.concatenate %260, %259 in 0 : vector<1x8xf32>, vector<3x8xf32> -> vector<4x8xf32>
    %c0_223 = arith.constant 0 : index
    %c0_224 = arith.constant 0 : index
    %262 = tpu.strided_load %arg4[%c0_223, %c0_224] {strides = array<i32: 2, 1>} : memref<128x8xf32, #tpu.memory_space<vmem>>, vector<4x8xf32>
    %c1_225 = arith.constant 1 : index
    %c0_226 = arith.constant 0 : index
    %263 = tpu.strided_load %arg4[%c1_225, %c0_226] {strides = array<i32: 2, 1>} : memref<128x8xf32, #tpu.memory_space<vmem>>, vector<4x8xf32>
    %c9 = arith.constant 9 : index
    %c0_227 = arith.constant 0 : index
    %264 = tpu.strided_load %arg4[%c9, %c0_227] {strides = array<i32: 2, 1>} : memref<128x8xf32, #tpu.memory_space<vmem>>, vector<3x8xf32>
    %265 = vector.extract_strided_slice %258 {offsets = [0, 0], sizes = [1, 8], strides = [1, 1]} : vector<4x8xf32> to vector<1x8xf32>
    %266 = tpu.concatenate %265, %264 in 0 : vector<1x8xf32>, vector<3x8xf32> -> vector<4x8xf32>
    %c8 = arith.constant 8 : index
    %c0_228 = arith.constant 0 : index
    %267 = tpu.strided_load %arg4[%c8, %c0_228] {strides = array<i32: 2, 1>} : memref<128x8xf32, #tpu.memory_space<vmem>>, vector<4x8xf32>
    %c9_229 = arith.constant 9 : index
    %c0_230 = arith.constant 0 : index
    %268 = tpu.strided_load %arg4[%c9_229, %c0_230] {strides = array<i32: 2, 1>} : memref<128x8xf32, #tpu.memory_space<vmem>>, vector<4x8xf32>
    %269 = tpu.concatenate %258, %258, %258, %261, %262, %263, %266, %267, %268 in 1 : vector<4x8xf32>, vector<4x8xf32>, vector<4x8xf32>, vector<4x8xf32>, vector<4x8xf32>, vector<4x8xf32>, vector<4x8xf32>, vector<4x8xf32>, vector<4x8xf32> -> vector<4x72xf32>
    %c9_231 = arith.constant 9 : index
    %c0_232 = arith.constant 0 : index
    %270 = tpu.strided_load %arg4[%c9_231, %c0_232] {strides = array<i32: 2, 1>} : memref<128x8xf32, #tpu.memory_space<vmem>>, vector<3x8xf32>
    %271 = vector.extract_strided_slice %258 {offsets = [0, 0], sizes = [1, 8], strides = [1, 1]} : vector<4x8xf32> to vector<1x8xf32>
    %272 = tpu.concatenate %271, %270 in 0 : vector<1x8xf32>, vector<3x8xf32> -> vector<4x8xf32>
    %c8_233 = arith.constant 8 : index
    %c0_234 = arith.constant 0 : index
    %273 = tpu.strided_load %arg4[%c8_233, %c0_234] {strides = array<i32: 2, 1>} : memref<128x8xf32, #tpu.memory_space<vmem>>, vector<4x8xf32>
    %c9_235 = arith.constant 9 : index
    %c0_236 = arith.constant 0 : index
    %274 = tpu.strided_load %arg4[%c9_235, %c0_236] {strides = array<i32: 2, 1>} : memref<128x8xf32, #tpu.memory_space<vmem>>, vector<4x8xf32>
    %c17_237 = arith.constant 17 : index
    %c0_238 = arith.constant 0 : index
    %275 = tpu.strided_load %arg4[%c17_237, %c0_238] {strides = array<i32: 2, 1>} : memref<128x8xf32, #tpu.memory_space<vmem>>, vector<3x8xf32>
    %276 = vector.extract_strided_slice %258 {offsets = [0, 0], sizes = [1, 8], strides = [1, 1]} : vector<4x8xf32> to vector<1x8xf32>
    %277 = tpu.concatenate %276, %275 in 0 : vector<1x8xf32>, vector<3x8xf32> -> vector<4x8xf32>
    %c16_239 = arith.constant 16 : index
    %c0_240 = arith.constant 0 : index
    %278 = tpu.strided_load %arg4[%c16_239, %c0_240] {strides = array<i32: 2, 1>} : memref<128x8xf32, #tpu.memory_space<vmem>>, vector<4x8xf32>
    %c17_241 = arith.constant 17 : index
    %c0_242 = arith.constant 0 : index
    %279 = tpu.strided_load %arg4[%c17_241, %c0_242] {strides = array<i32: 2, 1>} : memref<128x8xf32, #tpu.memory_space<vmem>>, vector<4x8xf32>
    %c25 = arith.constant 25 : index
    %c0_243 = arith.constant 0 : index
    %280 = tpu.strided_load %arg4[%c25, %c0_243] {strides = array<i32: 2, 1>} : memref<128x8xf32, #tpu.memory_space<vmem>>, vector<3x8xf32>
    %281 = vector.extract_strided_slice %258 {offsets = [0, 0], sizes = [1, 8], strides = [1, 1]} : vector<4x8xf32> to vector<1x8xf32>
    %282 = tpu.concatenate %281, %280 in 0 : vector<1x8xf32>, vector<3x8xf32> -> vector<4x8xf32>
    %c24 = arith.constant 24 : index
    %c0_244 = arith.constant 0 : index
    %283 = tpu.strided_load %arg4[%c24, %c0_244] {strides = array<i32: 2, 1>} : memref<128x8xf32, #tpu.memory_space<vmem>>, vector<4x8xf32>
    %c25_245 = arith.constant 25 : index
    %c0_246 = arith.constant 0 : index
    %284 = tpu.strided_load %arg4[%c25_245, %c0_246] {strides = array<i32: 2, 1>} : memref<128x8xf32, #tpu.memory_space<vmem>>, vector<4x8xf32>
    %285 = tpu.concatenate %272, %273, %274, %277, %278, %279, %282, %283, %284 in 1 : vector<4x8xf32>, vector<4x8xf32>, vector<4x8xf32>, vector<4x8xf32>, vector<4x8xf32>, vector<4x8xf32>, vector<4x8xf32>, vector<4x8xf32>, vector<4x8xf32> -> vector<4x72xf32>
    %c25_247 = arith.constant 25 : index
    %c0_248 = arith.constant 0 : index
    %286 = tpu.strided_load %arg4[%c25_247, %c0_248] {strides = array<i32: 2, 1>} : memref<128x8xf32, #tpu.memory_space<vmem>>, vector<3x8xf32>
    %287 = vector.extract_strided_slice %258 {offsets = [0, 0], sizes = [1, 8], strides = [1, 1]} : vector<4x8xf32> to vector<1x8xf32>
    %288 = tpu.concatenate %287, %286 in 0 : vector<1x8xf32>, vector<3x8xf32> -> vector<4x8xf32>
    %c24_249 = arith.constant 24 : index
    %c0_250 = arith.constant 0 : index
    %289 = tpu.strided_load %arg4[%c24_249, %c0_250] {strides = array<i32: 2, 1>} : memref<128x8xf32, #tpu.memory_space<vmem>>, vector<4x8xf32>
    %c25_251 = arith.constant 25 : index
    %c0_252 = arith.constant 0 : index
    %290 = tpu.strided_load %arg4[%c25_251, %c0_252] {strides = array<i32: 2, 1>} : memref<128x8xf32, #tpu.memory_space<vmem>>, vector<4x8xf32>
    %c33_253 = arith.constant 33 : index
    %c0_254 = arith.constant 0 : index
    %291 = tpu.strided_load %arg4[%c33_253, %c0_254] {strides = array<i32: 2, 1>} : memref<128x8xf32, #tpu.memory_space<vmem>>, vector<3x8xf32>
    %292 = vector.extract_strided_slice %258 {offsets = [0, 0], sizes = [1, 8], strides = [1, 1]} : vector<4x8xf32> to vector<1x8xf32>
    %293 = tpu.concatenate %292, %291 in 0 : vector<1x8xf32>, vector<3x8xf32> -> vector<4x8xf32>
    %c32_255 = arith.constant 32 : index
    %c0_256 = arith.constant 0 : index
    %294 = tpu.strided_load %arg4[%c32_255, %c0_256] {strides = array<i32: 2, 1>} : memref<128x8xf32, #tpu.memory_space<vmem>>, vector<4x8xf32>
    %c33_257 = arith.constant 33 : index
    %c0_258 = arith.constant 0 : index
    %295 = tpu.strided_load %arg4[%c33_257, %c0_258] {strides = array<i32: 2, 1>} : memref<128x8xf32, #tpu.memory_space<vmem>>, vector<4x8xf32>
    %c41 = arith.constant 41 : index
    %c0_259 = arith.constant 0 : index
    %296 = tpu.strided_load %arg4[%c41, %c0_259] {strides = array<i32: 2, 1>} : memref<128x8xf32, #tpu.memory_space<vmem>>, vector<3x8xf32>
    %297 = vector.extract_strided_slice %258 {offsets = [0, 0], sizes = [1, 8], strides = [1, 1]} : vector<4x8xf32> to vector<1x8xf32>
    %298 = tpu.concatenate %297, %296 in 0 : vector<1x8xf32>, vector<3x8xf32> -> vector<4x8xf32>
    %c40 = arith.constant 40 : index
    %c0_260 = arith.constant 0 : index
    %299 = tpu.strided_load %arg4[%c40, %c0_260] {strides = array<i32: 2, 1>} : memref<128x8xf32, #tpu.memory_space<vmem>>, vector<4x8xf32>
    %c41_261 = arith.constant 41 : index
    %c0_262 = arith.constant 0 : index
    %300 = tpu.strided_load %arg4[%c41_261, %c0_262] {strides = array<i32: 2, 1>} : memref<128x8xf32, #tpu.memory_space<vmem>>, vector<4x8xf32>
    %301 = tpu.concatenate %288, %289, %290, %293, %294, %295, %298, %299, %300 in 1 : vector<4x8xf32>, vector<4x8xf32>, vector<4x8xf32>, vector<4x8xf32>, vector<4x8xf32>, vector<4x8xf32>, vector<4x8xf32>, vector<4x8xf32>, vector<4x8xf32> -> vector<4x72xf32>
    %c41_263 = arith.constant 41 : index
    %c0_264 = arith.constant 0 : index
    %302 = tpu.strided_load %arg4[%c41_263, %c0_264] {strides = array<i32: 2, 1>} : memref<128x8xf32, #tpu.memory_space<vmem>>, vector<3x8xf32>
    %303 = vector.extract_strided_slice %258 {offsets = [0, 0], sizes = [1, 8], strides = [1, 1]} : vector<4x8xf32> to vector<1x8xf32>
    %304 = tpu.concatenate %303, %302 in 0 : vector<1x8xf32>, vector<3x8xf32> -> vector<4x8xf32>
    %c40_265 = arith.constant 40 : index
    %c0_266 = arith.constant 0 : index
    %305 = tpu.strided_load %arg4[%c40_265, %c0_266] {strides = array<i32: 2, 1>} : memref<128x8xf32, #tpu.memory_space<vmem>>, vector<4x8xf32>
    %c41_267 = arith.constant 41 : index
    %c0_268 = arith.constant 0 : index
    %306 = tpu.strided_load %arg4[%c41_267, %c0_268] {strides = array<i32: 2, 1>} : memref<128x8xf32, #tpu.memory_space<vmem>>, vector<4x8xf32>
    %c49_269 = arith.constant 49 : index
    %c0_270 = arith.constant 0 : index
    %307 = tpu.strided_load %arg4[%c49_269, %c0_270] {strides = array<i32: 2, 1>} : memref<128x8xf32, #tpu.memory_space<vmem>>, vector<3x8xf32>
    %308 = vector.extract_strided_slice %258 {offsets = [0, 0], sizes = [1, 8], strides = [1, 1]} : vector<4x8xf32> to vector<1x8xf32>
    %309 = tpu.concatenate %308, %307 in 0 : vector<1x8xf32>, vector<3x8xf32> -> vector<4x8xf32>
    %c48_271 = arith.constant 48 : index
    %c0_272 = arith.constant 0 : index
    %310 = tpu.strided_load %arg4[%c48_271, %c0_272] {strides = array<i32: 2, 1>} : memref<128x8xf32, #tpu.memory_space<vmem>>, vector<4x8xf32>
    %c49_273 = arith.constant 49 : index
    %c0_274 = arith.constant 0 : index
    %311 = tpu.strided_load %arg4[%c49_273, %c0_274] {strides = array<i32: 2, 1>} : memref<128x8xf32, #tpu.memory_space<vmem>>, vector<4x8xf32>
    %c57 = arith.constant 57 : index
    %c0_275 = arith.constant 0 : index
    %312 = tpu.strided_load %arg4[%c57, %c0_275] {strides = array<i32: 2, 1>} : memref<128x8xf32, #tpu.memory_space<vmem>>, vector<3x8xf32>
    %313 = vector.extract_strided_slice %258 {offsets = [0, 0], sizes = [1, 8], strides = [1, 1]} : vector<4x8xf32> to vector<1x8xf32>
    %314 = tpu.concatenate %313, %312 in 0 : vector<1x8xf32>, vector<3x8xf32> -> vector<4x8xf32>
    %c56 = arith.constant 56 : index
    %c0_276 = arith.constant 0 : index
    %315 = tpu.strided_load %arg4[%c56, %c0_276] {strides = array<i32: 2, 1>} : memref<128x8xf32, #tpu.memory_space<vmem>>, vector<4x8xf32>
    %c57_277 = arith.constant 57 : index
    %c0_278 = arith.constant 0 : index
    %316 = tpu.strided_load %arg4[%c57_277, %c0_278] {strides = array<i32: 2, 1>} : memref<128x8xf32, #tpu.memory_space<vmem>>, vector<4x8xf32>
    %317 = tpu.concatenate %304, %305, %306, %309, %310, %311, %314, %315, %316 in 1 : vector<4x8xf32>, vector<4x8xf32>, vector<4x8xf32>, vector<4x8xf32>, vector<4x8xf32>, vector<4x8xf32>, vector<4x8xf32>, vector<4x8xf32>, vector<4x8xf32> -> vector<4x72xf32>
    %318 = tpu.concatenate %269, %285, %301, %317 in 0 : vector<4x72xf32>, vector<4x72xf32>, vector<4x72xf32>, vector<4x72xf32> -> vector<16x72xf32>
    %c65_279 = arith.constant 65 : index
    %c0_280 = arith.constant 0 : index
    %319 = tpu.strided_load %arg4[%c65_279, %c0_280] {strides = array<i32: 2, 1>} : memref<128x8xf32, #tpu.memory_space<vmem>>, vector<3x8xf32>
    %320 = vector.extract_strided_slice %258 {offsets = [0, 0], sizes = [1, 8], strides = [1, 1]} : vector<4x8xf32> to vector<1x8xf32>
    %321 = tpu.concatenate %320, %319 in 0 : vector<1x8xf32>, vector<3x8xf32> -> vector<4x8xf32>
    %c64_281 = arith.constant 64 : index
    %c0_282 = arith.constant 0 : index
    %322 = tpu.strided_load %arg4[%c64_281, %c0_282] {strides = array<i32: 2, 1>} : memref<128x8xf32, #tpu.memory_space<vmem>>, vector<4x8xf32>
    %c65_283 = arith.constant 65 : index
    %c0_284 = arith.constant 0 : index
    %323 = tpu.strided_load %arg4[%c65_283, %c0_284] {strides = array<i32: 2, 1>} : memref<128x8xf32, #tpu.memory_space<vmem>>, vector<4x8xf32>
    %c73 = arith.constant 73 : index
    %c0_285 = arith.constant 0 : index
    %324 = tpu.strided_load %arg4[%c73, %c0_285] {strides = array<i32: 2, 1>} : memref<128x8xf32, #tpu.memory_space<vmem>>, vector<3x8xf32>
    %325 = vector.extract_strided_slice %258 {offsets = [0, 0], sizes = [1, 8], strides = [1, 1]} : vector<4x8xf32> to vector<1x8xf32>
    %326 = tpu.concatenate %325, %324 in 0 : vector<1x8xf32>, vector<3x8xf32> -> vector<4x8xf32>
    %c72 = arith.constant 72 : index
    %c0_286 = arith.constant 0 : index
    %327 = tpu.strided_load %arg4[%c72, %c0_286] {strides = array<i32: 2, 1>} : memref<128x8xf32, #tpu.memory_space<vmem>>, vector<4x8xf32>
    %c73_287 = arith.constant 73 : index
    %c0_288 = arith.constant 0 : index
    %328 = tpu.strided_load %arg4[%c73_287, %c0_288] {strides = array<i32: 2, 1>} : memref<128x8xf32, #tpu.memory_space<vmem>>, vector<4x8xf32>
    %329 = tpu.concatenate %258, %258, %258, %321, %322, %323, %326, %327, %328 in 1 : vector<4x8xf32>, vector<4x8xf32>, vector<4x8xf32>, vector<4x8xf32>, vector<4x8xf32>, vector<4x8xf32>, vector<4x8xf32>, vector<4x8xf32>, vector<4x8xf32> -> vector<4x72xf32>
    %c73_289 = arith.constant 73 : index
    %c0_290 = arith.constant 0 : index
    %330 = tpu.strided_load %arg4[%c73_289, %c0_290] {strides = array<i32: 2, 1>} : memref<128x8xf32, #tpu.memory_space<vmem>>, vector<3x8xf32>
    %331 = vector.extract_strided_slice %258 {offsets = [0, 0], sizes = [1, 8], strides = [1, 1]} : vector<4x8xf32> to vector<1x8xf32>
    %332 = tpu.concatenate %331, %330 in 0 : vector<1x8xf32>, vector<3x8xf32> -> vector<4x8xf32>
    %c72_291 = arith.constant 72 : index
    %c0_292 = arith.constant 0 : index
    %333 = tpu.strided_load %arg4[%c72_291, %c0_292] {strides = array<i32: 2, 1>} : memref<128x8xf32, #tpu.memory_space<vmem>>, vector<4x8xf32>
    %c73_293 = arith.constant 73 : index
    %c0_294 = arith.constant 0 : index
    %334 = tpu.strided_load %arg4[%c73_293, %c0_294] {strides = array<i32: 2, 1>} : memref<128x8xf32, #tpu.memory_space<vmem>>, vector<4x8xf32>
    %c81_295 = arith.constant 81 : index
    %c0_296 = arith.constant 0 : index
    %335 = tpu.strided_load %arg4[%c81_295, %c0_296] {strides = array<i32: 2, 1>} : memref<128x8xf32, #tpu.memory_space<vmem>>, vector<3x8xf32>
    %336 = vector.extract_strided_slice %258 {offsets = [0, 0], sizes = [1, 8], strides = [1, 1]} : vector<4x8xf32> to vector<1x8xf32>
    %337 = tpu.concatenate %336, %335 in 0 : vector<1x8xf32>, vector<3x8xf32> -> vector<4x8xf32>
    %c80_297 = arith.constant 80 : index
    %c0_298 = arith.constant 0 : index
    %338 = tpu.strided_load %arg4[%c80_297, %c0_298] {strides = array<i32: 2, 1>} : memref<128x8xf32, #tpu.memory_space<vmem>>, vector<4x8xf32>
    %c81_299 = arith.constant 81 : index
    %c0_300 = arith.constant 0 : index
    %339 = tpu.strided_load %arg4[%c81_299, %c0_300] {strides = array<i32: 2, 1>} : memref<128x8xf32, #tpu.memory_space<vmem>>, vector<4x8xf32>
    %c89 = arith.constant 89 : index
    %c0_301 = arith.constant 0 : index
    %340 = tpu.strided_load %arg4[%c89, %c0_301] {strides = array<i32: 2, 1>} : memref<128x8xf32, #tpu.memory_space<vmem>>, vector<3x8xf32>
    %341 = vector.extract_strided_slice %258 {offsets = [0, 0], sizes = [1, 8], strides = [1, 1]} : vector<4x8xf32> to vector<1x8xf32>
    %342 = tpu.concatenate %341, %340 in 0 : vector<1x8xf32>, vector<3x8xf32> -> vector<4x8xf32>
    %c88 = arith.constant 88 : index
    %c0_302 = arith.constant 0 : index
    %343 = tpu.strided_load %arg4[%c88, %c0_302] {strides = array<i32: 2, 1>} : memref<128x8xf32, #tpu.memory_space<vmem>>, vector<4x8xf32>
    %c89_303 = arith.constant 89 : index
    %c0_304 = arith.constant 0 : index
    %344 = tpu.strided_load %arg4[%c89_303, %c0_304] {strides = array<i32: 2, 1>} : memref<128x8xf32, #tpu.memory_space<vmem>>, vector<4x8xf32>
    %345 = tpu.concatenate %332, %333, %334, %337, %338, %339, %342, %343, %344 in 1 : vector<4x8xf32>, vector<4x8xf32>, vector<4x8xf32>, vector<4x8xf32>, vector<4x8xf32>, vector<4x8xf32>, vector<4x8xf32>, vector<4x8xf32>, vector<4x8xf32> -> vector<4x72xf32>
    %c89_305 = arith.constant 89 : index
    %c0_306 = arith.constant 0 : index
    %346 = tpu.strided_load %arg4[%c89_305, %c0_306] {strides = array<i32: 2, 1>} : memref<128x8xf32, #tpu.memory_space<vmem>>, vector<3x8xf32>
    %347 = vector.extract_strided_slice %258 {offsets = [0, 0], sizes = [1, 8], strides = [1, 1]} : vector<4x8xf32> to vector<1x8xf32>
    %348 = tpu.concatenate %347, %346 in 0 : vector<1x8xf32>, vector<3x8xf32> -> vector<4x8xf32>
    %c88_307 = arith.constant 88 : index
    %c0_308 = arith.constant 0 : index
    %349 = tpu.strided_load %arg4[%c88_307, %c0_308] {strides = array<i32: 2, 1>} : memref<128x8xf32, #tpu.memory_space<vmem>>, vector<4x8xf32>
    %c89_309 = arith.constant 89 : index
    %c0_310 = arith.constant 0 : index
    %350 = tpu.strided_load %arg4[%c89_309, %c0_310] {strides = array<i32: 2, 1>} : memref<128x8xf32, #tpu.memory_space<vmem>>, vector<4x8xf32>
    %c97_311 = arith.constant 97 : index
    %c0_312 = arith.constant 0 : index
    %351 = tpu.strided_load %arg4[%c97_311, %c0_312] {strides = array<i32: 2, 1>} : memref<128x8xf32, #tpu.memory_space<vmem>>, vector<3x8xf32>
    %352 = vector.extract_strided_slice %258 {offsets = [0, 0], sizes = [1, 8], strides = [1, 1]} : vector<4x8xf32> to vector<1x8xf32>
    %353 = tpu.concatenate %352, %351 in 0 : vector<1x8xf32>, vector<3x8xf32> -> vector<4x8xf32>
    %c96_313 = arith.constant 96 : index
    %c0_314 = arith.constant 0 : index
    %354 = tpu.strided_load %arg4[%c96_313, %c0_314] {strides = array<i32: 2, 1>} : memref<128x8xf32, #tpu.memory_space<vmem>>, vector<4x8xf32>
    %c97_315 = arith.constant 97 : index
    %c0_316 = arith.constant 0 : index
    %355 = tpu.strided_load %arg4[%c97_315, %c0_316] {strides = array<i32: 2, 1>} : memref<128x8xf32, #tpu.memory_space<vmem>>, vector<4x8xf32>
    %c105 = arith.constant 105 : index
    %c0_317 = arith.constant 0 : index
    %356 = tpu.strided_load %arg4[%c105, %c0_317] {strides = array<i32: 2, 1>} : memref<128x8xf32, #tpu.memory_space<vmem>>, vector<3x8xf32>
    %357 = vector.extract_strided_slice %258 {offsets = [0, 0], sizes = [1, 8], strides = [1, 1]} : vector<4x8xf32> to vector<1x8xf32>
    %358 = tpu.concatenate %357, %356 in 0 : vector<1x8xf32>, vector<3x8xf32> -> vector<4x8xf32>
    %c104 = arith.constant 104 : index
    %c0_318 = arith.constant 0 : index
    %359 = tpu.strided_load %arg4[%c104, %c0_318] {strides = array<i32: 2, 1>} : memref<128x8xf32, #tpu.memory_space<vmem>>, vector<4x8xf32>
    %c105_319 = arith.constant 105 : index
    %c0_320 = arith.constant 0 : index
    %360 = tpu.strided_load %arg4[%c105_319, %c0_320] {strides = array<i32: 2, 1>} : memref<128x8xf32, #tpu.memory_space<vmem>>, vector<4x8xf32>
    %361 = tpu.concatenate %348, %349, %350, %353, %354, %355, %358, %359, %360 in 1 : vector<4x8xf32>, vector<4x8xf32>, vector<4x8xf32>, vector<4x8xf32>, vector<4x8xf32>, vector<4x8xf32>, vector<4x8xf32>, vector<4x8xf32>, vector<4x8xf32> -> vector<4x72xf32>
    %c105_321 = arith.constant 105 : index
    %c0_322 = arith.constant 0 : index
    %362 = tpu.strided_load %arg4[%c105_321, %c0_322] {strides = array<i32: 2, 1>} : memref<128x8xf32, #tpu.memory_space<vmem>>, vector<3x8xf32>
    %363 = vector.extract_strided_slice %258 {offsets = [0, 0], sizes = [1, 8], strides = [1, 1]} : vector<4x8xf32> to vector<1x8xf32>
    %364 = tpu.concatenate %363, %362 in 0 : vector<1x8xf32>, vector<3x8xf32> -> vector<4x8xf32>
    %c104_323 = arith.constant 104 : index
    %c0_324 = arith.constant 0 : index
    %365 = tpu.strided_load %arg4[%c104_323, %c0_324] {strides = array<i32: 2, 1>} : memref<128x8xf32, #tpu.memory_space<vmem>>, vector<4x8xf32>
    %c105_325 = arith.constant 105 : index
    %c0_326 = arith.constant 0 : index
    %366 = tpu.strided_load %arg4[%c105_325, %c0_326] {strides = array<i32: 2, 1>} : memref<128x8xf32, #tpu.memory_space<vmem>>, vector<4x8xf32>
    %c113_327 = arith.constant 113 : index
    %c0_328 = arith.constant 0 : index
    %367 = tpu.strided_load %arg4[%c113_327, %c0_328] {strides = array<i32: 2, 1>} : memref<128x8xf32, #tpu.memory_space<vmem>>, vector<3x8xf32>
    %368 = vector.extract_strided_slice %258 {offsets = [0, 0], sizes = [1, 8], strides = [1, 1]} : vector<4x8xf32> to vector<1x8xf32>
    %369 = tpu.concatenate %368, %367 in 0 : vector<1x8xf32>, vector<3x8xf32> -> vector<4x8xf32>
    %c112_329 = arith.constant 112 : index
    %c0_330 = arith.constant 0 : index
    %370 = tpu.strided_load %arg4[%c112_329, %c0_330] {strides = array<i32: 2, 1>} : memref<128x8xf32, #tpu.memory_space<vmem>>, vector<4x8xf32>
    %c113_331 = arith.constant 113 : index
    %c0_332 = arith.constant 0 : index
    %371 = tpu.strided_load %arg4[%c113_331, %c0_332] {strides = array<i32: 2, 1>} : memref<128x8xf32, #tpu.memory_space<vmem>>, vector<4x8xf32>
    %c121 = arith.constant 121 : index
    %c0_333 = arith.constant 0 : index
    %372 = tpu.strided_load %arg4[%c121, %c0_333] {strides = array<i32: 2, 1>} : memref<128x8xf32, #tpu.memory_space<vmem>>, vector<3x8xf32>
    %373 = vector.extract_strided_slice %258 {offsets = [0, 0], sizes = [1, 8], strides = [1, 1]} : vector<4x8xf32> to vector<1x8xf32>
    %374 = tpu.concatenate %373, %372 in 0 : vector<1x8xf32>, vector<3x8xf32> -> vector<4x8xf32>
    %c120 = arith.constant 120 : index
    %c0_334 = arith.constant 0 : index
    %375 = tpu.strided_load %arg4[%c120, %c0_334] {strides = array<i32: 2, 1>} : memref<128x8xf32, #tpu.memory_space<vmem>>, vector<4x8xf32>
    %c121_335 = arith.constant 121 : index
    %c0_336 = arith.constant 0 : index
    %376 = tpu.strided_load %arg4[%c121_335, %c0_336] {strides = array<i32: 2, 1>} : memref<128x8xf32, #tpu.memory_space<vmem>>, vector<4x8xf32>
    %377 = tpu.concatenate %364, %365, %366, %369, %370, %371, %374, %375, %376 in 1 : vector<4x8xf32>, vector<4x8xf32>, vector<4x8xf32>, vector<4x8xf32>, vector<4x8xf32>, vector<4x8xf32>, vector<4x8xf32>, vector<4x8xf32>, vector<4x8xf32> -> vector<4x72xf32>
    %378 = tpu.concatenate %329, %345, %361, %377 in 0 : vector<4x72xf32>, vector<4x72xf32>, vector<4x72xf32>, vector<4x72xf32> -> vector<16x72xf32>
    %379 = tpu.concatenate %318, %378 in 0 : vector<16x72xf32>, vector<16x72xf32> -> vector<32x72xf32>
    %c0_337 = arith.constant 0 : index
    %c8_338 = arith.constant 8 : index
    %380 = vector.load %arg1[%c0_337, %c8_338] : memref<144x66xf32, #tpu.memory_space<vmem>>, vector<72x16xf32>
    %c0_339 = arith.constant 0 : index
    %c8_340 = arith.constant 8 : index
    %381 = vector.load %arg2[%c0_339, %c8_340] : memref<1x66xf32, #tpu.memory_space<vmem>>, vector<1x16xf32>
    %cst_341 = arith.constant dense<0.000000e+00> : vector<32x16xf32>
    %382 = tpu.matmul %379, %380, %cst_341 {dimension_numbers = #tpu.dot_dimension_numbers<[1], [0], [0], [1], [0, 0, 1, 1], [], []>} : vector<32x72xf32>, vector<72x16xf32>, vector<32x16xf32> -> vector<32x16xf32>
    %383 = vector.broadcast %381 : vector<1x16xf32> to vector<32x16xf32>
    %384 = arith.addf %382, %383 : vector<32x16xf32>
    %cst_342 = arith.constant 0.000000e+00 : f32
    %385 = vector.broadcast %cst_342 : f32 to vector<32x16xf32>
    %386 = arith.maximumf %384, %385 : vector<32x16xf32>
    %c0_343 = arith.constant 0 : index
    %c0_344 = arith.constant 0 : index
    %387 = vector.load %arg5[%c0_343, %c0_344] : memref<32x16xf32, #tpu.memory_space<vmem>>, vector<32x16xf32>
    tpu.vector_store %arg5[%c0_343, %c0_344], %386 {strides = array<i32>} : memref<32x16xf32, #tpu.memory_space<vmem>>, vector<32x16xf32>,
    %cst_345 = arith.constant 0.000000e+00 : f32
    %388 = vector.broadcast %cst_345 : f32 to vector<4x16xf32>
    %c0_346 = arith.constant 0 : index
    %c0_347 = arith.constant 0 : index
    %389 = vector.load %arg5[%c0_346, %c0_347] : memref<32x16xf32, #tpu.memory_space<vmem>>, vector<3x16xf32>
    %390 = vector.extract_strided_slice %388 {offsets = [0, 0], sizes = [1, 16], strides = [1, 1]} : vector<4x16xf32> to vector<1x16xf32>
    %391 = tpu.concatenate %390, %389 in 0 : vector<1x16xf32>, vector<3x16xf32> -> vector<4x16xf32>
    %c0_348 = arith.constant 0 : index
    %c0_349 = arith.constant 0 : index
    %392 = vector.load %arg5[%c0_348, %c0_349] : memref<32x16xf32, #tpu.memory_space<vmem>>, vector<4x16xf32>
    %c1_350 = arith.constant 1 : index
    %c0_351 = arith.constant 0 : index
    %393 = vector.load %arg5[%c1_350, %c0_351] : memref<32x16xf32, #tpu.memory_space<vmem>>, vector<3x16xf32>
    %394 = vector.extract_strided_slice %388 {offsets = [0, 0], sizes = [1, 16], strides = [1, 1]} : vector<4x16xf32> to vector<1x16xf32>
    %395 = tpu.concatenate %393, %394 in 0 : vector<3x16xf32>, vector<1x16xf32> -> vector<4x16xf32>
    %c4 = arith.constant 4 : index
    %c0_352 = arith.constant 0 : index
    %396 = vector.load %arg5[%c4, %c0_352] : memref<32x16xf32, #tpu.memory_space<vmem>>, vector<3x16xf32>
    %397 = vector.extract_strided_slice %388 {offsets = [0, 0], sizes = [1, 16], strides = [1, 1]} : vector<4x16xf32> to vector<1x16xf32>
    %398 = tpu.concatenate %397, %396 in 0 : vector<1x16xf32>, vector<3x16xf32> -> vector<4x16xf32>
    %c4_353 = arith.constant 4 : index
    %c0_354 = arith.constant 0 : index
    %399 = vector.load %arg5[%c4_353, %c0_354] : memref<32x16xf32, #tpu.memory_space<vmem>>, vector<4x16xf32>
    %c5 = arith.constant 5 : index
    %c0_355 = arith.constant 0 : index
    %400 = vector.load %arg5[%c5, %c0_355] : memref<32x16xf32, #tpu.memory_space<vmem>>, vector<3x16xf32>
    %401 = vector.extract_strided_slice %388 {offsets = [0, 0], sizes = [1, 16], strides = [1, 1]} : vector<4x16xf32> to vector<1x16xf32>
    %402 = tpu.concatenate %400, %401 in 0 : vector<3x16xf32>, vector<1x16xf32> -> vector<4x16xf32>
    %403 = tpu.concatenate %388, %388, %388, %391, %392, %395, %398, %399, %402 in 1 : vector<4x16xf32>, vector<4x16xf32>, vector<4x16xf32>, vector<4x16xf32>, vector<4x16xf32>, vector<4x16xf32>, vector<4x16xf32>, vector<4x16xf32>, vector<4x16xf32> -> vector<4x144xf32>
    %c0_356 = arith.constant 0 : index
    %c0_357 = arith.constant 0 : index
    %404 = vector.load %arg5[%c0_356, %c0_357] : memref<32x16xf32, #tpu.memory_space<vmem>>, vector<3x16xf32>
    %405 = vector.extract_strided_slice %388 {offsets = [0, 0], sizes = [1, 16], strides = [1, 1]} : vector<4x16xf32> to vector<1x16xf32>
    %406 = tpu.concatenate %405, %404 in 0 : vector<1x16xf32>, vector<3x16xf32> -> vector<4x16xf32>
    %c0_358 = arith.constant 0 : index
    %c0_359 = arith.constant 0 : index
    %407 = vector.load %arg5[%c0_358, %c0_359] : memref<32x16xf32, #tpu.memory_space<vmem>>, vector<4x16xf32>
    %c1_360 = arith.constant 1 : index
    %c0_361 = arith.constant 0 : index
    %408 = vector.load %arg5[%c1_360, %c0_361] : memref<32x16xf32, #tpu.memory_space<vmem>>, vector<3x16xf32>
    %409 = vector.extract_strided_slice %388 {offsets = [0, 0], sizes = [1, 16], strides = [1, 1]} : vector<4x16xf32> to vector<1x16xf32>
    %410 = tpu.concatenate %408, %409 in 0 : vector<3x16xf32>, vector<1x16xf32> -> vector<4x16xf32>
    %c4_362 = arith.constant 4 : index
    %c0_363 = arith.constant 0 : index
    %411 = vector.load %arg5[%c4_362, %c0_363] : memref<32x16xf32, #tpu.memory_space<vmem>>, vector<3x16xf32>
    %412 = vector.extract_strided_slice %388 {offsets = [0, 0], sizes = [1, 16], strides = [1, 1]} : vector<4x16xf32> to vector<1x16xf32>
    %413 = tpu.concatenate %412, %411 in 0 : vector<1x16xf32>, vector<3x16xf32> -> vector<4x16xf32>
    %c4_364 = arith.constant 4 : index
    %c0_365 = arith.constant 0 : index
    %414 = vector.load %arg5[%c4_364, %c0_365] : memref<32x16xf32, #tpu.memory_space<vmem>>, vector<4x16xf32>
    %c5_366 = arith.constant 5 : index
    %c0_367 = arith.constant 0 : index
    %415 = vector.load %arg5[%c5_366, %c0_367] : memref<32x16xf32, #tpu.memory_space<vmem>>, vector<3x16xf32>
    %416 = vector.extract_strided_slice %388 {offsets = [0, 0], sizes = [1, 16], strides = [1, 1]} : vector<4x16xf32> to vector<1x16xf32>
    %417 = tpu.concatenate %415, %416 in 0 : vector<3x16xf32>, vector<1x16xf32> -> vector<4x16xf32>
    %c8_368 = arith.constant 8 : index
    %c0_369 = arith.constant 0 : index
    %418 = vector.load %arg5[%c8_368, %c0_369] : memref<32x16xf32, #tpu.memory_space<vmem>>, vector<3x16xf32>
    %419 = vector.extract_strided_slice %388 {offsets = [0, 0], sizes = [1, 16], strides = [1, 1]} : vector<4x16xf32> to vector<1x16xf32>
    %420 = tpu.concatenate %419, %418 in 0 : vector<1x16xf32>, vector<3x16xf32> -> vector<4x16xf32>
    %c8_370 = arith.constant 8 : index
    %c0_371 = arith.constant 0 : index
    %421 = vector.load %arg5[%c8_370, %c0_371] : memref<32x16xf32, #tpu.memory_space<vmem>>, vector<4x16xf32>
    %c9_372 = arith.constant 9 : index
    %c0_373 = arith.constant 0 : index
    %422 = vector.load %arg5[%c9_372, %c0_373] : memref<32x16xf32, #tpu.memory_space<vmem>>, vector<3x16xf32>
    %423 = vector.extract_strided_slice %388 {offsets = [0, 0], sizes = [1, 16], strides = [1, 1]} : vector<4x16xf32> to vector<1x16xf32>
    %424 = tpu.concatenate %422, %423 in 0 : vector<3x16xf32>, vector<1x16xf32> -> vector<4x16xf32>
    %425 = tpu.concatenate %406, %407, %410, %413, %414, %417, %420, %421, %424 in 1 : vector<4x16xf32>, vector<4x16xf32>, vector<4x16xf32>, vector<4x16xf32>, vector<4x16xf32>, vector<4x16xf32>, vector<4x16xf32>, vector<4x16xf32>, vector<4x16xf32> -> vector<4x144xf32>
    %c4_374 = arith.constant 4 : index
    %c0_375 = arith.constant 0 : index
    %426 = vector.load %arg5[%c4_374, %c0_375] : memref<32x16xf32, #tpu.memory_space<vmem>>, vector<3x16xf32>
    %427 = vector.extract_strided_slice %388 {offsets = [0, 0], sizes = [1, 16], strides = [1, 1]} : vector<4x16xf32> to vector<1x16xf32>
    %428 = tpu.concatenate %427, %426 in 0 : vector<1x16xf32>, vector<3x16xf32> -> vector<4x16xf32>
    %c4_376 = arith.constant 4 : index
    %c0_377 = arith.constant 0 : index
    %429 = vector.load %arg5[%c4_376, %c0_377] : memref<32x16xf32, #tpu.memory_space<vmem>>, vector<4x16xf32>
    %c5_378 = arith.constant 5 : index
    %c0_379 = arith.constant 0 : index
    %430 = vector.load %arg5[%c5_378, %c0_379] : memref<32x16xf32, #tpu.memory_space<vmem>>, vector<3x16xf32>
    %431 = vector.extract_strided_slice %388 {offsets = [0, 0], sizes = [1, 16], strides = [1, 1]} : vector<4x16xf32> to vector<1x16xf32>
    %432 = tpu.concatenate %430, %431 in 0 : vector<3x16xf32>, vector<1x16xf32> -> vector<4x16xf32>
    %c8_380 = arith.constant 8 : index
    %c0_381 = arith.constant 0 : index
    %433 = vector.load %arg5[%c8_380, %c0_381] : memref<32x16xf32, #tpu.memory_space<vmem>>, vector<3x16xf32>
    %434 = vector.extract_strided_slice %388 {offsets = [0, 0], sizes = [1, 16], strides = [1, 1]} : vector<4x16xf32> to vector<1x16xf32>
    %435 = tpu.concatenate %434, %433 in 0 : vector<1x16xf32>, vector<3x16xf32> -> vector<4x16xf32>
    %c8_382 = arith.constant 8 : index
    %c0_383 = arith.constant 0 : index
    %436 = vector.load %arg5[%c8_382, %c0_383] : memref<32x16xf32, #tpu.memory_space<vmem>>, vector<4x16xf32>
    %c9_384 = arith.constant 9 : index
    %c0_385 = arith.constant 0 : index
    %437 = vector.load %arg5[%c9_384, %c0_385] : memref<32x16xf32, #tpu.memory_space<vmem>>, vector<3x16xf32>
    %438 = vector.extract_strided_slice %388 {offsets = [0, 0], sizes = [1, 16], strides = [1, 1]} : vector<4x16xf32> to vector<1x16xf32>
    %439 = tpu.concatenate %437, %438 in 0 : vector<3x16xf32>, vector<1x16xf32> -> vector<4x16xf32>
    %c12 = arith.constant 12 : index
    %c0_386 = arith.constant 0 : index
    %440 = vector.load %arg5[%c12, %c0_386] : memref<32x16xf32, #tpu.memory_space<vmem>>, vector<3x16xf32>
    %441 = vector.extract_strided_slice %388 {offsets = [0, 0], sizes = [1, 16], strides = [1, 1]} : vector<4x16xf32> to vector<1x16xf32>
    %442 = tpu.concatenate %441, %440 in 0 : vector<1x16xf32>, vector<3x16xf32> -> vector<4x16xf32>
    %c12_387 = arith.constant 12 : index
    %c0_388 = arith.constant 0 : index
    %443 = vector.load %arg5[%c12_387, %c0_388] : memref<32x16xf32, #tpu.memory_space<vmem>>, vector<4x16xf32>
    %c13 = arith.constant 13 : index
    %c0_389 = arith.constant 0 : index
    %444 = vector.load %arg5[%c13, %c0_389] : memref<32x16xf32, #tpu.memory_space<vmem>>, vector<3x16xf32>
    %445 = vector.extract_strided_slice %388 {offsets = [0, 0], sizes = [1, 16], strides = [1, 1]} : vector<4x16xf32> to vector<1x16xf32>
    %446 = tpu.concatenate %444, %445 in 0 : vector<3x16xf32>, vector<1x16xf32> -> vector<4x16xf32>
    %447 = tpu.concatenate %428, %429, %432, %435, %436, %439, %442, %443, %446 in 1 : vector<4x16xf32>, vector<4x16xf32>, vector<4x16xf32>, vector<4x16xf32>, vector<4x16xf32>, vector<4x16xf32>, vector<4x16xf32>, vector<4x16xf32>, vector<4x16xf32> -> vector<4x144xf32>
    %c8_390 = arith.constant 8 : index
    %c0_391 = arith.constant 0 : index
    %448 = vector.load %arg5[%c8_390, %c0_391] : memref<32x16xf32, #tpu.memory_space<vmem>>, vector<3x16xf32>
    %449 = vector.extract_strided_slice %388 {offsets = [0, 0], sizes = [1, 16], strides = [1, 1]} : vector<4x16xf32> to vector<1x16xf32>
    %450 = tpu.concatenate %449, %448 in 0 : vector<1x16xf32>, vector<3x16xf32> -> vector<4x16xf32>
    %c8_392 = arith.constant 8 : index
    %c0_393 = arith.constant 0 : index
    %451 = vector.load %arg5[%c8_392, %c0_393] : memref<32x16xf32, #tpu.memory_space<vmem>>, vector<4x16xf32>
    %c9_394 = arith.constant 9 : index
    %c0_395 = arith.constant 0 : index
    %452 = vector.load %arg5[%c9_394, %c0_395] : memref<32x16xf32, #tpu.memory_space<vmem>>, vector<3x16xf32>
    %453 = vector.extract_strided_slice %388 {offsets = [0, 0], sizes = [1, 16], strides = [1, 1]} : vector<4x16xf32> to vector<1x16xf32>
    %454 = tpu.concatenate %452, %453 in 0 : vector<3x16xf32>, vector<1x16xf32> -> vector<4x16xf32>
    %c12_396 = arith.constant 12 : index
    %c0_397 = arith.constant 0 : index
    %455 = vector.load %arg5[%c12_396, %c0_397] : memref<32x16xf32, #tpu.memory_space<vmem>>, vector<3x16xf32>
    %456 = vector.extract_strided_slice %388 {offsets = [0, 0], sizes = [1, 16], strides = [1, 1]} : vector<4x16xf32> to vector<1x16xf32>
    %457 = tpu.concatenate %456, %455 in 0 : vector<1x16xf32>, vector<3x16xf32> -> vector<4x16xf32>
    %c12_398 = arith.constant 12 : index
    %c0_399 = arith.constant 0 : index
    %458 = vector.load %arg5[%c12_398, %c0_399] : memref<32x16xf32, #tpu.memory_space<vmem>>, vector<4x16xf32>
    %c13_400 = arith.constant 13 : index
    %c0_401 = arith.constant 0 : index
    %459 = vector.load %arg5[%c13_400, %c0_401] : memref<32x16xf32, #tpu.memory_space<vmem>>, vector<3x16xf32>
    %460 = vector.extract_strided_slice %388 {offsets = [0, 0], sizes = [1, 16], strides = [1, 1]} : vector<4x16xf32> to vector<1x16xf32>
    %461 = tpu.concatenate %459, %460 in 0 : vector<3x16xf32>, vector<1x16xf32> -> vector<4x16xf32>
    %462 = tpu.concatenate %450, %451, %454, %457, %458, %461, %388, %388, %388 in 1 : vector<4x16xf32>, vector<4x16xf32>, vector<4x16xf32>, vector<4x16xf32>, vector<4x16xf32>, vector<4x16xf32>, vector<4x16xf32>, vector<4x16xf32>, vector<4x16xf32> -> vector<4x144xf32>
    %463 = tpu.concatenate %403, %425, %447, %462 in 0 : vector<4x144xf32>, vector<4x144xf32>, vector<4x144xf32>, vector<4x144xf32> -> vector<16x144xf32>
    %c16_402 = arith.constant 16 : index
    %c0_403 = arith.constant 0 : index
    %464 = vector.load %arg5[%c16_402, %c0_403] : memref<32x16xf32, #tpu.memory_space<vmem>>, vector<3x16xf32>
    %465 = vector.extract_strided_slice %388 {offsets = [0, 0], sizes = [1, 16], strides = [1, 1]} : vector<4x16xf32> to vector<1x16xf32>
    %466 = tpu.concatenate %465, %464 in 0 : vector<1x16xf32>, vector<3x16xf32> -> vector<4x16xf32>
    %c16_404 = arith.constant 16 : index
    %c0_405 = arith.constant 0 : index
    %467 = vector.load %arg5[%c16_404, %c0_405] : memref<32x16xf32, #tpu.memory_space<vmem>>, vector<4x16xf32>
    %c17_406 = arith.constant 17 : index
    %c0_407 = arith.constant 0 : index
    %468 = vector.load %arg5[%c17_406, %c0_407] : memref<32x16xf32, #tpu.memory_space<vmem>>, vector<3x16xf32>
    %469 = vector.extract_strided_slice %388 {offsets = [0, 0], sizes = [1, 16], strides = [1, 1]} : vector<4x16xf32> to vector<1x16xf32>
    %470 = tpu.concatenate %468, %469 in 0 : vector<3x16xf32>, vector<1x16xf32> -> vector<4x16xf32>
    %c20 = arith.constant 20 : index
    %c0_408 = arith.constant 0 : index
    %471 = vector.load %arg5[%c20, %c0_408] : memref<32x16xf32, #tpu.memory_space<vmem>>, vector<3x16xf32>
    %472 = vector.extract_strided_slice %388 {offsets = [0, 0], sizes = [1, 16], strides = [1, 1]} : vector<4x16xf32> to vector<1x16xf32>
    %473 = tpu.concatenate %472, %471 in 0 : vector<1x16xf32>, vector<3x16xf32> -> vector<4x16xf32>
    %c20_409 = arith.constant 20 : index
    %c0_410 = arith.constant 0 : index
    %474 = vector.load %arg5[%c20_409, %c0_410] : memref<32x16xf32, #tpu.memory_space<vmem>>, vector<4x16xf32>
    %c21 = arith.constant 21 : index
    %c0_411 = arith.constant 0 : index
    %475 = vector.load %arg5[%c21, %c0_411] : memref<32x16xf32, #tpu.memory_space<vmem>>, vector<3x16xf32>
    %476 = vector.extract_strided_slice %388 {offsets = [0, 0], sizes = [1, 16], strides = [1, 1]} : vector<4x16xf32> to vector<1x16xf32>
    %477 = tpu.concatenate %475, %476 in 0 : vector<3x16xf32>, vector<1x16xf32> -> vector<4x16xf32>
    %478 = tpu.concatenate %388, %388, %388, %466, %467, %470, %473, %474, %477 in 1 : vector<4x16xf32>, vector<4x16xf32>, vector<4x16xf32>, vector<4x16xf32>, vector<4x16xf32>, vector<4x16xf32>, vector<4x16xf32>, vector<4x16xf32>, vector<4x16xf32> -> vector<4x144xf32>
    %c16_412 = arith.constant 16 : index
    %c0_413 = arith.constant 0 : index
    %479 = vector.load %arg5[%c16_412, %c0_413] : memref<32x16xf32, #tpu.memory_space<vmem>>, vector<3x16xf32>
    %480 = vector.extract_strided_slice %388 {offsets = [0, 0], sizes = [1, 16], strides = [1, 1]} : vector<4x16xf32> to vector<1x16xf32>
    %481 = tpu.concatenate %480, %479 in 0 : vector<1x16xf32>, vector<3x16xf32> -> vector<4x16xf32>
    %c16_414 = arith.constant 16 : index
    %c0_415 = arith.constant 0 : index
    %482 = vector.load %arg5[%c16_414, %c0_415] : memref<32x16xf32, #tpu.memory_space<vmem>>, vector<4x16xf32>
    %c17_416 = arith.constant 17 : index
    %c0_417 = arith.constant 0 : index
    %483 = vector.load %arg5[%c17_416, %c0_417] : memref<32x16xf32, #tpu.memory_space<vmem>>, vector<3x16xf32>
    %484 = vector.extract_strided_slice %388 {offsets = [0, 0], sizes = [1, 16], strides = [1, 1]} : vector<4x16xf32> to vector<1x16xf32>
    %485 = tpu.concatenate %483, %484 in 0 : vector<3x16xf32>, vector<1x16xf32> -> vector<4x16xf32>
    %c20_418 = arith.constant 20 : index
    %c0_419 = arith.constant 0 : index
    %486 = vector.load %arg5[%c20_418, %c0_419] : memref<32x16xf32, #tpu.memory_space<vmem>>, vector<3x16xf32>
    %487 = vector.extract_strided_slice %388 {offsets = [0, 0], sizes = [1, 16], strides = [1, 1]} : vector<4x16xf32> to vector<1x16xf32>
    %488 = tpu.concatenate %487, %486 in 0 : vector<1x16xf32>, vector<3x16xf32> -> vector<4x16xf32>
    %c20_420 = arith.constant 20 : index
    %c0_421 = arith.constant 0 : index
    %489 = vector.load %arg5[%c20_420, %c0_421] : memref<32x16xf32, #tpu.memory_space<vmem>>, vector<4x16xf32>
    %c21_422 = arith.constant 21 : index
    %c0_423 = arith.constant 0 : index
    %490 = vector.load %arg5[%c21_422, %c0_423] : memref<32x16xf32, #tpu.memory_space<vmem>>, vector<3x16xf32>
    %491 = vector.extract_strided_slice %388 {offsets = [0, 0], sizes = [1, 16], strides = [1, 1]} : vector<4x16xf32> to vector<1x16xf32>
    %492 = tpu.concatenate %490, %491 in 0 : vector<3x16xf32>, vector<1x16xf32> -> vector<4x16xf32>
    %c24_424 = arith.constant 24 : index
    %c0_425 = arith.constant 0 : index
    %493 = vector.load %arg5[%c24_424, %c0_425] : memref<32x16xf32, #tpu.memory_space<vmem>>, vector<3x16xf32>
    %494 = vector.extract_strided_slice %388 {offsets = [0, 0], sizes = [1, 16], strides = [1, 1]} : vector<4x16xf32> to vector<1x16xf32>
    %495 = tpu.concatenate %494, %493 in 0 : vector<1x16xf32>, vector<3x16xf32> -> vector<4x16xf32>
    %c24_426 = arith.constant 24 : index
    %c0_427 = arith.constant 0 : index
    %496 = vector.load %arg5[%c24_426, %c0_427] : memref<32x16xf32, #tpu.memory_space<vmem>>, vector<4x16xf32>
    %c25_428 = arith.constant 25 : index
    %c0_429 = arith.constant 0 : index
    %497 = vector.load %arg5[%c25_428, %c0_429] : memref<32x16xf32, #tpu.memory_space<vmem>>, vector<3x16xf32>
    %498 = vector.extract_strided_slice %388 {offsets = [0, 0], sizes = [1, 16], strides = [1, 1]} : vector<4x16xf32> to vector<1x16xf32>
    %499 = tpu.concatenate %497, %498 in 0 : vector<3x16xf32>, vector<1x16xf32> -> vector<4x16xf32>
    %500 = tpu.concatenate %481, %482, %485, %488, %489, %492, %495, %496, %499 in 1 : vector<4x16xf32>, vector<4x16xf32>, vector<4x16xf32>, vector<4x16xf32>, vector<4x16xf32>, vector<4x16xf32>, vector<4x16xf32>, vector<4x16xf32>, vector<4x16xf32> -> vector<4x144xf32>
    %c20_430 = arith.constant 20 : index
    %c0_431 = arith.constant 0 : index
    %501 = vector.load %arg5[%c20_430, %c0_431] : memref<32x16xf32, #tpu.memory_space<vmem>>, vector<3x16xf32>
    %502 = vector.extract_strided_slice %388 {offsets = [0, 0], sizes = [1, 16], strides = [1, 1]} : vector<4x16xf32> to vector<1x16xf32>
    %503 = tpu.concatenate %502, %501 in 0 : vector<1x16xf32>, vector<3x16xf32> -> vector<4x16xf32>
    %c20_432 = arith.constant 20 : index
    %c0_433 = arith.constant 0 : index
    %504 = vector.load %arg5[%c20_432, %c0_433] : memref<32x16xf32, #tpu.memory_space<vmem>>, vector<4x16xf32>
    %c21_434 = arith.constant 21 : index
    %c0_435 = arith.constant 0 : index
    %505 = vector.load %arg5[%c21_434, %c0_435] : memref<32x16xf32, #tpu.memory_space<vmem>>, vector<3x16xf32>
    %506 = vector.extract_strided_slice %388 {offsets = [0, 0], sizes = [1, 16], strides = [1, 1]} : vector<4x16xf32> to vector<1x16xf32>
    %507 = tpu.concatenate %505, %506 in 0 : vector<3x16xf32>, vector<1x16xf32> -> vector<4x16xf32>
    %c24_436 = arith.constant 24 : index
    %c0_437 = arith.constant 0 : index
    %508 = vector.load %arg5[%c24_436, %c0_437] : memref<32x16xf32, #tpu.memory_space<vmem>>, vector<3x16xf32>
    %509 = vector.extract_strided_slice %388 {offsets = [0, 0], sizes = [1, 16], strides = [1, 1]} : vector<4x16xf32> to vector<1x16xf32>
    %510 = tpu.concatenate %509, %508 in 0 : vector<1x16xf32>, vector<3x16xf32> -> vector<4x16xf32>
    %c24_438 = arith.constant 24 : index
    %c0_439 = arith.constant 0 : index
    %511 = vector.load %arg5[%c24_438, %c0_439] : memref<32x16xf32, #tpu.memory_space<vmem>>, vector<4x16xf32>
    %c25_440 = arith.constant 25 : index
    %c0_441 = arith.constant 0 : index
    %512 = vector.load %arg5[%c25_440, %c0_441] : memref<32x16xf32, #tpu.memory_space<vmem>>, vector<3x16xf32>
    %513 = vector.extract_strided_slice %388 {offsets = [0, 0], sizes = [1, 16], strides = [1, 1]} : vector<4x16xf32> to vector<1x16xf32>
    %514 = tpu.concatenate %512, %513 in 0 : vector<3x16xf32>, vector<1x16xf32> -> vector<4x16xf32>
    %c28 = arith.constant 28 : index
    %c0_442 = arith.constant 0 : index
    %515 = vector.load %arg5[%c28, %c0_442] : memref<32x16xf32, #tpu.memory_space<vmem>>, vector<3x16xf32>
    %516 = vector.extract_strided_slice %388 {offsets = [0, 0], sizes = [1, 16], strides = [1, 1]} : vector<4x16xf32> to vector<1x16xf32>
    %517 = tpu.concatenate %516, %515 in 0 : vector<1x16xf32>, vector<3x16xf32> -> vector<4x16xf32>
    %c28_443 = arith.constant 28 : index
    %c0_444 = arith.constant 0 : index
    %518 = vector.load %arg5[%c28_443, %c0_444] : memref<32x16xf32, #tpu.memory_space<vmem>>, vector<4x16xf32>
    %c29 = arith.constant 29 : index
    %c0_445 = arith.constant 0 : index
    %519 = vector.load %arg5[%c29, %c0_445] : memref<32x16xf32, #tpu.memory_space<vmem>>, vector<3x16xf32>
    %520 = vector.extract_strided_slice %388 {offsets = [0, 0], sizes = [1, 16], strides = [1, 1]} : vector<4x16xf32> to vector<1x16xf32>
    %521 = tpu.concatenate %519, %520 in 0 : vector<3x16xf32>, vector<1x16xf32> -> vector<4x16xf32>
    %522 = tpu.concatenate %503, %504, %507, %510, %511, %514, %517, %518, %521 in 1 : vector<4x16xf32>, vector<4x16xf32>, vector<4x16xf32>, vector<4x16xf32>, vector<4x16xf32>, vector<4x16xf32>, vector<4x16xf32>, vector<4x16xf32>, vector<4x16xf32> -> vector<4x144xf32>
    %c24_446 = arith.constant 24 : index
    %c0_447 = arith.constant 0 : index
    %523 = vector.load %arg5[%c24_446, %c0_447] : memref<32x16xf32, #tpu.memory_space<vmem>>, vector<3x16xf32>
    %524 = vector.extract_strided_slice %388 {offsets = [0, 0], sizes = [1, 16], strides = [1, 1]} : vector<4x16xf32> to vector<1x16xf32>
    %525 = tpu.concatenate %524, %523 in 0 : vector<1x16xf32>, vector<3x16xf32> -> vector<4x16xf32>
    %c24_448 = arith.constant 24 : index
    %c0_449 = arith.constant 0 : index
    %526 = vector.load %arg5[%c24_448, %c0_449] : memref<32x16xf32, #tpu.memory_space<vmem>>, vector<4x16xf32>
    %c25_450 = arith.constant 25 : index
    %c0_451 = arith.constant 0 : index
    %527 = vector.load %arg5[%c25_450, %c0_451] : memref<32x16xf32, #tpu.memory_space<vmem>>, vector<3x16xf32>
    %528 = vector.extract_strided_slice %388 {offsets = [0, 0], sizes = [1, 16], strides = [1, 1]} : vector<4x16xf32> to vector<1x16xf32>
    %529 = tpu.concatenate %527, %528 in 0 : vector<3x16xf32>, vector<1x16xf32> -> vector<4x16xf32>
    %c28_452 = arith.constant 28 : index
    %c0_453 = arith.constant 0 : index
    %530 = vector.load %arg5[%c28_452, %c0_453] : memref<32x16xf32, #tpu.memory_space<vmem>>, vector<3x16xf32>
    %531 = vector.extract_strided_slice %388 {offsets = [0, 0], sizes = [1, 16], strides = [1, 1]} : vector<4x16xf32> to vector<1x16xf32>
    %532 = tpu.concatenate %531, %530 in 0 : vector<1x16xf32>, vector<3x16xf32> -> vector<4x16xf32>
    %c28_454 = arith.constant 28 : index
    %c0_455 = arith.constant 0 : index
    %533 = vector.load %arg5[%c28_454, %c0_455] : memref<32x16xf32, #tpu.memory_space<vmem>>, vector<4x16xf32>
    %c29_456 = arith.constant 29 : index
    %c0_457 = arith.constant 0 : index
    %534 = vector.load %arg5[%c29_456, %c0_457] : memref<32x16xf32, #tpu.memory_space<vmem>>, vector<3x16xf32>
    %535 = vector.extract_strided_slice %388 {offsets = [0, 0], sizes = [1, 16], strides = [1, 1]} : vector<4x16xf32> to vector<1x16xf32>
    %536 = tpu.concatenate %534, %535 in 0 : vector<3x16xf32>, vector<1x16xf32> -> vector<4x16xf32>
    %537 = tpu.concatenate %525, %526, %529, %532, %533, %536, %388, %388, %388 in 1 : vector<4x16xf32>, vector<4x16xf32>, vector<4x16xf32>, vector<4x16xf32>, vector<4x16xf32>, vector<4x16xf32>, vector<4x16xf32>, vector<4x16xf32>, vector<4x16xf32> -> vector<4x144xf32>
    %538 = tpu.concatenate %478, %500, %522, %537 in 0 : vector<4x144xf32>, vector<4x144xf32>, vector<4x144xf32>, vector<4x144xf32> -> vector<16x144xf32>
    %539 = tpu.concatenate %463, %538 in 0 : vector<16x144xf32>, vector<16x144xf32> -> vector<32x144xf32>
    %c0_458 = arith.constant 0 : index
    %c24_459 = arith.constant 24 : index
    %540 = vector.load %arg1[%c0_458, %c24_459] : memref<144x66xf32, #tpu.memory_space<vmem>>, vector<144x32xf32>
    %c0_460 = arith.constant 0 : index
    %c24_461 = arith.constant 24 : index
    %541 = vector.load %arg2[%c0_460, %c24_461] : memref<1x66xf32, #tpu.memory_space<vmem>>, vector<1x32xf32>
    %cst_462 = arith.constant dense<0.000000e+00> : vector<32x32xf32>
    %542 = tpu.matmul %539, %540, %cst_462 {dimension_numbers = #tpu.dot_dimension_numbers<[1], [0], [0], [1], [0, 0, 1, 1], [], []>} : vector<32x144xf32>, vector<144x32xf32>, vector<32x32xf32> -> vector<32x32xf32>
    %543 = vector.broadcast %541 : vector<1x32xf32> to vector<32x32xf32>
    %544 = arith.addf %542, %543 : vector<32x32xf32>
    %cst_463 = arith.constant 0.000000e+00 : f32
    %545 = vector.broadcast %cst_463 : f32 to vector<32x32xf32>
    %546 = arith.maximumf %544, %545 : vector<32x32xf32>
    %547 = vector.extract_strided_slice %546 {offsets = [0, 0], sizes = [16, 32], strides = [1, 1]} : vector<32x32xf32> to vector<16x32xf32>
    %cst_464 = arith.constant dense<0.000000e+00> : vector<32xf32>
    %548 = vector.multi_reduction <add>, %547, %cst_464 [0] : vector<16x32xf32> to vector<32xf32>
    %549 = vector.shape_cast %548 : vector<32xf32> to vector<1x32xf32>
    %cst_465 = arith.constant 1.600000e+01 : f32
    %550 = vector.broadcast %cst_465 : f32 to vector<1x32xf32>
    %551 = arith.divf %549, %550 : vector<1x32xf32>
    %552 = vector.extract_strided_slice %546 {offsets = [16, 0], sizes = [16, 32], strides = [1, 1]} : vector<32x32xf32> to vector<16x32xf32>
    %cst_466 = arith.constant dense<0.000000e+00> : vector<32xf32>
    %553 = vector.multi_reduction <add>, %552, %cst_466 [0] : vector<16x32xf32> to vector<32xf32>
    %554 = vector.shape_cast %553 : vector<32xf32> to vector<1x32xf32>
    %cst_467 = arith.constant 1.600000e+01 : f32
    %555 = vector.broadcast %cst_467 : f32 to vector<1x32xf32>
    %556 = arith.divf %554, %555 : vector<1x32xf32>
    %557 = tpu.concatenate %551, %556 in 0 : vector<1x32xf32>, vector<1x32xf32> -> vector<2x32xf32>
    %c0_468 = arith.constant 0 : index
    %c56_469 = arith.constant 56 : index
    %558 = vector.load %arg1[%c0_468, %c56_469] : memref<144x66xf32, #tpu.memory_space<vmem>>, vector<32x10xf32>
    %c0_470 = arith.constant 0 : index
    %c56_471 = arith.constant 56 : index
    %559 = vector.load %arg2[%c0_470, %c56_471] : memref<1x66xf32, #tpu.memory_space<vmem>>, vector<1x10xf32>
    %cst_472 = arith.constant dense<0.000000e+00> : vector<2x10xf32>
    %560 = tpu.matmul %557, %558, %cst_472 {dimension_numbers = #tpu.dot_dimension_numbers<[1], [0], [0], [1], [0, 0, 1, 1], [], []>} : vector<2x32xf32>, vector<32x10xf32>, vector<2x10xf32> -> vector<2x10xf32>
    %561 = vector.broadcast %559 : vector<1x10xf32> to vector<2x10xf32>
    %562 = arith.addf %560, %561 : vector<2x10xf32>
    %c0_473 = arith.constant 0 : index
    %c0_474 = arith.constant 0 : index
    %563 = vector.load %arg3[%c0_473, %c0_474] : memref<2x10xf32, #tpu.memory_space<vmem>>, vector<2x10xf32>
    tpu.vector_store %arg3[%c0_473, %c0_474], %562 {strides = array<i32>} : memref<2x10xf32, #tpu.memory_space<vmem>>, vector<2x10xf32>,
    return
  }
}

</mosaic_0001>

<llo_original>
// kernel: cnnnet_forward.1
$region0: #{cnnnet_forward.1}
  #allocation0 [shape = 'u32[]', space=smem, size = 0x4, offset = 0x4, fixed_abs, tag = 'smem constant byte address 0x4 - core index']
  #allocation1 [shape = 'u32[144,128]{1,0:T(1,128)}', space=vmem, size = 0x12000, scoped, tag = 'internal scratch']
  #allocation2 [shape = 'f32[128,8]{1,0:T(8,128)}', space=vmem, size = 0x10000, scoped, tag = 'scratch operand']
  #allocation3 [shape = 'f32[32,16]{1,0:T(8,128)}', space=vmem, size = 0x4000, scoped, tag = 'scratch operand']
  %s0 = inlined_call_operand.vmem [shape: f32[512,4], index: 0, kind: input, shape index: {}]
  %s1 = inlined_call_operand.vmem [shape: f32[144,66], index: 1, kind: input, shape index: {}]
  %s2 = inlined_call_operand.vmem [shape: f32[1,66], index: 2, kind: input, shape index: {}]
  %s3 = inlined_call_operand.hbm [shape: f32[2,10], index: 3, kind: output, shape index: {}]
  %s4 = sld [smem:[#allocation0]]
  $region22: #{cnnnet_forward.1} parent=0
    _
  %s6 = ssub.s32 1, %s4
  %s7 = scalar_select 0, %s6, %s4
  $region1: #{cnnnet_forward.1} parent=0
    #allocation4 [shape = 'u8[1024]{0}', space=vmem, size = 0x400, scoped, tag = 'output window, operand 0, single buffered']
    #allocation5 [shape = 's32[1]{0}', space=sflag, size = 0x4, scoped, tag = 'scoped memory for cnnnet_forward.1']
    %8 = vsyncpa [#allocation5], 0
    // Predicated region
    $region2: #{cnnnet_forward.1} parent=1 // pred_check
      _
    $region3: #{cnnnet_forward.1} parent=1 // pred_check_branch
      %10 = sbr.rel (0) target = $region5
    $region4: #{cnnnet_forward.1} parent=1 // pred_region
      _
    $region5: #{cnnnet_forward.1} parent=1 // pred_fallthru
      _
    // Predicated region
    $region6: #{cnnnet_forward.1} parent=1 // pred_check
      _
    $region7: #{cnnnet_forward.1} parent=1 // pred_check_branch
      %12 = sbr.rel (0) target = $region9
    $region8: #{cnnnet_forward.1} parent=1 // pred_region
      _
    $region9: #{cnnnet_forward.1} parent=1 // pred_fallthru
      _
    // Predicated region
    $region10: #{cnnnet_forward.1} parent=1 // pred_check
      _
    $region11: #{cnnnet_forward.1} parent=1 // pred_check_branch
      %14 = sbr.rel (0) target = $region13
    $region12: #{cnnnet_forward.1} parent=1 // pred_region
      _
    $region13: #{cnnnet_forward.1} parent=1 // pred_fallthru
      _
    %s15 = scalar_lea.vmem %s0, 1
    %v16 = vld [vmem:[%s15] ss:$2 sm:$0x7f]
    %v18 = vrot.slane %v16, 7
    %vm20 = vcmask 1040384
    %v21 = vsel %vm20, 0.0, %v18
    %v22 = vld [vmem:[%s0] ss:$2 sm:$0xff]
    %v23 = vld [vmem:[%s15] ss:$2 sm:$0xff]
    %s24 = scalar_lea.vmem %s0, 17
    %v25 = vld [vmem:[%s24] ss:$2 sm:$0x7f]
    %v27 = vrot.slane %v25, 7
    %v29 = vsel %vm20, 0.0, %v27
    %s30 = scalar_lea.vmem %s0, 16
    %v31 = vld [vmem:[%s30] ss:$2 sm:$0xff]
    %v32 = vld [vmem:[%s24] ss:$2 sm:$0xff]
    %34 = vrot.lane.b32.xlu0 %v21, 12
    %v35 = vpop.permute.xlu0 %34
    %38 = vrot.lane.b32.xlu0 %v22, 16
    %v39 = vpop.permute.xlu0 %38
    %42 = vrot.lane.b32.xlu0 %v23, 20
    %v43 = vpop.permute.xlu0 %42
    %46 = vrot.lane.b32.xlu0 %v29, 24
    %v47 = vpop.permute.xlu0 %46
    %50 = vrot.lane.b32.xlu0 %v31, 28
    %v51 = vpop.permute.xlu0 %50
    %54 = vrot.lane.b32.xlu0 %v32, 32
    %v55 = vpop.permute.xlu0 %54
    %vm57 = vcmask 97280
    %v58 = vsel %vm57, 0.0, %v35
    %vm59 = vcmask 130048
    %v60 = vsel %vm59, %v58, %v39
    %vm61 = vcmask 162816
    %v62 = vsel %vm61, %v60, %v43
    %vm63 = vcmask 195584
    %v64 = vsel %vm63, %v62, %v47
    %vm65 = vcmask 228352
    %v66 = vsel %vm65, %v64, %v51
    %vm67 = vcmask 261120
    %v68 = vsel %vm67, %v66, %v55
    %s69 = scalar_lea.vmem %s0, 33
    %v70 = vld [vmem:[%s69] ss:$2 sm:$0x7f]
    %v72 = vrot.slane %v70, 7
    %v74 = vsel %vm20, 0.0, %v72
    %s75 = scalar_lea.vmem %s0, 32
    %v76 = vld [vmem:[%s75] ss:$2 sm:$0xff]
    %v77 = vld [vmem:[%s69] ss:$2 sm:$0xff]
    %s78 = scalar_lea.vmem %s0, 49
    %v79 = vld [vmem:[%s78] ss:$2 sm:$0x7f]
    %v81 = vrot.slane %v79, 7
    %v83 = vsel %vm20, 0.0, %v81
    %s84 = scalar_lea.vmem %s0, 48
    %v85 = vld [vmem:[%s84] ss:$2 sm:$0xff]
    %v86 = vld [vmem:[%s78] ss:$2 sm:$0xff]
    %87 = vrot.lane.b32.xlu0 %v31, 4
    %v88 = vpop.permute.xlu0 %87
    %90 = vrot.lane.b32.xlu0 %v32, 8
    %v91 = vpop.permute.xlu0 %90
    %94 = vrot.lane.b32.xlu0 %v74, 12
    %v95 = vpop.permute.xlu0 %94
    %98 = vrot.lane.b32.xlu0 %v76, 16
    %v99 = vpop.permute.xlu0 %98
    %102 = vrot.lane.b32.xlu0 %v77, 20
    %v103 = vpop.permute.xlu0 %102
    %106 = vrot.lane.b32.xlu0 %v83, 24
    %v107 = vpop.permute.xlu0 %106
    %110 = vrot.lane.b32.xlu0 %v85, 28
    %v111 = vpop.permute.xlu0 %110
    %114 = vrot.lane.b32.xlu0 %v86, 32
    %v115 = vpop.permute.xlu0 %114
    %vm117 = vcmask 31744
    %v118 = vsel %vm117, %v29, %v88
    %vm119 = vcmask 64512
    %v120 = vsel %vm119, %v118, %v91
    %v121 = vsel %vm57, %v120, %v95
    %v122 = vsel %vm59, %v121, %v99
    %v123 = vsel %vm61, %v122, %v103
    %v124 = vsel %vm63, %v123, %v107
    %v125 = vsel %vm65, %v124, %v111
    %v126 = vsel %vm67, %v125, %v115
    %s127 = scalar_lea.vmem %s0, 65
    %v128 = vld [vmem:[%s127] ss:$2 sm:$0x7f]
    %v130 = vrot.slane %v128, 7
    %v132 = vsel %vm20, 0.0, %v130
    %s133 = scalar_lea.vmem %s0, 64
    %v134 = vld [vmem:[%s133] ss:$2 sm:$0xff]
    %v135 = vld [vmem:[%s127] ss:$2 sm:$0xff]
    %s136 = scalar_lea.vmem %s0, 81
    %v137 = vld [vmem:[%s136] ss:$2 sm:$0x7f]
    %v139 = vrot.slane %v137, 7
    %v141 = vsel %vm20, 0.0, %v139
    %s142 = scalar_lea.vmem %s0, 80
    %v143 = vld [vmem:[%s142] ss:$2 sm:$0xff]
    %v144 = vld [vmem:[%s136] ss:$2 sm:$0xff]
    %145 = vrot.lane.b32.xlu0 %v85, 4
    %v146 = vpop.permute.xlu0 %145
    %148 = vrot.lane.b32.xlu0 %v86, 8
    %v149 = vpop.permute.xlu0 %148
    %152 = vrot.lane.b32.xlu0 %v132, 12
    %v153 = vpop.permute.xlu0 %152
    %156 = vrot.lane.b32.xlu0 %v134, 16
    %v157 = vpop.permute.xlu0 %156
    %160 = vrot.lane.b32.xlu0 %v135, 20
    %v161 = vpop.permute.xlu0 %160
    %164 = vrot.lane.b32.xlu0 %v141, 24
    %v165 = vpop.permute.xlu0 %164
    %168 = vrot.lane.b32.xlu0 %v143, 28
    %v169 = vpop.permute.xlu0 %168
    %172 = vrot.lane.b32.xlu0 %v144, 32
    %v173 = vpop.permute.xlu0 %172
    %v175 = vsel %vm117, %v83, %v146
    %v176 = vsel %vm119, %v175, %v149
    %v177 = vsel %vm57, %v176, %v153
    %v178 = vsel %vm59, %v177, %v157
    %v179 = vsel %vm61, %v178, %v161
    %v180 = vsel %vm63, %v179, %v165
    %v181 = vsel %vm65, %v180, %v169
    %v182 = vsel %vm67, %v181, %v173
    %s183 = scalar_lea.vmem %s0, 97
    %v184 = vld [vmem:[%s183] ss:$2 sm:$0x7f]
    %v186 = vrot.slane %v184, 7
    %v188 = vsel %vm20, 0.0, %v186
    %s189 = scalar_lea.vmem %s0, 96
    %v190 = vld [vmem:[%s189] ss:$2 sm:$0xff]
    %v191 = vld [vmem:[%s183] ss:$2 sm:$0xff]
    %s192 = scalar_lea.vmem %s0, 113
    %v193 = vld [vmem:[%s192] ss:$2 sm:$0x7f]
    %v195 = vrot.slane %v193, 7
    %v197 = vsel %vm20, 0.0, %v195
    %s198 = scalar_lea.vmem %s0, 112
    %v199 = vld [vmem:[%s198] ss:$2 sm:$0xff]
    %v200 = vld [vmem:[%s192] ss:$2 sm:$0xff]
    %201 = vrot.lane.b32.xlu0 %v143, 4
    %v202 = vpop.permute.xlu0 %201
    %204 = vrot.lane.b32.xlu0 %v144, 8
    %v205 = vpop.permute.xlu0 %204
    %208 = vrot.lane.b32.xlu0 %v188, 12
    %v209 = vpop.permute.xlu0 %208
    %212 = vrot.lane.b32.xlu0 %v190, 16
    %v213 = vpop.permute.xlu0 %212
    %216 = vrot.lane.b32.xlu0 %v191, 20
    %v217 = vpop.permute.xlu0 %216
    %220 = vrot.lane.b32.xlu0 %v197, 24
    %v221 = vpop.permute.xlu0 %220
    %224 = vrot.lane.b32.xlu0 %v199, 28
    %v225 = vpop.permute.xlu0 %224
    %228 = vrot.lane.b32.xlu0 %v200, 32
    %v229 = vpop.permute.xlu0 %228
    %v231 = vsel %vm117, %v141, %v202
    %v232 = vsel %vm119, %v231, %v205
    %v233 = vsel %vm57, %v232, %v209
    %v234 = vsel %vm59, %v233, %v213
    %v235 = vsel %vm61, %v234, %v217
    %v236 = vsel %vm63, %v235, %v221
    %v237 = vsel %vm65, %v236, %v225
    %v238 = vsel %vm67, %v237, %v229
    %s239 = scalar_lea.vmem %s0, 129
    %v240 = vld [vmem:[%s239] ss:$2 sm:$0x7f]
    %v242 = vrot.slane %v240, 7
    %v244 = vsel %vm20, 0.0, %v242
    %s245 = scalar_lea.vmem %s0, 128
    %v246 = vld [vmem:[%s245] ss:$2 sm:$0xff]
    %v247 = vld [vmem:[%s239] ss:$2 sm:$0xff]
    %s248 = scalar_lea.vmem %s0, 145
    %v249 = vld [vmem:[%s248] ss:$2 sm:$0x7f]
    %v251 = vrot.slane %v249, 7
    %v253 = vsel %vm20, 0.0, %v251
    %s254 = scalar_lea.vmem %s0, 144
    %v255 = vld [vmem:[%s254] ss:$2 sm:$0xff]
    %v256 = vld [vmem:[%s248] ss:$2 sm:$0xff]
    %257 = vrot.lane.b32.xlu0 %v199, 4
    %v258 = vpop.permute.xlu0 %257
    %260 = vrot.lane.b32.xlu0 %v200, 8
    %v261 = vpop.permute.xlu0 %260
    %264 = vrot.lane.b32.xlu0 %v244, 12
    %v265 = vpop.permute.xlu0 %264
    %268 = vrot.lane.b32.xlu0 %v246, 16
    %v269 = vpop.permute.xlu0 %268
    %272 = vrot.lane.b32.xlu0 %v247, 20
    %v273 = vpop.permute.xlu0 %272
    %276 = vrot.lane.b32.xlu0 %v253, 24
    %v277 = vpop.permute.xlu0 %276
    %280 = vrot.lane.b32.xlu0 %v255, 28
    %v281 = vpop.permute.xlu0 %280
    %284 = vrot.lane.b32.xlu0 %v256, 32
    %v285 = vpop.permute.xlu0 %284
    %v287 = vsel %vm117, %v197, %v258
    %v288 = vsel %vm119, %v287, %v261
    %v289 = vsel %vm57, %v288, %v265
    %v290 = vsel %vm59, %v289, %v269
    %v291 = vsel %vm61, %v290, %v273
    %v292 = vsel %vm63, %v291, %v277
    %v293 = vsel %vm65, %v292, %v281
    %v294 = vsel %vm67, %v293, %v285
    %s295 = scalar_lea.vmem %s0, 161
    %v296 = vld [vmem:[%s295] ss:$2 sm:$0x7f]
    %v298 = vrot.slane %v296, 7
    %v300 = vsel %vm20, 0.0, %v298
    %s301 = scalar_lea.vmem %s0, 160
    %v302 = vld [vmem:[%s301] ss:$2 sm:$0xff]
    %v303 = vld [vmem:[%s295] ss:$2 sm:$0xff]
    %s304 = scalar_lea.vmem %s0, 177
    %v305 = vld [vmem:[%s304] ss:$2 sm:$0x7f]
    %v307 = vrot.slane %v305, 7
    %v309 = vsel %vm20, 0.0, %v307
    %s310 = scalar_lea.vmem %s0, 176
    %v311 = vld [vmem:[%s310] ss:$2 sm:$0xff]
    %v312 = vld [vmem:[%s304] ss:$2 sm:$0xff]
    %313 = vrot.lane.b32.xlu0 %v255, 4
    %v314 = vpop.permute.xlu0 %313
    %316 = vrot.lane.b32.xlu0 %v256, 8
    %v317 = vpop.permute.xlu0 %316
    %320 = vrot.lane.b32.xlu0 %v300, 12
    %v321 = vpop.permute.xlu0 %320
    %324 = vrot.lane.b32.xlu0 %v302, 16
    %v325 = vpop.permute.xlu0 %324
    %328 = vrot.lane.b32.xlu0 %v303, 20
    %v329 = vpop.permute.xlu0 %328
    %332 = vrot.lane.b32.xlu0 %v309, 24
    %v333 = vpop.permute.xlu0 %332
    %336 = vrot.lane.b32.xlu0 %v311, 28
    %v337 = vpop.permute.xlu0 %336
    %340 = vrot.lane.b32.xlu0 %v312, 32
    %v341 = vpop.permute.xlu0 %340
    %v343 = vsel %vm117, %v253, %v314
    %v344 = vsel %vm119, %v343, %v317
    %v345 = vsel %vm57, %v344, %v321
    %v346 = vsel %vm59, %v345, %v325
    %v347 = vsel %vm61, %v346, %v329
    %v348 = vsel %vm63, %v347, %v333
    %v349 = vsel %vm65, %v348, %v337
    %v350 = vsel %vm67, %v349, %v341
    %s351 = scalar_lea.vmem %s0, 193
    %v352 = vld [vmem:[%s351] ss:$2 sm:$0x7f]
    %v354 = vrot.slane %v352, 7
    %v356 = vsel %vm20, 0.0, %v354
    %s357 = scalar_lea.vmem %s0, 192
    %v358 = vld [vmem:[%s357] ss:$2 sm:$0xff]
    %v359 = vld [vmem:[%s351] ss:$2 sm:$0xff]
    %s360 = scalar_lea.vmem %s0, 209
    %v361 = vld [vmem:[%s360] ss:$2 sm:$0x7f]
    %v363 = vrot.slane %v361, 7
    %v365 = vsel %vm20, 0.0, %v363
    %s366 = scalar_lea.vmem %s0, 208
    %v367 = vld [vmem:[%s366] ss:$2 sm:$0xff]
    %v368 = vld [vmem:[%s360] ss:$2 sm:$0xff]
    %369 = vrot.lane.b32.xlu0 %v311, 4
    %v370 = vpop.permute.xlu0 %369
    %372 = vrot.lane.b32.xlu0 %v312, 8
    %v373 = vpop.permute.xlu0 %372
    %376 = vrot.lane.b32.xlu0 %v356, 12
    %v377 = vpop.permute.xlu0 %376
    %380 = vrot.lane.b32.xlu0 %v358, 16
    %v381 = vpop.permute.xlu0 %380
    %384 = vrot.lane.b32.xlu0 %v359, 20
    %v385 = vpop.permute.xlu0 %384
    %388 = vrot.lane.b32.xlu0 %v365, 24
    %v389 = vpop.permute.xlu0 %388
    %392 = vrot.lane.b32.xlu0 %v367, 28
    %v393 = vpop.permute.xlu0 %392
    %396 = vrot.lane.b32.xlu0 %v368, 32
    %v397 = vpop.permute.xlu0 %396
    %v399 = vsel %vm117, %v309, %v370
    %v400 = vsel %vm119, %v399, %v373
    %v401 = vsel %vm57, %v400, %v377
    %v402 = vsel %vm59, %v401, %v381
    %v403 = vsel %vm61, %v402, %v385
    %v404 = vsel %vm63, %v403, %v389
    %v405 = vsel %vm65, %v404, %v393
    %v406 = vsel %vm67, %v405, %v397
    %s407 = scalar_lea.vmem %s0, 225
    %v408 = vld [vmem:[%s407] ss:$2 sm:$0x7f]
    %v410 = vrot.slane %v408, 7
    %v412 = vsel %vm20, 0.0, %v410
    %s413 = scalar_lea.vmem %s0, 224
    %v414 = vld [vmem:[%s413] ss:$2 sm:$0xff]
    %v415 = vld [vmem:[%s407] ss:$2 sm:$0xff]
    %s416 = scalar_lea.vmem %s0, 241
    %v417 = vld [vmem:[%s416] ss:$2 sm:$0x7f]
    %v419 = vrot.slane %v417, 7
    %v421 = vsel %vm20, 0.0, %v419
    %s422 = scalar_lea.vmem %s0, 240
    %v423 = vld [vmem:[%s422] ss:$2 sm:$0xff]
    %v424 = vld [vmem:[%s416] ss:$2 sm:$0xff]
    %425 = vrot.lane.b32.xlu0 %v367, 4
    %v426 = vpop.permute.xlu0 %425
    %428 = vrot.lane.b32.xlu0 %v368, 8
    %v429 = vpop.permute.xlu0 %428
    %432 = vrot.lane.b32.xlu0 %v412, 12
    %v433 = vpop.permute.xlu0 %432
    %436 = vrot.lane.b32.xlu0 %v414, 16
    %v437 = vpop.permute.xlu0 %436
    %440 = vrot.lane.b32.xlu0 %v415, 20
    %v441 = vpop.permute.xlu0 %440
    %444 = vrot.lane.b32.xlu0 %v421, 24
    %v445 = vpop.permute.xlu0 %444
    %448 = vrot.lane.b32.xlu0 %v423, 28
    %v449 = vpop.permute.xlu0 %448
    %452 = vrot.lane.b32.xlu0 %v424, 32
    %v453 = vpop.permute.xlu0 %452
    %v455 = vsel %vm117, %v365, %v426
    %v456 = vsel %vm119, %v455, %v429
    %v457 = vsel %vm57, %v456, %v433
    %v458 = vsel %vm59, %v457, %v437
    %v459 = vsel %vm61, %v458, %v441
    %v460 = vsel %vm63, %v459, %v445
    %v461 = vsel %vm65, %v460, %v449
    %v462 = vsel %vm67, %v461, %v453
    %s463 = scalar_lea.vmem %s0, 257
    %v464 = vld [vmem:[%s463] ss:$2 sm:$0x7f]
    %v466 = vrot.slane %v464, 7
    %v468 = vsel %vm20, 0.0, %v466
    %s469 = scalar_lea.vmem %s0, 256
    %v470 = vld [vmem:[%s469] ss:$2 sm:$0xff]
    %v471 = vld [vmem:[%s463] ss:$2 sm:$0xff]
    %s472 = scalar_lea.vmem %s0, 273
    %v473 = vld [vmem:[%s472] ss:$2 sm:$0x7f]
    %v475 = vrot.slane %v473, 7
    %v477 = vsel %vm20, 0.0, %v475
    %s478 = scalar_lea.vmem %s0, 272
    %v479 = vld [vmem:[%s478] ss:$2 sm:$0xff]
    %v480 = vld [vmem:[%s472] ss:$2 sm:$0xff]
    %482 = vrot.lane.b32.xlu0 %v468, 12
    %v483 = vpop.permute.xlu0 %482
    %486 = vrot.lane.b32.xlu0 %v470, 16
    %v487 = vpop.permute.xlu0 %486
    %490 = vrot.lane.b32.xlu0 %v471, 20
    %v491 = vpop.permute.xlu0 %490
    %494 = vrot.lane.b32.xlu0 %v477, 24
    %v495 = vpop.permute.xlu0 %494
    %498 = vrot.lane.b32.xlu0 %v479, 28
    %v499 = vpop.permute.xlu0 %498
    %502 = vrot.lane.b32.xlu0 %v480, 32
    %v503 = vpop.permute.xlu0 %502
    %v505 = vsel %vm57, 0.0, %v483
    %v506 = vsel %vm59, %v505, %v487
    %v507 = vsel %vm61, %v506, %v491
    %v508 = vsel %vm63, %v507, %v495
    %v509 = vsel %vm65, %v508, %v499
    %v510 = vsel %vm67, %v509, %v503
    %s511 = scalar_lea.vmem %s0, 289
    %v512 = vld [vmem:[%s511] ss:$2 sm:$0x7f]
    %v514 = vrot.slane %v512, 7
    %v516 = vsel %vm20, 0.0, %v514
    %s517 = scalar_lea.vmem %s0, 288
    %v518 = vld [vmem:[%s517] ss:$2 sm:$0xff]
    %v519 = vld [vmem:[%s511] ss:$2 sm:$0xff]
    %s520 = scalar_lea.vmem %s0, 305
    %v521 = vld [vmem:[%s520] ss:$2 sm:$0x7f]
    %v523 = vrot.slane %v521, 7
    %v525 = vsel %vm20, 0.0, %v523
    %s526 = scalar_lea.vmem %s0, 304
    %v527 = vld [vmem:[%s526] ss:$2 sm:$0xff]
    %v528 = vld [vmem:[%s520] ss:$2 sm:$0xff]
    %529 = vrot.lane.b32.xlu0 %v479, 4
    %v530 = vpop.permute.xlu0 %529
    %532 = vrot.lane.b32.xlu0 %v480, 8
    %v533 = vpop.permute.xlu0 %532
    %536 = vrot.lane.b32.xlu0 %v516, 12
    %v537 = vpop.permute.xlu0 %536
    %540 = vrot.lane.b32.xlu0 %v518, 16
    %v541 = vpop.permute.xlu0 %540
    %544 = vrot.lane.b32.xlu0 %v519, 20
    %v545 = vpop.permute.xlu0 %544
    %548 = vrot.lane.b32.xlu0 %v525, 24
    %v549 = vpop.permute.xlu0 %548
    %552 = vrot.lane.b32.xlu0 %v527, 28
    %v553 = vpop.permute.xlu0 %552
    %556 = vrot.lane.b32.xlu0 %v528, 32
    %v557 = vpop.permute.xlu0 %556
    %v559 = vsel %vm117, %v477, %v530
    %v560 = vsel %vm119, %v559, %v533
    %v561 = vsel %vm57, %v560, %v537
    %v562 = vsel %vm59, %v561, %v541
    %v563 = vsel %vm61, %v562, %v545
    %v564 = vsel %vm63, %v563, %v549
    %v565 = vsel %vm65, %v564, %v553
    %v566 = vsel %vm67, %v565, %v557
    %s567 = scalar_lea.vmem %s0, 321
    %v568 = vld [vmem:[%s567] ss:$2 sm:$0x7f]
    %v570 = vrot.slane %v568, 7
    %v572 = vsel %vm20, 0.0, %v570
    %s573 = scalar_lea.vmem %s0, 320
    %v574 = vld [vmem:[%s573] ss:$2 sm:$0xff]
    %v575 = vld [vmem:[%s567] ss:$2 sm:$0xff]
    %s576 = scalar_lea.vmem %s0, 337
    %v577 = vld [vmem:[%s576] ss:$2 sm:$0x7f]
    %v579 = vrot.slane %v577, 7
    %v581 = vsel %vm20, 0.0, %v579
    %s582 = scalar_lea.vmem %s0, 336
    %v583 = vld [vmem:[%s582] ss:$2 sm:$0xff]
    %v584 = vld [vmem:[%s576] ss:$2 sm:$0xff]
    %585 = vrot.lane.b32.xlu0 %v527, 4
    %v586 = vpop.permute.xlu0 %585
    %588 = vrot.lane.b32.xlu0 %v528, 8
    %v589 = vpop.permute.xlu0 %588
    %592 = vrot.lane.b32.xlu0 %v572, 12
    %v593 = vpop.permute.xlu0 %592
    %596 = vrot.lane.b32.xlu0 %v574, 16
    %v597 = vpop.permute.xlu0 %596
    %600 = vrot.lane.b32.xlu0 %v575, 20
    %v601 = vpop.permute.xlu0 %600
    %604 = vrot.lane.b32.xlu0 %v581, 24
    %v605 = vpop.permute.xlu0 %604
    %608 = vrot.lane.b32.xlu0 %v583, 28
    %v609 = vpop.permute.xlu0 %608
    %612 = vrot.lane.b32.xlu0 %v584, 32
    %v613 = vpop.permute.xlu0 %612
    %v615 = vsel %vm117, %v525, %v586
    %v616 = vsel %vm119, %v615, %v589
    %v617 = vsel %vm57, %v616, %v593
    %v618 = vsel %vm59, %v617, %v597
    %v619 = vsel %vm61, %v618, %v601
    %v620 = vsel %vm63, %v619, %v605
    %v621 = vsel %vm65, %v620, %v609
    %v622 = vsel %vm67, %v621, %v613
    %s623 = scalar_lea.vmem %s0, 353
    %v624 = vld [vmem:[%s623] ss:$2 sm:$0x7f]
    %v626 = vrot.slane %v624, 7
    %v628 = vsel %vm20, 0.0, %v626
    %s629 = scalar_lea.vmem %s0, 352
    %v630 = vld [vmem:[%s629] ss:$2 sm:$0xff]
    %v631 = vld [vmem:[%s623] ss:$2 sm:$0xff]
    %s632 = scalar_lea.vmem %s0, 369
    %v633 = vld [vmem:[%s632] ss:$2 sm:$0x7f]
    %v635 = vrot.slane %v633, 7
    %v637 = vsel %vm20, 0.0, %v635
    %s638 = scalar_lea.vmem %s0, 368
    %v639 = vld [vmem:[%s638] ss:$2 sm:$0xff]
    %v640 = vld [vmem:[%s632] ss:$2 sm:$0xff]
    %641 = vrot.lane.b32.xlu0 %v583, 4
    %v642 = vpop.permute.xlu0 %641
    %644 = vrot.lane.b32.xlu0 %v584, 8
    %v645 = vpop.permute.xlu0 %644
    %648 = vrot.lane.b32.xlu0 %v628, 12
    %v649 = vpop.permute.xlu0 %648
    %652 = vrot.lane.b32.xlu0 %v630, 16
    %v653 = vpop.permute.xlu0 %652
    %656 = vrot.lane.b32.xlu0 %v631, 20
    %v657 = vpop.permute.xlu0 %656
    %660 = vrot.lane.b32.xlu0 %v637, 24
    %v661 = vpop.permute.xlu0 %660
    %664 = vrot.lane.b32.xlu0 %v639, 28
    %v665 = vpop.permute.xlu0 %664
    %668 = vrot.lane.b32.xlu0 %v640, 32
    %v669 = vpop.permute.xlu0 %668
    %v671 = vsel %vm117, %v581, %v642
    %v672 = vsel %vm119, %v671, %v645
    %v673 = vsel %vm57, %v672, %v649
    %v674 = vsel %vm59, %v673, %v653
    %v675 = vsel %vm61, %v674, %v657
    %v676 = vsel %vm63, %v675, %v661
    %v677 = vsel %vm65, %v676, %v665
    %v678 = vsel %vm67, %v677, %v669
    %s679 = scalar_lea.vmem %s0, 385
    %v680 = vld [vmem:[%s679] ss:$2 sm:$0x7f]
    %v682 = vrot.slane %v680, 7
    %v684 = vsel %vm20, 0.0, %v682
    %s685 = scalar_lea.vmem %s0, 384
    %v686 = vld [vmem:[%s685] ss:$2 sm:$0xff]
    %v687 = vld [vmem:[%s679] ss:$2 sm:$0xff]
    %s688 = scalar_lea.vmem %s0, 401
    %v689 = vld [vmem:[%s688] ss:$2 sm:$0x7f]
    %v691 = vrot.slane %v689, 7
    %v693 = vsel %vm20, 0.0, %v691
    %s694 = scalar_lea.vmem %s0, 400
    %v695 = vld [vmem:[%s694] ss:$2 sm:$0xff]
    %v696 = vld [vmem:[%s688] ss:$2 sm:$0xff]
    %697 = vrot.lane.b32.xlu0 %v639, 4
    %v698 = vpop.permute.xlu0 %697
    %700 = vrot.lane.b32.xlu0 %v640, 8
    %v701 = vpop.permute.xlu0 %700
    %704 = vrot.lane.b32.xlu0 %v684, 12
    %v705 = vpop.permute.xlu0 %704
    %708 = vrot.lane.b32.xlu0 %v686, 16
    %v709 = vpop.permute.xlu0 %708
    %712 = vrot.lane.b32.xlu0 %v687, 20
    %v713 = vpop.permute.xlu0 %712
    %716 = vrot.lane.b32.xlu0 %v693, 24
    %v717 = vpop.permute.xlu0 %716
    %720 = vrot.lane.b32.xlu0 %v695, 28
    %v721 = vpop.permute.xlu0 %720
    %724 = vrot.lane.b32.xlu0 %v696, 32
    %v725 = vpop.permute.xlu0 %724
    %v727 = vsel %vm117, %v637, %v698
    %v728 = vsel %vm119, %v727, %v701
    %v729 = vsel %vm57, %v728, %v705
    %v730 = vsel %vm59, %v729, %v709
    %v731 = vsel %vm61, %v730, %v713
    %v732 = vsel %vm63, %v731, %v717
    %v733 = vsel %vm65, %v732, %v721
    %v734 = vsel %vm67, %v733, %v725
    %s735 = scalar_lea.vmem %s0, 417
    %v736 = vld [vmem:[%s735] ss:$2 sm:$0x7f]
    %v738 = vrot.slane %v736, 7
    %v740 = vsel %vm20, 0.0, %v738
    %s741 = scalar_lea.vmem %s0, 416
    %v742 = vld [vmem:[%s741] ss:$2 sm:$0xff]
    %v743 = vld [vmem:[%s735] ss:$2 sm:$0xff]
    %s744 = scalar_lea.vmem %s0, 433
    %v745 = vld [vmem:[%s744] ss:$2 sm:$0x7f]
    %v747 = vrot.slane %v745, 7
    %v749 = vsel %vm20, 0.0, %v747
    %s750 = scalar_lea.vmem %s0, 432
    %v751 = vld [vmem:[%s750] ss:$2 sm:$0xff]
    %v752 = vld [vmem:[%s744] ss:$2 sm:$0xff]
    %753 = vrot.lane.b32.xlu0 %v695, 4
    %v754 = vpop.permute.xlu0 %753
    %756 = vrot.lane.b32.xlu0 %v696, 8
    %v757 = vpop.permute.xlu0 %756
    %760 = vrot.lane.b32.xlu0 %v740, 12
    %v761 = vpop.permute.xlu0 %760
    %764 = vrot.lane.b32.xlu0 %v742, 16
    %v765 = vpop.permute.xlu0 %764
    %768 = vrot.lane.b32.xlu0 %v743, 20
    %v769 = vpop.permute.xlu0 %768
    %772 = vrot.lane.b32.xlu0 %v749, 24
    %v773 = vpop.permute.xlu0 %772
    %776 = vrot.lane.b32.xlu0 %v751, 28
    %v777 = vpop.permute.xlu0 %776
    %780 = vrot.lane.b32.xlu0 %v752, 32
    %v781 = vpop.permute.xlu0 %780
    %v783 = vsel %vm117, %v693, %v754
    %v784 = vsel %vm119, %v783, %v757
    %v785 = vsel %vm57, %v784, %v761
    %v786 = vsel %vm59, %v785, %v765
    %v787 = vsel %vm61, %v786, %v769
    %v788 = vsel %vm63, %v787, %v773
    %v789 = vsel %vm65, %v788, %v777
    %v790 = vsel %vm67, %v789, %v781
    %s791 = scalar_lea.vmem %s0, 449
    %v792 = vld [vmem:[%s791] ss:$2 sm:$0x7f]
    %v794 = vrot.slane %v792, 7
    %v796 = vsel %vm20, 0.0, %v794
    %s797 = scalar_lea.vmem %s0, 448
    %v798 = vld [vmem:[%s797] ss:$2 sm:$0xff]
    %v799 = vld [vmem:[%s791] ss:$2 sm:$0xff]
    %s800 = scalar_lea.vmem %s0, 465
    %v801 = vld [vmem:[%s800] ss:$2 sm:$0x7f]
    %v803 = vrot.slane %v801, 7
    %v805 = vsel %vm20, 0.0, %v803
    %s806 = scalar_lea.vmem %s0, 464
    %v807 = vld [vmem:[%s806] ss:$2 sm:$0xff]
    %v808 = vld [vmem:[%s800] ss:$2 sm:$0xff]
    %809 = vrot.lane.b32.xlu0 %v751, 4
    %v810 = vpop.permute.xlu0 %809
    %812 = vrot.lane.b32.xlu0 %v752, 8
    %v813 = vpop.permute.xlu0 %812
    %816 = vrot.lane.b32.xlu0 %v796, 12
    %v817 = vpop.permute.xlu0 %816
    %820 = vrot.lane.b32.xlu0 %v798, 16
    %v821 = vpop.permute.xlu0 %820
    %824 = vrot.lane.b32.xlu0 %v799, 20
    %v825 = vpop.permute.xlu0 %824
    %828 = vrot.lane.b32.xlu0 %v805, 24
    %v829 = vpop.permute.xlu0 %828
    %832 = vrot.lane.b32.xlu0 %v807, 28
    %v833 = vpop.permute.xlu0 %832
    %836 = vrot.lane.b32.xlu0 %v808, 32
    %v837 = vpop.permute.xlu0 %836
    %v839 = vsel %vm117, %v749, %v810
    %v840 = vsel %vm119, %v839, %v813
    %v841 = vsel %vm57, %v840, %v817
    %v842 = vsel %vm59, %v841, %v821
    %v843 = vsel %vm61, %v842, %v825
    %v844 = vsel %vm63, %v843, %v829
    %v845 = vsel %vm65, %v844, %v833
    %v846 = vsel %vm67, %v845, %v837
    %s847 = scalar_lea.vmem %s0, 481
    %v848 = vld [vmem:[%s847] ss:$2 sm:$0x7f]
    %v850 = vrot.slane %v848, 7
    %v852 = vsel %vm20, 0.0, %v850
    %s853 = scalar_lea.vmem %s0, 480
    %v854 = vld [vmem:[%s853] ss:$2 sm:$0xff]
    %v855 = vld [vmem:[%s847] ss:$2 sm:$0xff]
    %s856 = scalar_lea.vmem %s0, 497
    %v857 = vld [vmem:[%s856] ss:$2 sm:$0x7f]
    %v859 = vrot.slane %v857, 7
    %v861 = vsel %vm20, 0.0, %v859
    %s862 = scalar_lea.vmem %s0, 496
    %v863 = vld [vmem:[%s862] ss:$2 sm:$0xff]
    %v864 = vld [vmem:[%s856] ss:$2 sm:$0xff]
    %865 = vrot.lane.b32.xlu0 %v807, 4
    %v866 = vpop.permute.xlu0 %865
    %868 = vrot.lane.b32.xlu0 %v808, 8
    %v869 = vpop.permute.xlu0 %868
    %872 = vrot.lane.b32.xlu0 %v852, 12
    %v873 = vpop.permute.xlu0 %872
    %876 = vrot.lane.b32.xlu0 %v854, 16
    %v877 = vpop.permute.xlu0 %876
    %880 = vrot.lane.b32.xlu0 %v855, 20
    %v881 = vpop.permute.xlu0 %880
    %884 = vrot.lane.b32.xlu0 %v861, 24
    %v885 = vpop.permute.xlu0 %884
    %888 = vrot.lane.b32.xlu0 %v863, 28
    %v889 = vpop.permute.xlu0 %888
    %892 = vrot.lane.b32.xlu0 %v864, 32
    %v893 = vpop.permute.xlu0 %892
    %v895 = vsel %vm117, %v805, %v866
    %v896 = vsel %vm119, %v895, %v869
    %v897 = vsel %vm57, %v896, %v873
    %v898 = vsel %vm59, %v897, %v877
    %v899 = vsel %vm61, %v898, %v881
    %v900 = vsel %vm63, %v899, %v885
    %v901 = vsel %vm65, %v900, %v889
    %v902 = vsel %vm67, %v901, %v893
    %v903 = vld [vmem:[%s1] sm:$0xff]
    %v904 = vld [vmem:[%s1 + $0x8] sm:$0xff]
    %v905 = vld [vmem:[%s1 + $0x10] sm:$0xff]
    %v906 = vld [vmem:[%s1 + $0x18] sm:$0xff]
    %v907 = vld [vmem:[%s1 + $0x20] sm:$0xf]
    %v908 = vld [vmem:[%s2] sm:$0x1]
    %v910 = vlaneseq
    %v911 = vshrl.u32 %v910, 7
    %v912 = vsub.s32 0, %v911
    %v913 = vrot.slane %v908, %v912
    %vm915 = vcmask 293888
    %v917 = vsel %vm915, %v68, 0
    %v920 = vsel %vm915, %v126, 0
    %v923 = vsel %vm915, %v182, 0
    %v926 = vsel %vm915, %v238, 0
    %v929 = vsel %vm915, %v294, 0
    %v932 = vsel %vm915, %v350, 0
    %v935 = vsel %vm915, %v406, 0
    %v938 = vsel %vm915, %v462, 0
    %v941 = vsel %vm915, %v510, 0
    %v944 = vsel %vm915, %v566, 0
    %v947 = vsel %vm915, %v622, 0
    %v950 = vsel %vm915, %v678, 0
    %v953 = vsel %vm915, %v734, 0
    %v956 = vsel %vm915, %v790, 0
    %v959 = vsel %vm915, %v846, 0
    %v962 = vsel %vm915, %v902, 0
    %vm964 = vcmask 1043456
    %v966 = vsel %vm964, %v907, 0
    %968 = vmatprep.subr.mxu0 0.0
    %969 = vmatpush1.msra.mxu0 %v903
    %970 = vmatprep.subr.mxu0 0.0
    %971 = vmatpush1.msra.mxu0 %v904
    %972 = vmatprep.subr.mxu0 0.0
    %973 = vmatpush1.msra.mxu0 %v905
    %974 = vmatprep.subr.mxu0 0.0
    %975 = vmatpush1.msra.mxu0 %v906
    %976 = vmatprep.subr.mxu0 0.0
    %977 = vmatpush1.msra.mxu0 %v966
    %978 = vmatprep.subr.mxu0 0.0
    %979 = vmatpush1.msra.mxu0 0.0
    %980 = vmatprep.subr.mxu0 0.0
    %981 = vmatpush1.msra.mxu0 0.0
    %982 = vmatprep.subr.mxu0 0.0
    %983 = vmatpush1.msra.mxu0 0.0
    %984 = vmatprep.subr.mxu0 0.0
    %985 = vmatpush1.msra.mxu0 0.0
    %986 = vmatprep.subr.mxu0 0.0
    %987 = vmatpush1.msra.mxu0 0.0
    %988 = vmatprep.subr.mxu0 0.0
    %989 = vmatpush1.msra.mxu0 0.0
    %990 = vmatprep.subr.mxu0 0.0
    %991 = vmatpush1.msra.mxu0 0.0
    %992 = vmatprep.subr.mxu0 0.0
    %993 = vmatpush1.msra.mxu0 0.0
    %994 = vmatprep.subr.mxu0 0.0
    %995 = vmatpush1.msra.mxu0 0.0
    %996 = vmatprep.subr.mxu0 0.0
    %997 = vmatpush1.msra.mxu0 0.0
    %998 = vmatprep.subr.mxu0 0.0
    %999 = vmatpush1.msra.mxu0 0.0
    %1000 = vmatprep.subr.mxu0 0.0
    %1001 = vmatpush1.msra.mxu0 0.0
    %1002 = vmatprep.subr.mxu0 0.0
    %1003 = vmatpush1.msra.mxu0 0.0
    %1004 = vmatprep.subr.mxu0 0.0
    %1005 = vmatpush1.msra.mxu0 0.0
    %1006 = vmatprep.subr.mxu0 0.0
    %1007 = vmatpush1.msra.mxu0 0.0
    %1008 = vmatprep.subr.mxu0 0.0
    %1009 = vmatpush1.msra.mxu0 0.0
    %1010 = vmatprep.subr.mxu0 0.0
    %1011 = vmatpush1.msra.mxu0 0.0
    %1012 = vmatprep.subr.mxu0 0.0
    %1013 = vmatpush1.msra.mxu0 0.0
    %1014 = vmatprep.subr.mxu0 0.0
    %1015 = vmatpush1.msra.mxu0 0.0
    %1016 = vmatprep.subr.mxu0 0.0
    %1017 = vmatpush1.msra.mxu0 0.0
    %1018 = vmatprep.subr.mxu0 0.0
    %1019 = vmatpush1.msra.mxu0 0.0
    %1020 = vmatprep.subr.mxu0 0.0
    %1021 = vmatpush1.msra.mxu0 0.0
    %1022 = vmatprep.subr.mxu0 0.0
    %1023 = vmatpush1.msra.mxu0 0.0
    %1024 = vmatprep.subr.mxu0 0.0
    %1025 = vmatpush1.msra.mxu0 0.0
    %1026 = vmatprep.subr.mxu0 0.0
    %1027 = vmatpush1.msra.mxu0 0.0
    %1028 = vmatprep.subr.mxu0 0.0
    %1029 = vmatpush1.msra.mxu0 0.0
    %1030 = vmatprep.subr.mxu0 0.0
    %1031 = vmatpush1.msra.mxu0 0.0
    %1032 = vmatprep.mubr.f32.mxu0 0.0
    %1033 = vmatmul.mubr.f32.gmra.mrb[0].mxu0 %v917
    %v1034 = vpop.f32.mrb[0].mxu0
    %v1035 = vadd.f32 %v913, %v1034
    %v1036 = vpop.f32.mrb[0].mxu0
    %1037 = vmatprep.mubr.f32.mxu0 0.0
    %1038 = vmatmul.mubr.f32.gmra.mrb[0].mxu0 %v920
    %v1039 = vpop.f32.mrb[0].mxu0
    %v1040 = vadd.f32 %v913, %v1039
    %v1041 = vpop.f32.mrb[0].mxu0
    %1042 = vmatprep.mubr.f32.mxu0 0.0
    %1043 = vmatmul.mubr.f32.gmra.mrb[0].mxu0 %v923
    %v1044 = vpop.f32.mrb[0].mxu0
    %v1045 = vadd.f32 %v913, %v1044
    %v1046 = vpop.f32.mrb[0].mxu0
    %1047 = vmatprep.mubr.f32.mxu0 0.0
    %1048 = vmatmul.mubr.f32.gmra.mrb[0].mxu0 %v926
    %v1049 = vpop.f32.mrb[0].mxu0
    %v1050 = vadd.f32 %v913, %v1049
    %v1051 = vpop.f32.mrb[0].mxu0
    %1052 = vmatprep.mubr.f32.mxu0 0.0
    %1053 = vmatmul.mubr.f32.gmra.mrb[0].mxu0 %v929
    %v1054 = vpop.f32.mrb[0].mxu0
    %v1055 = vadd.f32 %v913, %v1054
    %v1056 = vpop.f32.mrb[0].mxu0
    %1057 = vmatprep.mubr.f32.mxu0 0.0
    %1058 = vmatmul.mubr.f32.gmra.mrb[0].mxu0 %v932
    %v1059 = vpop.f32.mrb[0].mxu0
    %v1060 = vadd.f32 %v913, %v1059
    %v1061 = vpop.f32.mrb[0].mxu0
    %1062 = vmatprep.mubr.f32.mxu0 0.0
    %1063 = vmatmul.mubr.f32.gmra.mrb[0].mxu0 %v935
    %v1064 = vpop.f32.mrb[0].mxu0
    %v1065 = vadd.f32 %v913, %v1064
    %v1066 = vpop.f32.mrb[0].mxu0
    %1067 = vmatprep.mubr.f32.mxu0 0.0
    %1068 = vmatmul.mubr.f32.gmra.mrb[0].mxu0 %v938
    %v1069 = vpop.f32.mrb[0].mxu0
    %v1070 = vadd.f32 %v913, %v1069
    %v1071 = vpop.f32.mrb[0].mxu0
    %1072 = vmatprep.mubr.f32.mxu0 0.0
    %1073 = vmatmul.mubr.f32.gmra.mrb[0].mxu0 %v941
    %v1074 = vpop.f32.mrb[0].mxu0
    %v1075 = vadd.f32 %v913, %v1074
    %v1076 = vpop.f32.mrb[0].mxu0
    %1077 = vmatprep.mubr.f32.mxu0 0.0
    %1078 = vmatmul.mubr.f32.gmra.mrb[0].mxu0 %v944
    %v1079 = vpop.f32.mrb[0].mxu0
    %v1080 = vadd.f32 %v913, %v1079
    %v1081 = vpop.f32.mrb[0].mxu0
    %1082 = vmatprep.mubr.f32.mxu0 0.0
    %1083 = vmatmul.mubr.f32.gmra.mrb[0].mxu0 %v947
    %v1084 = vpop.f32.mrb[0].mxu0
    %v1085 = vadd.f32 %v913, %v1084
    %v1086 = vpop.f32.mrb[0].mxu0
    %1087 = vmatprep.mubr.f32.mxu0 0.0
    %1088 = vmatmul.mubr.f32.gmra.mrb[0].mxu0 %v950
    %v1089 = vpop.f32.mrb[0].mxu0
    %v1090 = vadd.f32 %v913, %v1089
    %v1091 = vpop.f32.mrb[0].mxu0
    %1092 = vmatprep.mubr.f32.mxu0 0.0
    %1093 = vmatmul.mubr.f32.gmra.mrb[0].mxu0 %v953
    %v1094 = vpop.f32.mrb[0].mxu0
    %v1095 = vadd.f32 %v913, %v1094
    %v1096 = vpop.f32.mrb[0].mxu0
    %1097 = vmatprep.mubr.f32.mxu0 0.0
    %1098 = vmatmul.mubr.f32.gmra.mrb[0].mxu0 %v956
    %v1099 = vpop.f32.mrb[0].mxu0
    %v1100 = vadd.f32 %v913, %v1099
    %v1101 = vpop.f32.mrb[0].mxu0
    %1102 = vmatprep.mubr.f32.mxu0 0.0
    %1103 = vmatmul.mubr.f32.gmra.mrb[0].mxu0 %v959
    %v1104 = vpop.f32.mrb[0].mxu0
    %v1105 = vadd.f32 %v913, %v1104
    %v1106 = vpop.f32.mrb[0].mxu0
    %1107 = vmatprep.mubr.f32.mxu0 0.0
    %1108 = vmatmul.mubr.f32.gmra.mrb[0].mxu0 %v962
    %v1109 = vpop.f32.mrb[0].mxu0
    %v1110 = vadd.f32 %v913, %v1109
    %v1111 = vpop.f32.mrb[0].mxu0
    %1112 = vdwg.mxu0
    %v1113 = vmax.f32 %v1035, 0.0
    %v1114 = vmax.f32 %v1040, 0.0
    %v1115 = vmax.f32 %v1045, 0.0
    %v1116 = vmax.f32 %v1050, 0.0
    %v1117 = vmax.f32 %v1055, 0.0
    %v1118 = vmax.f32 %v1060, 0.0
    %v1119 = vmax.f32 %v1065, 0.0
    %v1120 = vmax.f32 %v1070, 0.0
    %v1121 = vmax.f32 %v1075, 0.0
    %v1122 = vmax.f32 %v1080, 0.0
    %v1123 = vmax.f32 %v1085, 0.0
    %v1124 = vmax.f32 %v1090, 0.0
    %v1125 = vmax.f32 %v1095, 0.0
    %v1126 = vmax.f32 %v1100, 0.0
    %v1127 = vmax.f32 %v1105, 0.0
    %v1128 = vmax.f32 %v1110, 0.0
    %1129 = vst.msk [vmem:[#allocation2] sm:$0xff] %vm119, %v1113
    %1130 = vst.msk [vmem:[#allocation2 + $0x8] sm:$0xff] %vm119, %v1114
    %1131 = vst.msk [vmem:[#allocation2 + $0x10] sm:$0xff] %vm119, %v1115
    %1132 = vst.msk [vmem:[#allocation2 + $0x18] sm:$0xff] %vm119, %v1116
    %1133 = vst.msk [vmem:[#allocation2 + $0x20] sm:$0xff] %vm119, %v1117
    %1134 = vst.msk [vmem:[#allocation2 + $0x28] sm:$0xff] %vm119, %v1118
    %1135 = vst.msk [vmem:[#allocation2 + $0x30] sm:$0xff] %vm119, %v1119
    %1136 = vst.msk [vmem:[#allocation2 + $0x38] sm:$0xff] %vm119, %v1120
    %1137 = vst.msk [vmem:[#allocation2 + $0x40] sm:$0xff] %vm119, %v1121
    %1138 = vst.msk [vmem:[#allocation2 + $0x48] sm:$0xff] %vm119, %v1122
    %1139 = vst.msk [vmem:[#allocation2 + $0x50] sm:$0xff] %vm119, %v1123
    %1140 = vst.msk [vmem:[#allocation2 + $0x58] sm:$0xff] %vm119, %v1124
    %1141 = vst.msk [vmem:[#allocation2 + $0x60] sm:$0xff] %vm119, %v1125
    %1142 = vst.msk [vmem:[#allocation2 + $0x68] sm:$0xff] %vm119, %v1126
    %1143 = vst.msk [vmem:[#allocation2 + $0x70] sm:$0xff] %vm119, %v1127
    %1144 = vst.msk [vmem:[#allocation2 + $0x78] sm:$0xff] %vm119, %v1128
    %s1145 = scalar_lea.vmem [#allocation2], 1
    %v1146 = vld [vmem:[%s1145] ss:$2 sm:$0x7]
    %v1148 = vrot.slane %v1146, 7
    %v1150 = vsel %vm20, 0.0, %v1148
    %v1151 = vld [vmem:[#allocation2] ss:$2 sm:$0xf]
    %v1152 = vld [vmem:[%s1145] ss:$2 sm:$0xf]
    %s1153 = scalar_lea.vmem [#allocation2], 9
    %v1154 = vld [vmem:[%s1153] ss:$2 sm:$0x7]
    %v1156 = vrot.slane %v1154, 7
    %v1158 = vsel %vm20, 0.0, %v1156
    %s1159 = scalar_lea.vmem [#allocation2], 8
    %v1160 = vld [vmem:[%s1159] ss:$2 sm:$0xf]
    %v1161 = vld [vmem:[%s1153] ss:$2 sm:$0xf]
    %1163 = vrot.lane.b32.xlu0 %v1150, 24
    %v1164 = vpop.permute.xlu0 %1163
    %1167 = vrot.lane.b32.xlu0 %v1151, 32
    %v1168 = vpop.permute.xlu0 %1167
    %1171 = vrot.lane.b32.xlu0 %v1152, 40
    %v1172 = vpop.permute.xlu0 %1171
    %1175 = vrot.lane.b32.xlu0 %v1158, 48
    %v1176 = vpop.permute.xlu0 %1175
    %1179 = vrot.lane.b32.xlu0 %v1160, 56
    %v1180 = vpop.permute.xlu0 %1179
    %1183 = vrot.lane.b32.xlu0 %v1161, 64
    %v1184 = vpop.permute.xlu0 %1183
    %v1186 = vsel %vm63, 0.0, %v1164
    %v1187 = vsel %vm67, %v1186, %v1168
    %vm1188 = vcmask 326656
    %v1189 = vsel %vm1188, %v1187, %v1172
    %vm1190 = vcmask 392192
    %v1191 = vsel %vm1190, %v1189, %v1176
    %vm1192 = vcmask 457728
    %v1193 = vsel %vm1192, %v1191, %v1180
    %vm1194 = vcmask 523264
    %v1195 = vsel %vm1194, %v1193, %v1184
    %s1196 = scalar_lea.vmem [#allocation2], 17
    %v1197 = vld [vmem:[%s1196] ss:$2 sm:$0x7]
    %v1199 = vrot.slane %v1197, 7
    %v1201 = vsel %vm20, 0.0, %v1199
    %s1202 = scalar_lea.vmem [#allocation2], 16
    %v1203 = vld [vmem:[%s1202] ss:$2 sm:$0xf]
    %v1204 = vld [vmem:[%s1196] ss:$2 sm:$0xf]
    %s1205 = scalar_lea.vmem [#allocation2], 25
    %v1206 = vld [vmem:[%s1205] ss:$2 sm:$0x7]
    %v1208 = vrot.slane %v1206, 7
    %v1210 = vsel %vm20, 0.0, %v1208
    %s1211 = scalar_lea.vmem [#allocation2], 24
    %v1212 = vld [vmem:[%s1211] ss:$2 sm:$0xf]
    %v1213 = vld [vmem:[%s1205] ss:$2 sm:$0xf]
    %1214 = vrot.lane.b32.xlu0 %v1160, 8
    %v1215 = vpop.permute.xlu0 %1214
    %1217 = vrot.lane.b32.xlu0 %v1161, 16
    %v1218 = vpop.permute.xlu0 %1217
    %1221 = vrot.lane.b32.xlu0 %v1201, 24
    %v1222 = vpop.permute.xlu0 %1221
    %1225 = vrot.lane.b32.xlu0 %v1203, 32
    %v1226 = vpop.permute.xlu0 %1225
    %1229 = vrot.lane.b32.xlu0 %v1204, 40
    %v1230 = vpop.permute.xlu0 %1229
    %1233 = vrot.lane.b32.xlu0 %v1210, 48
    %v1234 = vpop.permute.xlu0 %1233
    %1237 = vrot.lane.b32.xlu0 %v1212, 56
    %v1238 = vpop.permute.xlu0 %1237
    %1241 = vrot.lane.b32.xlu0 %v1213, 64
    %v1242 = vpop.permute.xlu0 %1241
    %v1244 = vsel %vm119, %v1158, %v1215
    %v1245 = vsel %vm59, %v1244, %v1218
    %v1246 = vsel %vm63, %v1245, %v1222
    %v1247 = vsel %vm67, %v1246, %v1226
    %v1248 = vsel %vm1188, %v1247, %v1230
    %v1249 = vsel %vm1190, %v1248, %v1234
    %v1250 = vsel %vm1192, %v1249, %v1238
    %v1251 = vsel %vm1194, %v1250, %v1242
    %s1252 = scalar_lea.vmem [#allocation2], 33
    %v1253 = vld [vmem:[%s1252] ss:$2 sm:$0x7]
    %v1255 = vrot.slane %v1253, 7
    %v1257 = vsel %vm20, 0.0, %v1255
    %s1258 = scalar_lea.vmem [#allocation2], 32
    %v1259 = vld [vmem:[%s1258] ss:$2 sm:$0xf]
    %v1260 = vld [vmem:[%s1252] ss:$2 sm:$0xf]
    %s1261 = scalar_lea.vmem [#allocation2], 41
    %v1262 = vld [vmem:[%s1261] ss:$2 sm:$0x7]
    %v1264 = vrot.slane %v1262, 7
    %v1266 = vsel %vm20, 0.0, %v1264
    %s1267 = scalar_lea.vmem [#allocation2], 40
    %v1268 = vld [vmem:[%s1267] ss:$2 sm:$0xf]
    %v1269 = vld [vmem:[%s1261] ss:$2 sm:$0xf]
    %1270 = vrot.lane.b32.xlu0 %v1212, 8
    %v1271 = vpop.permute.xlu0 %1270
    %1273 = vrot.lane.b32.xlu0 %v1213, 16
    %v1274 = vpop.permute.xlu0 %1273
    %1277 = vrot.lane.b32.xlu0 %v1257, 24
    %v1278 = vpop.permute.xlu0 %1277
    %1281 = vrot.lane.b32.xlu0 %v1259, 32
    %v1282 = vpop.permute.xlu0 %1281
    %1285 = vrot.lane.b32.xlu0 %v1260, 40
    %v1286 = vpop.permute.xlu0 %1285
    %1289 = vrot.lane.b32.xlu0 %v1266, 48
    %v1290 = vpop.permute.xlu0 %1289
    %1293 = vrot.lane.b32.xlu0 %v1268, 56
    %v1294 = vpop.permute.xlu0 %1293
    %1297 = vrot.lane.b32.xlu0 %v1269, 64
    %v1298 = vpop.permute.xlu0 %1297
    %v1300 = vsel %vm119, %v1210, %v1271
    %v1301 = vsel %vm59, %v1300, %v1274
    %v1302 = vsel %vm63, %v1301, %v1278
    %v1303 = vsel %vm67, %v1302, %v1282
    %v1304 = vsel %vm1188, %v1303, %v1286
    %v1305 = vsel %vm1190, %v1304, %v1290
    %v1306 = vsel %vm1192, %v1305, %v1294
    %v1307 = vsel %vm1194, %v1306, %v1298
    %s1308 = scalar_lea.vmem [#allocation2], 49
    %v1309 = vld [vmem:[%s1308] ss:$2 sm:$0x7]
    %v1311 = vrot.slane %v1309, 7
    %v1313 = vsel %vm20, 0.0, %v1311
    %s1314 = scalar_lea.vmem [#allocation2], 48
    %v1315 = vld [vmem:[%s1314] ss:$2 sm:$0xf]
    %v1316 = vld [vmem:[%s1308] ss:$2 sm:$0xf]
    %s1317 = scalar_lea.vmem [#allocation2], 57
    %v1318 = vld [vmem:[%s1317] ss:$2 sm:$0x7]
    %v1320 = vrot.slane %v1318, 7
    %v1322 = vsel %vm20, 0.0, %v1320
    %s1323 = scalar_lea.vmem [#allocation2], 56
    %v1324 = vld [vmem:[%s1323] ss:$2 sm:$0xf]
    %v1325 = vld [vmem:[%s1317] ss:$2 sm:$0xf]
    %1326 = vrot.lane.b32.xlu0 %v1268, 8
    %v1327 = vpop.permute.xlu0 %1326
    %1329 = vrot.lane.b32.xlu0 %v1269, 16
    %v1330 = vpop.permute.xlu0 %1329
    %1333 = vrot.lane.b32.xlu0 %v1313, 24
    %v1334 = vpop.permute.xlu0 %1333
    %1337 = vrot.lane.b32.xlu0 %v1315, 32
    %v1338 = vpop.permute.xlu0 %1337
    %1341 = vrot.lane.b32.xlu0 %v1316, 40
    %v1342 = vpop.permute.xlu0 %1341
    %1345 = vrot.lane.b32.xlu0 %v1322, 48
    %v1346 = vpop.permute.xlu0 %1345
    %1349 = vrot.lane.b32.xlu0 %v1324, 56
    %v1350 = vpop.permute.xlu0 %1349
    %1353 = vrot.lane.b32.xlu0 %v1325, 64
    %v1354 = vpop.permute.xlu0 %1353
    %v1356 = vsel %vm119, %v1266, %v1327
    %v1357 = vsel %vm59, %v1356, %v1330
    %v1358 = vsel %vm63, %v1357, %v1334
    %v1359 = vsel %vm67, %v1358, %v1338
    %v1360 = vsel %vm1188, %v1359, %v1342
    %v1361 = vsel %vm1190, %v1360, %v1346
    %v1362 = vsel %vm1192, %v1361, %v1350
    %v1363 = vsel %vm1194, %v1362, %v1354
    %v1365 = vrot.slane %v1251, 4
    %v1368 = vrot.slane %v1363, 4
    %v1370 = vsel %vm964, %v1195, %v1365
    %v1371 = vsel %vm964, %v1307, %v1368
    %s1372 = scalar_lea.vmem [#allocation2], 65
    %v1373 = vld [vmem:[%s1372] ss:$2 sm:$0x7]
    %v1375 = vrot.slane %v1373, 7
    %v1377 = vsel %vm20, 0.0, %v1375
    %s1378 = scalar_lea.vmem [#allocation2], 64
    %v1379 = vld [vmem:[%s1378] ss:$2 sm:$0xf]
    %v1380 = vld [vmem:[%s1372] ss:$2 sm:$0xf]
    %s1381 = scalar_lea.vmem [#allocation2], 73
    %v1382 = vld [vmem:[%s1381] ss:$2 sm:$0x7]
    %v1384 = vrot.slane %v1382, 7
    %v1386 = vsel %vm20, 0.0, %v1384
    %s1387 = scalar_lea.vmem [#allocation2], 72
    %v1388 = vld [vmem:[%s1387] ss:$2 sm:$0xf]
    %v1389 = vld [vmem:[%s1381] ss:$2 sm:$0xf]
    %1391 = vrot.lane.b32.xlu0 %v1377, 24
    %v1392 = vpop.permute.xlu0 %1391
    %1395 = vrot.lane.b32.xlu0 %v1379, 32
    %v1396 = vpop.permute.xlu0 %1395
    %1399 = vrot.lane.b32.xlu0 %v1380, 40
    %v1400 = vpop.permute.xlu0 %1399
    %1403 = vrot.lane.b32.xlu0 %v1386, 48
    %v1404 = vpop.permute.xlu0 %1403
    %1407 = vrot.lane.b32.xlu0 %v1388, 56
    %v1408 = vpop.permute.xlu0 %1407
    %1411 = vrot.lane.b32.xlu0 %v1389, 64
    %v1412 = vpop.permute.xlu0 %1411
    %v1414 = vsel %vm63, 0.0, %v1392
    %v1415 = vsel %vm67, %v1414, %v1396
    %v1416 = vsel %vm1188, %v1415, %v1400
    %v1417 = vsel %vm1190, %v1416, %v1404
    %v1418 = vsel %vm1192, %v1417, %v1408
    %v1419 = vsel %vm1194, %v1418, %v1412
    %s1420 = scalar_lea.vmem [#allocation2], 81
    %v1421 = vld [vmem:[%s1420] ss:$2 sm:$0x7]
    %v1423 = vrot.slane %v1421, 7
    %v1425 = vsel %vm20, 0.0, %v1423
    %s1426 = scalar_lea.vmem [#allocation2], 80
    %v1427 = vld [vmem:[%s1426] ss:$2 sm:$0xf]
    %v1428 = vld [vmem:[%s1420] ss:$2 sm:$0xf]
    %s1429 = scalar_lea.vmem [#allocation2], 89
    %v1430 = vld [vmem:[%s1429] ss:$2 sm:$0x7]
    %v1432 = vrot.slane %v1430, 7
    %v1434 = vsel %vm20, 0.0, %v1432
    %s1435 = scalar_lea.vmem [#allocation2], 88
    %v1436 = vld [vmem:[%s1435] ss:$2 sm:$0xf]
    %v1437 = vld [vmem:[%s1429] ss:$2 sm:$0xf]
    %1438 = vrot.lane.b32.xlu0 %v1388, 8
    %v1439 = vpop.permute.xlu0 %1438
    %1441 = vrot.lane.b32.xlu0 %v1389, 16
    %v1442 = vpop.permute.xlu0 %1441
    %1445 = vrot.lane.b32.xlu0 %v1425, 24
    %v1446 = vpop.permute.xlu0 %1445
    %1449 = vrot.lane.b32.xlu0 %v1427, 32
    %v1450 = vpop.permute.xlu0 %1449
    %1453 = vrot.lane.b32.xlu0 %v1428, 40
    %v1454 = vpop.permute.xlu0 %1453
    %1457 = vrot.lane.b32.xlu0 %v1434, 48
    %v1458 = vpop.permute.xlu0 %1457
    %1461 = vrot.lane.b32.xlu0 %v1436, 56
    %v1462 = vpop.permute.xlu0 %1461
    %1465 = vrot.lane.b32.xlu0 %v1437, 64
    %v1466 = vpop.permute.xlu0 %1465
    %v1468 = vsel %vm119, %v1386, %v1439
    %v1469 = vsel %vm59, %v1468, %v1442
    %v1470 = vsel %vm63, %v1469, %v1446
    %v1471 = vsel %vm67, %v1470, %v1450
    %v1472 = vsel %vm1188, %v1471, %v1454
    %v1473 = vsel %vm1190, %v1472, %v1458
    %v1474 = vsel %vm1192, %v1473, %v1462
    %v1475 = vsel %vm1194, %v1474, %v1466
    %s1476 = scalar_lea.vmem [#allocation2], 97
    %v1477 = vld [vmem:[%s1476] ss:$2 sm:$0x7]
    %v1479 = vrot.slane %v1477, 7
    %v1481 = vsel %vm20, 0.0, %v1479
    %s1482 = scalar_lea.vmem [#allocation2], 96
    %v1483 = vld [vmem:[%s1482] ss:$2 sm:$0xf]
    %v1484 = vld [vmem:[%s1476] ss:$2 sm:$0xf]
    %s1485 = scalar_lea.vmem [#allocation2], 105
    %v1486 = vld [vmem:[%s1485] ss:$2 sm:$0x7]
    %v1488 = vrot.slane %v1486, 7
    %v1490 = vsel %vm20, 0.0, %v1488
    %s1491 = scalar_lea.vmem [#allocation2], 104
    %v1492 = vld [vmem:[%s1491] ss:$2 sm:$0xf]
    %v1493 = vld [vmem:[%s1485] ss:$2 sm:$0xf]
    %1494 = vrot.lane.b32.xlu0 %v1436, 8
    %v1495 = vpop.permute.xlu0 %1494
    %1497 = vrot.lane.b32.xlu0 %v1437, 16
    %v1498 = vpop.permute.xlu0 %1497
    %1501 = vrot.lane.b32.xlu0 %v1481, 24
    %v1502 = vpop.permute.xlu0 %1501
    %1505 = vrot.lane.b32.xlu0 %v1483, 32
    %v1506 = vpop.permute.xlu0 %1505
    %1509 = vrot.lane.b32.xlu0 %v1484, 40
    %v1510 = vpop.permute.xlu0 %1509
    %1513 = vrot.lane.b32.xlu0 %v1490, 48
    %v1514 = vpop.permute.xlu0 %1513
    %1517 = vrot.lane.b32.xlu0 %v1492, 56
    %v1518 = vpop.permute.xlu0 %1517
    %1521 = vrot.lane.b32.xlu0 %v1493, 64
    %v1522 = vpop.permute.xlu0 %1521
    %v1524 = vsel %vm119, %v1434, %v1495
    %v1525 = vsel %vm59, %v1524, %v1498
    %v1526 = vsel %vm63, %v1525, %v1502
    %v1527 = vsel %vm67, %v1526, %v1506
    %v1528 = vsel %vm1188, %v1527, %v1510
    %v1529 = vsel %vm1190, %v1528, %v1514
    %v1530 = vsel %vm1192, %v1529, %v1518
    %v1531 = vsel %vm1194, %v1530, %v1522
    %s1532 = scalar_lea.vmem [#allocation2], 113
    %v1533 = vld [vmem:[%s1532] ss:$2 sm:$0x7]
    %v1535 = vrot.slane %v1533, 7
    %v1537 = vsel %vm20, 0.0, %v1535
    %s1538 = scalar_lea.vmem [#allocation2], 112
    %v1539 = vld [vmem:[%s1538] ss:$2 sm:$0xf]
    %v1540 = vld [vmem:[%s1532] ss:$2 sm:$0xf]
    %s1541 = scalar_lea.vmem [#allocation2], 121
    %v1542 = vld [vmem:[%s1541] ss:$2 sm:$0x7]
    %v1544 = vrot.slane %v1542, 7
    %v1546 = vsel %vm20, 0.0, %v1544
    %s1547 = scalar_lea.vmem [#allocation2], 120
    %v1548 = vld [vmem:[%s1547] ss:$2 sm:$0xf]
    %v1549 = vld [vmem:[%s1541] ss:$2 sm:$0xf]
    %1550 = vrot.lane.b32.xlu0 %v1492, 8
    %v1551 = vpop.permute.xlu0 %1550
    %1553 = vrot.lane.b32.xlu0 %v1493, 16
    %v1554 = vpop.permute.xlu0 %1553
    %1557 = vrot.lane.b32.xlu0 %v1537, 24
    %v1558 = vpop.permute.xlu0 %1557
    %1561 = vrot.lane.b32.xlu0 %v1539, 32
    %v1562 = vpop.permute.xlu0 %1561
    %1565 = vrot.lane.b32.xlu0 %v1540, 40
    %v1566 = vpop.permute.xlu0 %1565
    %1569 = vrot.lane.b32.xlu0 %v1546, 48
    %v1570 = vpop.permute.xlu0 %1569
    %1573 = vrot.lane.b32.xlu0 %v1548, 56
    %v1574 = vpop.permute.xlu0 %1573
    %1577 = vrot.lane.b32.xlu0 %v1549, 64
    %v1578 = vpop.permute.xlu0 %1577
    %v1580 = vsel %vm119, %v1490, %v1551
    %v1581 = vsel %vm59, %v1580, %v1554
    %v1582 = vsel %vm63, %v1581, %v1558
    %v1583 = vsel %vm67, %v1582, %v1562
    %v1584 = vsel %vm1188, %v1583, %v1566
    %v1585 = vsel %vm1190, %v1584, %v1570
    %v1586 = vsel %vm1192, %v1585, %v1574
    %v1587 = vsel %vm1194, %v1586, %v1578
    %v1589 = vrot.slane %v1475, 4
    %v1592 = vrot.slane %v1587, 4
    %v1594 = vsel %vm964, %v1419, %v1589
    %v1595 = vsel %vm964, %v1531, %v1592
    %v1596 = vld [vmem:[%s1] sm:$0xff]
    %v1597 = vld [vmem:[%s1 + $0x8] sm:$0xff]
    %v1598 = vld [vmem:[%s1 + $0x10] sm:$0xff]
    %v1599 = vld [vmem:[%s1 + $0x18] sm:$0xff]
    %v1600 = vld [vmem:[%s1 + $0x20] sm:$0xff]
    %v1601 = vld [vmem:[%s1 + $0x28] sm:$0xff]
    %v1602 = vld [vmem:[%s1 + $0x30] sm:$0xff]
    %v1603 = vld [vmem:[%s1 + $0x38] sm:$0xff]
    %v1604 = vld [vmem:[%s1 + $0x40] sm:$0xff]
    %v1605 = vld [vmem:[%s2] sm:$0x1]
    %v1607 = vlaneseq
    %v1608 = vshrl.u32 %v1607, 7
    %v1609 = vsub.s32 0, %v1608
    %v1610 = vrot.slane %v1605, %v1609
    %1620 = vrot.lane.b32.xlu0 %v1596, 120
    %v1621 = vpop.permute.xlu0 %1620
    %1622 = vrot.lane.b32.xlu0 %v1597, 120
    %v1623 = vpop.permute.xlu0 %1622
    %1624 = vrot.lane.b32.xlu0 %v1598, 120
    %v1625 = vpop.permute.xlu0 %1624
    %1626 = vrot.lane.b32.xlu0 %v1599, 120
    %v1627 = vpop.permute.xlu0 %1626
    %1628 = vrot.lane.b32.xlu0 %v1600, 120
    %v1629 = vpop.permute.xlu0 %1628
    %1630 = vrot.lane.b32.xlu0 %v1601, 120
    %v1631 = vpop.permute.xlu0 %1630
    %1632 = vrot.lane.b32.xlu0 %v1602, 120
    %v1633 = vpop.permute.xlu0 %1632
    %1634 = vrot.lane.b32.xlu0 %v1603, 120
    %v1635 = vpop.permute.xlu0 %1634
    %1636 = vrot.lane.b32.xlu0 %v1604, 120
    %v1637 = vpop.permute.xlu0 %1636
    %1647 = vrot.lane.b32.xlu0 %v1610, 120
    %v1648 = vpop.permute.xlu0 %1647
    %vm1650 = vcmask 588800
    %v1652 = vsel %vm1650, %v1370, 0
    %v1655 = vsel %vm1650, %v1371, 0
    %v1658 = vsel %vm1650, %v1594, 0
    %v1661 = vsel %vm1650, %v1595, 0
    %1663 = vmatprep.subr.mxu0 0.0
    %1664 = vmatpush1.msra.mxu0 %v1621
    %1665 = vmatprep.subr.mxu0 0.0
    %1666 = vmatpush1.msra.mxu0 %v1623
    %1667 = vmatprep.subr.mxu0 0.0
    %1668 = vmatpush1.msra.mxu0 %v1625
    %1669 = vmatprep.subr.mxu0 0.0
    %1670 = vmatpush1.msra.mxu0 %v1627
    %1671 = vmatprep.subr.mxu0 0.0
    %1672 = vmatpush1.msra.mxu0 %v1629
    %1673 = vmatprep.subr.mxu0 0.0
    %1674 = vmatpush1.msra.mxu0 %v1631
    %1675 = vmatprep.subr.mxu0 0.0
    %1676 = vmatpush1.msra.mxu0 %v1633
    %1677 = vmatprep.subr.mxu0 0.0
    %1678 = vmatpush1.msra.mxu0 %v1635
    %1679 = vmatprep.subr.mxu0 0.0
    %1680 = vmatpush1.msra.mxu0 %v1637
    %1681 = vmatprep.subr.mxu0 0.0
    %1682 = vmatpush1.msra.mxu0 0.0
    %1683 = vmatprep.subr.mxu0 0.0
    %1684 = vmatpush1.msra.mxu0 0.0
    %1685 = vmatprep.subr.mxu0 0.0
    %1686 = vmatpush1.msra.mxu0 0.0
    %1687 = vmatprep.subr.mxu0 0.0
    %1688 = vmatpush1.msra.mxu0 0.0
    %1689 = vmatprep.subr.mxu0 0.0
    %1690 = vmatpush1.msra.mxu0 0.0
    %1691 = vmatprep.subr.mxu0 0.0
    %1692 = vmatpush1.msra.mxu0 0.0
    %1693 = vmatprep.subr.mxu0 0.0
    %1694 = vmatpush1.msra.mxu0 0.0
    %1695 = vmatprep.subr.mxu0 0.0
    %1696 = vmatpush1.msra.mxu0 0.0
    %1697 = vmatprep.subr.mxu0 0.0
    %1698 = vmatpush1.msra.mxu0 0.0
    %1699 = vmatprep.subr.mxu0 0.0
    %1700 = vmatpush1.msra.mxu0 0.0
    %1701 = vmatprep.subr.mxu0 0.0
    %1702 = vmatpush1.msra.mxu0 0.0
    %1703 = vmatprep.subr.mxu0 0.0
    %1704 = vmatpush1.msra.mxu0 0.0
    %1705 = vmatprep.subr.mxu0 0.0
    %1706 = vmatpush1.msra.mxu0 0.0
    %1707 = vmatprep.subr.mxu0 0.0
    %1708 = vmatpush1.msra.mxu0 0.0
    %1709 = vmatprep.subr.mxu0 0.0
    %1710 = vmatpush1.msra.mxu0 0.0
    %1711 = vmatprep.subr.mxu0 0.0
    %1712 = vmatpush1.msra.mxu0 0.0
    %1713 = vmatprep.subr.mxu0 0.0
    %1714 = vmatpush1.msra.mxu0 0.0
    %1715 = vmatprep.subr.mxu0 0.0
    %1716 = vmatpush1.msra.mxu0 0.0
    %1717 = vmatprep.subr.mxu0 0.0
    %1718 = vmatpush1.msra.mxu0 0.0
    %1719 = vmatprep.subr.mxu0 0.0
    %1720 = vmatpush1.msra.mxu0 0.0
    %1721 = vmatprep.subr.mxu0 0.0
    %1722 = vmatpush1.msra.mxu0 0.0
    %1723 = vmatprep.subr.mxu0 0.0
    %1724 = vmatpush1.msra.mxu0 0.0
    %1725 = vmatprep.subr.mxu0 0.0
    %1726 = vmatpush1.msra.mxu0 0.0
    %1727 = vmatprep.mubr.f32.mxu0 0.0
    %1728 = vmatmul.mubr.f32.gmra.mrb[0].mxu0 %v1652
    %v1729 = vpop.f32.mrb[0].mxu0
    %v1730 = vadd.f32 %v1648, %v1729
    %v1731 = vpop.f32.mrb[0].mxu0
    %1732 = vmatprep.mubr.f32.mxu0 0.0
    %1733 = vmatmul.mubr.f32.gmra.mrb[0].mxu0 %v1655
    %v1734 = vpop.f32.mrb[0].mxu0
    %v1735 = vadd.f32 %v1648, %v1734
    %v1736 = vpop.f32.mrb[0].mxu0
    %1737 = vmatprep.mubr.f32.mxu0 0.0
    %1738 = vmatmul.mubr.f32.gmra.mrb[0].mxu0 %v1658
    %v1739 = vpop.f32.mrb[0].mxu0
    %v1740 = vadd.f32 %v1648, %v1739
    %v1741 = vpop.f32.mrb[0].mxu0
    %1742 = vmatprep.mubr.f32.mxu0 0.0
    %1743 = vmatmul.mubr.f32.gmra.mrb[0].mxu0 %v1661
    %v1744 = vpop.f32.mrb[0].mxu0
    %v1745 = vadd.f32 %v1648, %v1744
    %v1746 = vpop.f32.mrb[0].mxu0
    %1747 = vdwg.mxu0
    %v1748 = vmax.f32 %v1730, 0.0
    %v1749 = vmax.f32 %v1735, 0.0
    %v1750 = vmax.f32 %v1740, 0.0
    %v1751 = vmax.f32 %v1745, 0.0
    %1752 = vst.msk [vmem:[#allocation3] sm:$0xff] %vm59, %v1748
    %1753 = vst.msk [vmem:[#allocation3 + $0x8] sm:$0xff] %vm59, %v1749
    %1754 = vst.msk [vmem:[#allocation3 + $0x10] sm:$0xff] %vm59, %v1750
    %1755 = vst.msk [vmem:[#allocation3 + $0x18] sm:$0xff] %vm59, %v1751
    %v1756 = vld [vmem:[#allocation3] sm:$0x7]
    %v1758 = vrot.slane %v1756, 7
    %v1760 = vsel %vm20, 0.0, %v1758
    %v1761 = vld [vmem:[#allocation3] sm:$0xf]
    %v1762 = vld [vmem:[#allocation3 + $0x1] sm:$0x7]
    %vm1763 = vcmask 1042432
    %v1764 = vsel %vm1763, %v1762, 0.0
    %v1765 = vld [vmem:[#allocation3 + $0x4] sm:$0x7]
    %v1767 = vrot.slane %v1765, 7
    %v1769 = vsel %vm20, 0.0, %v1767
    %v1770 = vld [vmem:[#allocation3 + $0x4] sm:$0xf]
    %v1771 = vld [vmem:[#allocation3 + $0x5] sm:$0x7]
    %v1772 = vsel %vm1763, %v1771, 0.0
    %1774 = vrot.lane.b32.xlu0 %v1760, 48
    %v1775 = vpop.permute.xlu0 %1774
    %1778 = vrot.lane.b32.xlu0 %v1761, 64
    %v1779 = vpop.permute.xlu0 %1778
    %1782 = vrot.lane.b32.xlu0 %v1764, 80
    %v1783 = vpop.permute.xlu0 %1782
    %1786 = vrot.lane.b32.xlu0 %v1769, 96
    %v1787 = vpop.permute.xlu0 %1786
    %1790 = vrot.lane.b32.xlu0 %v1770, 112
    %v1791 = vpop.permute.xlu0 %1790
    %v1793 = vsel %vm1190, 0.0, %v1775
    %v1794 = vsel %vm1194, %v1793, %v1779
    %vm1795 = vcmask 654336
    %v1796 = vsel %vm1795, %v1794, %v1783
    %vm1797 = vcmask 785408
    %v1798 = vsel %vm1797, %v1796, %v1787
    %vm1799 = vcmask 916480
    %v1800 = vsel %vm1799, %v1798, %v1791
    %v1801 = vld [vmem:[#allocation3 + $0x8] sm:$0x7]
    %v1803 = vrot.slane %v1801, 7
    %v1805 = vsel %vm20, 0.0, %v1803
    %v1806 = vld [vmem:[#allocation3 + $0x8] sm:$0xf]
    %v1807 = vld [vmem:[#allocation3 + $0x9] sm:$0x7]
    %v1808 = vsel %vm1763, %v1807, 0.0
    %1809 = vrot.lane.b32.xlu0 %v1761, 16
    %v1810 = vpop.permute.xlu0 %1809
    %1812 = vrot.lane.b32.xlu0 %v1764, 32
    %v1813 = vpop.permute.xlu0 %1812
    %1815 = vrot.lane.b32.xlu0 %v1769, 48
    %v1816 = vpop.permute.xlu0 %1815
    %1818 = vrot.lane.b32.xlu0 %v1770, 64
    %v1819 = vpop.permute.xlu0 %1818
    %1822 = vrot.lane.b32.xlu0 %v1772, 80
    %v1823 = vpop.permute.xlu0 %1822
    %1826 = vrot.lane.b32.xlu0 %v1805, 96
    %v1827 = vpop.permute.xlu0 %1826
    %1830 = vrot.lane.b32.xlu0 %v1806, 112
    %v1831 = vpop.permute.xlu0 %1830
    %v1833 = vsel %vm59, %v1760, %v1810
    %v1834 = vsel %vm67, %v1833, %v1813
    %v1835 = vsel %vm1190, %v1834, %v1816
    %v1836 = vsel %vm1194, %v1835, %v1819
    %v1837 = vsel %vm1795, %v1836, %v1823
    %v1838 = vsel %vm1797, %v1837, %v1827
    %v1839 = vsel %vm1799, %v1838, %v1831
    %v1840 = vld [vmem:[#allocation3 + $0xc] sm:$0x7]
    %v1842 = vrot.slane %v1840, 7
    %v1844 = vsel %vm20, 0.0, %v1842
    %v1845 = vld [vmem:[#allocation3 + $0xc] sm:$0xf]
    %v1846 = vld [vmem:[#allocation3 + $0xd] sm:$0x7]
    %v1847 = vsel %vm1763, %v1846, 0.0
    %1848 = vrot.lane.b32.xlu0 %v1770, 16
    %v1849 = vpop.permute.xlu0 %1848
    %1851 = vrot.lane.b32.xlu0 %v1772, 32
    %v1852 = vpop.permute.xlu0 %1851
    %1854 = vrot.lane.b32.xlu0 %v1805, 48
    %v1855 = vpop.permute.xlu0 %1854
    %1857 = vrot.lane.b32.xlu0 %v1806, 64
    %v1858 = vpop.permute.xlu0 %1857
    %1861 = vrot.lane.b32.xlu0 %v1808, 80
    %v1862 = vpop.permute.xlu0 %1861
    %1865 = vrot.lane.b32.xlu0 %v1844, 96
    %v1866 = vpop.permute.xlu0 %1865
    %1869 = vrot.lane.b32.xlu0 %v1845, 112
    %v1870 = vpop.permute.xlu0 %1869
    %v1872 = vsel %vm59, %v1769, %v1849
    %v1873 = vsel %vm67, %v1872, %v1852
    %v1874 = vsel %vm1190, %v1873, %v1855
    %v1875 = vsel %vm1194, %v1874, %v1858
    %v1876 = vsel %vm1795, %v1875, %v1862
    %v1877 = vsel %vm1797, %v1876, %v1866
    %v1878 = vsel %vm1799, %v1877, %v1870
    %1879 = vrot.lane.b32.xlu0 %v1806, 16
    %v1880 = vpop.permute.xlu0 %1879
    %1882 = vrot.lane.b32.xlu0 %v1808, 32
    %v1883 = vpop.permute.xlu0 %1882
    %1885 = vrot.lane.b32.xlu0 %v1844, 48
    %v1886 = vpop.permute.xlu0 %1885
    %1888 = vrot.lane.b32.xlu0 %v1845, 64
    %v1889 = vpop.permute.xlu0 %1888
    %1892 = vrot.lane.b32.xlu0 %v1847, 80
    %v1893 = vpop.permute.xlu0 %1892
    %v1895 = vsel %vm59, %v1805, %v1880
    %v1896 = vsel %vm67, %v1895, %v1883
    %v1897 = vsel %vm1190, %v1896, %v1886
    %v1898 = vsel %vm1194, %v1897, %v1889
    %v1899 = vsel %vm1795, %v1898, %v1893
    %v1900 = vsel %vm1797, %v1899, 0.0
    %v1901 = vsel %vm1799, %v1900, 0.0
    %v1903 = vrot.slane %v1839, 4
    %v1904 = vrot.slane %v1808, 4
    %v1909 = vrot.slane %v1901, 4
    %v1910 = vrot.slane 0.0, 4
    %v1913 = vsel %vm964, %v1800, %v1903
    %v1914 = vsel %vm964, %v1772, %v1904
    %v1915 = vsel %vm964, %v1878, %v1909
    %v1916 = vsel %vm964, %v1847, %v1910
    %v1917 = vld [vmem:[#allocation3 + $0x10] sm:$0x7]
    %v1919 = vrot.slane %v1917, 7
    %v1921 = vsel %vm20, 0.0, %v1919
    %v1922 = vld [vmem:[#allocation3 + $0x10] sm:$0xf]
    %v1923 = vld [vmem:[#allocation3 + $0x11] sm:$0x7]
    %v1924 = vsel %vm1763, %v1923, 0.0
    %v1925 = vld [vmem:[#allocation3 + $0x14] sm:$0x7]
    %v1927 = vrot.slane %v1925, 7
    %v1929 = vsel %vm20, 0.0, %v1927
    %v1930 = vld [vmem:[#allocation3 + $0x14] sm:$0xf]
    %v1931 = vld [vmem:[#allocation3 + $0x15] sm:$0x7]
    %v1932 = vsel %vm1763, %v1931, 0.0
    %1934 = vrot.lane.b32.xlu0 %v1921, 48
    %v1935 = vpop.permute.xlu0 %1934
    %1938 = vrot.lane.b32.xlu0 %v1922, 64
    %v1939 = vpop.permute.xlu0 %1938
    %1942 = vrot.lane.b32.xlu0 %v1924, 80
    %v1943 = vpop.permute.xlu0 %1942
    %1946 = vrot.lane.b32.xlu0 %v1929, 96
    %v1947 = vpop.permute.xlu0 %1946
    %1950 = vrot.lane.b32.xlu0 %v1930, 112
    %v1951 = vpop.permute.xlu0 %1950
    %v1953 = vsel %vm1190, 0.0, %v1935
    %v1954 = vsel %vm1194, %v1953, %v1939
    %v1955 = vsel %vm1795, %v1954, %v1943
    %v1956 = vsel %vm1797, %v1955, %v1947
    %v1957 = vsel %vm1799, %v1956, %v1951
    %v1958 = vld [vmem:[#allocation3 + $0x18] sm:$0x7]
    %v1960 = vrot.slane %v1958, 7
    %v1962 = vsel %vm20, 0.0, %v1960
    %v1963 = vld [vmem:[#allocation3 + $0x18] sm:$0xf]
    %v1964 = vld [vmem:[#allocation3 + $0x19] sm:$0x7]
    %v1965 = vsel %vm1763, %v1964, 0.0
    %1966 = vrot.lane.b32.xlu0 %v1922, 16
    %v1967 = vpop.permute.xlu0 %1966
    %1969 = vrot.lane.b32.xlu0 %v1924, 32
    %v1970 = vpop.permute.xlu0 %1969
    %1972 = vrot.lane.b32.xlu0 %v1929, 48
    %v1973 = vpop.permute.xlu0 %1972
    %1975 = vrot.lane.b32.xlu0 %v1930, 64
    %v1976 = vpop.permute.xlu0 %1975
    %1979 = vrot.lane.b32.xlu0 %v1932, 80
    %v1980 = vpop.permute.xlu0 %1979
    %1983 = vrot.lane.b32.xlu0 %v1962, 96
    %v1984 = vpop.permute.xlu0 %1983
    %1987 = vrot.lane.b32.xlu0 %v1963, 112
    %v1988 = vpop.permute.xlu0 %1987
    %v1990 = vsel %vm59, %v1921, %v1967
    %v1991 = vsel %vm67, %v1990, %v1970
    %v1992 = vsel %vm1190, %v1991, %v1973
    %v1993 = vsel %vm1194, %v1992, %v1976
    %v1994 = vsel %vm1795, %v1993, %v1980
    %v1995 = vsel %vm1797, %v1994, %v1984
    %v1996 = vsel %vm1799, %v1995, %v1988
    %v1997 = vld [vmem:[#allocation3 + $0x1c] sm:$0x7]
    %v1999 = vrot.slane %v1997, 7
    %v2001 = vsel %vm20, 0.0, %v1999
    %v2002 = vld [vmem:[#allocation3 + $0x1c] sm:$0xf]
    %v2003 = vld [vmem:[#allocation3 + $0x1d] sm:$0x7]
    %v2004 = vsel %vm1763, %v2003, 0.0
    %2005 = vrot.lane.b32.xlu0 %v1930, 16
    %v2006 = vpop.permute.xlu0 %2005
    %2008 = vrot.lane.b32.xlu0 %v1932, 32
    %v2009 = vpop.permute.xlu0 %2008
    %2011 = vrot.lane.b32.xlu0 %v1962, 48
    %v2012 = vpop.permute.xlu0 %2011
    %2014 = vrot.lane.b32.xlu0 %v1963, 64
    %v2015 = vpop.permute.xlu0 %2014
    %2018 = vrot.lane.b32.xlu0 %v1965, 80
    %v2019 = vpop.permute.xlu0 %2018
    %2022 = vrot.lane.b32.xlu0 %v2001, 96
    %v2023 = vpop.permute.xlu0 %2022
    %2026 = vrot.lane.b32.xlu0 %v2002, 112
    %v2027 = vpop.permute.xlu0 %2026
    %v2029 = vsel %vm59, %v1929, %v2006
    %v2030 = vsel %vm67, %v2029, %v2009
    %v2031 = vsel %vm1190, %v2030, %v2012
    %v2032 = vsel %vm1194, %v2031, %v2015
    %v2033 = vsel %vm1795, %v2032, %v2019
    %v2034 = vsel %vm1797, %v2033, %v2023
    %v2035 = vsel %vm1799, %v2034, %v2027
    %2036 = vrot.lane.b32.xlu0 %v1963, 16
    %v2037 = vpop.permute.xlu0 %2036
    %2039 = vrot.lane.b32.xlu0 %v1965, 32
    %v2040 = vpop.permute.xlu0 %2039
    %2042 = vrot.lane.b32.xlu0 %v2001, 48
    %v2043 = vpop.permute.xlu0 %2042
    %2045 = vrot.lane.b32.xlu0 %v2002, 64
    %v2046 = vpop.permute.xlu0 %2045
    %2049 = vrot.lane.b32.xlu0 %v2004, 80
    %v2050 = vpop.permute.xlu0 %2049
    %v2052 = vsel %vm59, %v1962, %v2037
    %v2053 = vsel %vm67, %v2052, %v2040
    %v2054 = vsel %vm1190, %v2053, %v2043
    %v2055 = vsel %vm1194, %v2054, %v2046
    %v2056 = vsel %vm1795, %v2055, %v2050
    %v2057 = vsel %vm1797, %v2056, 0.0
    %v2058 = vsel %vm1799, %v2057, 0.0
    %v2060 = vrot.slane %v1996, 4
    %v2061 = vrot.slane %v1965, 4
    %v2065 = vrot.slane %v2058, 4
    %v2067 = vsel %vm964, %v1957, %v2060
    %v2068 = vsel %vm964, %v1932, %v2061
    %v2069 = vsel %vm964, %v2035, %v2065
    %v2070 = vsel %vm964, %v2004, %v1910
    %v2071 = vld [vmem:[%s1] sm:$0xff]
    %v2072 = vld [vmem:[%s1 + $0x8] sm:$0xff]
    %v2073 = vld [vmem:[%s1 + $0x10] sm:$0xff]
    %v2074 = vld [vmem:[%s1 + $0x18] sm:$0xff]
    %v2075 = vld [vmem:[%s1 + $0x20] sm:$0xff]
    %v2076 = vld [vmem:[%s1 + $0x28] sm:$0xff]
    %v2077 = vld [vmem:[%s1 + $0x30] sm:$0xff]
    %v2078 = vld [vmem:[%s1 + $0x38] sm:$0xff]
    %v2079 = vld [vmem:[%s1 + $0x40] sm:$0xff]
    %v2080 = vld [vmem:[%s1 + $0x48] sm:$0xff]
    %v2081 = vld [vmem:[%s1 + $0x50] sm:$0xff]
    %v2082 = vld [vmem:[%s1 + $0x58] sm:$0xff]
    %v2083 = vld [vmem:[%s1 + $0x60] sm:$0xff]
    %v2084 = vld [vmem:[%s1 + $0x68] sm:$0xff]
    %v2085 = vld [vmem:[%s1 + $0x70] sm:$0xff]
    %v2086 = vld [vmem:[%s1 + $0x78] sm:$0xff]
    %v2087 = vld [vmem:[%s1 + $0x80] sm:$0xff]
    %v2088 = vld [vmem:[%s1 + $0x88] sm:$0xff]
    %v2089 = vld [vmem:[%s2] sm:$0x1]
    %v2091 = vlaneseq
    %v2092 = vshrl.u32 %v2091, 7
    %v2093 = vsub.s32 0, %v2092
    %v2094 = vrot.slane %v2089, %v2093
    %2113 = vrot.lane.b32.xlu0 %v2071, 104
    %v2114 = vpop.permute.xlu0 %2113
    %2115 = vrot.lane.b32.xlu0 %v2072, 104
    %v2116 = vpop.permute.xlu0 %2115
    %2117 = vrot.lane.b32.xlu0 %v2073, 104
    %v2118 = vpop.permute.xlu0 %2117
    %2119 = vrot.lane.b32.xlu0 %v2074, 104
    %v2120 = vpop.permute.xlu0 %2119
    %2121 = vrot.lane.b32.xlu0 %v2075, 104
    %v2122 = vpop.permute.xlu0 %2121
    %2123 = vrot.lane.b32.xlu0 %v2076, 104
    %v2124 = vpop.permute.xlu0 %2123
    %2125 = vrot.lane.b32.xlu0 %v2077, 104
    %v2126 = vpop.permute.xlu0 %2125
    %2127 = vrot.lane.b32.xlu0 %v2078, 104
    %v2128 = vpop.permute.xlu0 %2127
    %2129 = vrot.lane.b32.xlu0 %v2079, 104
    %v2130 = vpop.permute.xlu0 %2129
    %2131 = vrot.lane.b32.xlu0 %v2080, 104
    %v2132 = vpop.permute.xlu0 %2131
    %2133 = vrot.lane.b32.xlu0 %v2081, 104
    %v2134 = vpop.permute.xlu0 %2133
    %2135 = vrot.lane.b32.xlu0 %v2082, 104
    %v2136 = vpop.permute.xlu0 %2135
    %2137 = vrot.lane.b32.xlu0 %v2083, 104
    %v2138 = vpop.permute.xlu0 %2137
    %2139 = vrot.lane.b32.xlu0 %v2084, 104
    %v2140 = vpop.permute.xlu0 %2139
    %2141 = vrot.lane.b32.xlu0 %v2085, 104
    %v2142 = vpop.permute.xlu0 %2141
    %2143 = vrot.lane.b32.xlu0 %v2086, 104
    %v2144 = vpop.permute.xlu0 %2143
    %2145 = vrot.lane.b32.xlu0 %v2087, 104
    %v2146 = vpop.permute.xlu0 %2145
    %2147 = vrot.lane.b32.xlu0 %v2088, 104
    %v2148 = vpop.permute.xlu0 %2147
    %2167 = vrot.lane.b32.xlu0 %v2094, 104
    %v2168 = vpop.permute.xlu0 %2167
    %v2171 = vsel %vm59, %v1914, 0
    %v2174 = vsel %vm59, %v1916, 0
    %v2177 = vsel %vm59, %v2068, 0
    %v2180 = vsel %vm59, %v2070, 0
    %2182 = vmatprep.subr.mxu0 0.0
    %2183 = vmatpush1.msra.mxu0 %v2114
    %2184 = vmatprep.subr.mxu0 0.0
    %2185 = vmatpush1.msra.mxu0 %v2116
    %2186 = vmatprep.subr.mxu0 0.0
    %2187 = vmatpush1.msra.mxu0 %v2118
    %2188 = vmatprep.subr.mxu0 0.0
    %2189 = vmatpush1.msra.mxu0 %v2120
    %2190 = vmatprep.subr.mxu0 0.0
    %2191 = vmatpush1.msra.mxu0 %v2122
    %2192 = vmatprep.subr.mxu0 0.0
    %2193 = vmatpush1.msra.mxu0 %v2124
    %2194 = vmatprep.subr.mxu0 0.0
    %2195 = vmatpush1.msra.mxu0 %v2126
    %2196 = vmatprep.subr.mxu0 0.0
    %2197 = vmatpush1.msra.mxu0 %v2128
    %2198 = vmatprep.subr.mxu0 0.0
    %2199 = vmatpush1.msra.mxu0 %v2130
    %2200 = vmatprep.subr.mxu0 0.0
    %2201 = vmatpush1.msra.mxu0 %v2132
    %2202 = vmatprep.subr.mxu0 0.0
    %2203 = vmatpush1.msra.mxu0 %v2134
    %2204 = vmatprep.subr.mxu0 0.0
    %2205 = vmatpush1.msra.mxu0 %v2136
    %2206 = vmatprep.subr.mxu0 0.0
    %2207 = vmatpush1.msra.mxu0 %v2138
    %2208 = vmatprep.subr.mxu0 0.0
    %2209 = vmatpush1.msra.mxu0 %v2140
    %2210 = vmatprep.subr.mxu0 0.0
    %2211 = vmatpush1.msra.mxu0 %v2142
    %2212 = vmatprep.subr.mxu0 0.0
    %2213 = vmatpush1.msra.mxu0 %v2144
    %2214 = vmatprep.subr.mxu0 0.0
    %2215 = vmatpush1.msra.mxu0 %v2146
    %2216 = vmatprep.subr.mxu0 0.0
    %2217 = vmatpush1.msra.mxu0 %v2148
    %2218 = vmatprep.subr.mxu0 0.0
    %2219 = vmatpush1.msra.mxu0 0.0
    %2220 = vmatprep.subr.mxu0 0.0
    %2221 = vmatpush1.msra.mxu0 0.0
    %2222 = vmatprep.subr.mxu0 0.0
    %2223 = vmatpush1.msra.mxu0 0.0
    %2224 = vmatprep.subr.mxu0 0.0
    %2225 = vmatpush1.msra.mxu0 0.0
    %2226 = vmatprep.subr.mxu0 0.0
    %2227 = vmatpush1.msra.mxu0 0.0
    %2228 = vmatprep.subr.mxu0 0.0
    %2229 = vmatpush1.msra.mxu0 0.0
    %2230 = vmatprep.subr.mxu0 0.0
    %2231 = vmatpush1.msra.mxu0 0.0
    %2232 = vmatprep.subr.mxu0 0.0
    %2233 = vmatpush1.msra.mxu0 0.0
    %2234 = vmatprep.subr.mxu0 0.0
    %2235 = vmatpush1.msra.mxu0 0.0
    %2236 = vmatprep.subr.mxu0 0.0
    %2237 = vmatpush1.msra.mxu0 0.0
    %2238 = vmatprep.subr.mxu0 0.0
    %2239 = vmatpush1.msra.mxu0 0.0
    %2240 = vmatprep.subr.mxu0 0.0
    %2241 = vmatpush1.msra.mxu0 0.0
    %2242 = vmatprep.subr.mxu0 0.0
    %2243 = vmatpush1.msra.mxu0 0.0
    %2244 = vmatprep.subr.mxu0 0.0
    %2245 = vmatpush1.msra.mxu0 0.0
    %2246 = vmatprep.mubr.f32.mxu0 %v2171
    %2247 = vmatmul.mubr.f32.gmra.mrb[0].mxu0 %v1913
    %v2248 = vpop.f32.mrb[0].mxu0
    %v2249 = vadd.f32 %v2168, %v2248
    %v2250 = vpop.f32.mrb[0].mxu0
    %2251 = vmatprep.mubr.f32.mxu0 %v2174
    %2252 = vmatmul.mubr.f32.gmra.mrb[0].mxu0 %v1915
    %v2253 = vpop.f32.mrb[0].mxu0
    %v2254 = vadd.f32 %v2168, %v2253
    %v2255 = vpop.f32.mrb[0].mxu0
    %2256 = vmatprep.mubr.f32.mxu0 %v2177
    %2257 = vmatmul.mubr.f32.gmra.mrb[0].mxu0 %v2067
    %v2258 = vpop.f32.mrb[0].mxu0
    %v2259 = vadd.f32 %v2168, %v2258
    %v2260 = vpop.f32.mrb[0].mxu0
    %2261 = vmatprep.mubr.f32.mxu0 %v2180
    %2262 = vmatmul.mubr.f32.gmra.mrb[0].mxu0 %v2069
    %v2263 = vpop.f32.mrb[0].mxu0
    %v2264 = vadd.f32 %v2168, %v2263
    %v2265 = vpop.f32.mrb[0].mxu0
    %2266 = vdwg.mxu0
    %v2267 = vmax.f32 %v2249, 0.0
    %v2268 = vmax.f32 %v2254, 0.0
    %v2269 = vmax.f32 %v2259, 0.0
    %v2270 = vmax.f32 %v2264, 0.0
    %v2271 = vsel %vm67, %v2267, 0.0
    %v2272 = vsel %vm67, %v2268, 0.0
    %v2273 = vadd.f32 %v2271, %v2272
    %v2274 = vrot.slane %v2273, 4
    %v2275 = vadd.f32 %v2273, %v2274
    %v2276 = vrot.slane %v2275, 2
    %v2277 = vadd.f32 %v2275, %v2276
    %v2278 = vrot.slane %v2277, 1
    %v2279 = vadd.f32 %v2277, %v2278
    %v2280 = vrcp.pop 16.0
    %v2281 = vmul.f32 %v2279, %v2280
    %v2282 = vsel %vm67, %v2269, 0.0
    %v2283 = vsel %vm67, %v2270, 0.0
    %v2284 = vadd.f32 %v2282, %v2283
    %v2285 = vrot.slane %v2284, 4
    %v2286 = vadd.f32 %v2284, %v2285
    %v2287 = vrot.slane %v2286, 2
    %v2288 = vadd.f32 %v2286, %v2287
    %v2289 = vrot.slane %v2288, 1
    %v2290 = vadd.f32 %v2288, %v2289
    %v2291 = vmul.f32 %v2290, %v2280
    %v2292 = vsel %vm20, %v2281, %v2291
    %v2293 = vld [vmem:[%s1] sm:$0xff]
    %v2294 = vld [vmem:[%s1 + $0x8] sm:$0xff]
    %v2295 = vld [vmem:[%s1 + $0x10] sm:$0xff]
    %v2296 = vld [vmem:[%s1 + $0x18] sm:$0xff]
    %2301 = vrot.lane.b32.xlu0 %v2293, 72
    %v2302 = vpop.permute.xlu0 %2301
    %2303 = vrot.lane.b32.xlu0 %v2294, 72
    %v2304 = vpop.permute.xlu0 %2303
    %2305 = vrot.lane.b32.xlu0 %v2295, 72
    %v2306 = vpop.permute.xlu0 %2305
    %2307 = vrot.lane.b32.xlu0 %v2296, 72
    %v2308 = vpop.permute.xlu0 %2307
    %2313 = vrot.lane.b32.xlu0 %v2094, 72
    %v2314 = vpop.permute.xlu0 %2313
    %v2317 = vsel %vm67, %v2292, 0
    %2319 = vmatprep.subr.mxu0 0.0
    %2320 = vmatpush1.msra.mxu0 %v2302
    %2321 = vmatprep.subr.mxu0 0.0
    %2322 = vmatpush1.msra.mxu0 %v2304
    %2323 = vmatprep.subr.mxu0 0.0
    %2324 = vmatpush1.msra.mxu0 %v2306
    %2325 = vmatprep.subr.mxu0 0.0
    %2326 = vmatpush1.msra.mxu0 %v2308
    %2327 = vmatprep.subr.mxu0 0.0
    %2328 = vmatpush1.msra.mxu0 0.0
    %2329 = vmatprep.subr.mxu0 0.0
    %2330 = vmatpush1.msra.mxu0 0.0
    %2331 = vmatprep.subr.mxu0 0.0
    %2332 = vmatpush1.msra.mxu0 0.0
    %2333 = vmatprep.subr.mxu0 0.0
    %2334 = vmatpush1.msra.mxu0 0.0
    %2335 = vmatprep.subr.mxu0 0.0
    %2336 = vmatpush1.msra.mxu0 0.0
    %2337 = vmatprep.subr.mxu0 0.0
    %2338 = vmatpush1.msra.mxu0 0.0
    %2339 = vmatprep.subr.mxu0 0.0
    %2340 = vmatpush1.msra.mxu0 0.0
    %2341 = vmatprep.subr.mxu0 0.0
    %2342 = vmatpush1.msra.mxu0 0.0
    %2343 = vmatprep.subr.mxu0 0.0
    %2344 = vmatpush1.msra.mxu0 0.0
    %2345 = vmatprep.subr.mxu0 0.0
    %2346 = vmatpush1.msra.mxu0 0.0
    %2347 = vmatprep.subr.mxu0 0.0
    %2348 = vmatpush1.msra.mxu0 0.0
    %2349 = vmatprep.subr.mxu0 0.0
    %2350 = vmatpush1.msra.mxu0 0.0
    %2351 = vmatprep.subr.mxu0 0.0
    %2352 = vmatpush1.msra.mxu0 0.0
    %2353 = vmatprep.subr.mxu0 0.0
    %2354 = vmatpush1.msra.mxu0 0.0
    %2355 = vmatprep.subr.mxu0 0.0
    %2356 = vmatpush1.msra.mxu0 0.0
    %2357 = vmatprep.subr.mxu0 0.0
    %2358 = vmatpush1.msra.mxu0 0.0
    %2359 = vmatprep.subr.mxu0 0.0
    %2360 = vmatpush1.msra.mxu0 0.0
    %2361 = vmatprep.subr.mxu0 0.0
    %2362 = vmatpush1.msra.mxu0 0.0
    %2363 = vmatprep.subr.mxu0 0.0
    %2364 = vmatpush1.msra.mxu0 0.0
    %2365 = vmatprep.subr.mxu0 0.0
    %2366 = vmatpush1.msra.mxu0 0.0
    %2367 = vmatprep.subr.mxu0 0.0
    %2368 = vmatpush1.msra.mxu0 0.0
    %2369 = vmatprep.subr.mxu0 0.0
    %2370 = vmatpush1.msra.mxu0 0.0
    %2371 = vmatprep.subr.mxu0 0.0
    %2372 = vmatpush1.msra.mxu0 0.0
    %2373 = vmatprep.subr.mxu0 0.0
    %2374 = vmatpush1.msra.mxu0 0.0
    %2375 = vmatprep.subr.mxu0 0.0
    %2376 = vmatpush1.msra.mxu0 0.0
    %2377 = vmatprep.subr.mxu0 0.0
    %2378 = vmatpush1.msra.mxu0 0.0
    %2379 = vmatprep.subr.mxu0 0.0
    %2380 = vmatpush1.msra.mxu0 0.0
    %2381 = vmatprep.subr.mxu0 0.0
    %2382 = vmatpush1.msra.mxu0 0.0
    %2383 = vmatprep.mubr.f32.mxu0 0.0
    %2384 = vmatmul.mubr.f32.gmra.mrb[0].mxu0 %v2317
    %v2385 = vpop.f32.mrb[0].mxu0
    %v2386 = vadd.f32 %v2314, %v2385
    %v2387 = vpop.f32.mrb[0].mxu0
    %2388 = vdwg.mxu0
    %vm2389 = vcmask 74752
    %2390 = vst.msk [vmem:[#allocation4] sm:$0x3] %vm2389, %v2386
    // Predicated region
    $region14: #{cnnnet_forward.1} parent=1 // pred_check
      _
    $region15: #{cnnnet_forward.1} parent=1 // pred_check_branch
      %2392 = sbr.rel (0) target = $region17
    $region16: #{cnnnet_forward.1} parent=1 // pred_region
      %s2394 = ssub.s32 32, 32
      %2395 = vsyncadd [#allocation5], %s2394
      %s2397 = sshll.u32 [#allocation4], 4
      %s2398 = int_to_ptr.vmem [resolvable:$true] %s2397
      %2400 = dma.vmem_to_hbm [thread:$0]  %s2398, 32, %s3, [#allocation5]
    $region17: #{cnnnet_forward.1} parent=1 // pred_fallthru
      _
    // Predicated region
    $region18: #{cnnnet_forward.1} parent=1 // pred_check
      _
    $region19: #{cnnnet_forward.1} parent=1 // pred_check_branch
      %2402 = sbr.rel (0) target = $region21
    $region20: #{cnnnet_forward.1} parent=1 // pred_region
      %2403 = dma.done [#allocation5], 32
    $region21: #{cnnnet_forward.1} parent=1 // pred_fallthru
      _
    %2404 = vsyncpa [#allocation5], 1

</llo_original>
